<compile_context>
chip_gen: v6e
topology: v6e:2x2x1
jax: 0.10.0
libtpu: 0.0.40
codegen_flags: <defaults>
</compile_context>

<pallas_src>
import numpy as np
import jax
import jax.numpy as jnp
from jax import lax
from jax.experimental import pallas as pl
from jax.experimental.pallas import tpu as pltpu

KS = 21          # conv kernel size
PAD = KS // 2    # circular padding ("same")
HID = 10         # hidden channels of the 1x1 convs


def _nca_kernel(w12_ref, x0_ref, wcirc_ref, seq_ref, state_ref):
    # w12_ref  : SMEM (2*HID,)          1x1 conv weights: w1[0..9], then w2[0..9]
    # x0_ref   : VMEM (NP, HW)          initial state (sublane-padded batch, flat pixels)
    # wcirc_ref: VMEM (HW, HW)          circulant matrix of the torus-folded 21x21 conv
    # seq_ref  : VMEM (S_INNER, NP, HW) output block for this grid iteration
    # state_ref: VMEM (NP, HW)          persistent state across grid iterations
    s_inner = seq_ref.shape[0]

    @pl.when(pl.program_id(0) == 0)
    def _init():
        state_ref[...] = x0_ref[...]

    x = state_ref[...]                                    # (NP, HW)
    # Statically unrolled inner step loop (S_INNER is small; state is ~8 vregs).
    for s in range(s_inner):
        # Circular 21x21 conv == one (NP,HW)x(HW,HW) MXU matmul.
        c = jnp.dot(x, wcirc_ref[...],
                    preferred_element_type=jnp.float32,
                    precision=lax.Precision.HIGHEST)
        r = jnp.maximum(c, 0.0)
        # Pointwise 1->10->1 net, lane-dense VPU FMAs with SMEM scalars,
        # two partial accumulators to break the serial VALU chain.
        acc = [None, None]
        for j in range(HID):
            t = w12_ref[HID + j] * jnp.maximum(w12_ref[j] * r, 0.0)
            k = j % 2
            acc[k] = t if acc[k] is None else acc[k] + t
        x = jnp.tanh(x + (acc[0] + acc[1]))
        seq_ref[s] = x                                    # lane-dense (NP, HW) store
    state_ref[...] = x                                    # carry state to next grid step


def make_nca_call(steps_pad, s_inner, np_rows, hw):
    grid = (steps_pad // s_inner,)
    grid_spec = pltpu.PrefetchScalarGridSpec(
        num_scalar_prefetch=0,
        grid=grid,
        in_specs=[
            pl.BlockSpec(memory_space=pltpu.MemorySpace.SMEM),      # w1 / w2 scalars
            pl.BlockSpec((np_rows, hw), lambda g: (0, 0)),          # x0 (fetched once)
            pl.BlockSpec((hw, hw), lambda g: (0, 0)),               # circulant matrix
        ],
        out_specs=pl.BlockSpec((s_inner, np_rows, hw), lambda g: (g, 0, 0)),
        scratch_shapes=[pltpu.VMEM((np_rows, hw), jnp.float32)],    # persistent state
    )
    return pl.pallas_call(
        _nca_kernel,
        out_shape=jax.ShapeDtypeStruct((steps_pad, np_rows, hw), jnp.float32),
        grid_spec=grid_spec,
        compiler_params=pltpu.CompilerParams(
            # steps are sequentially dependent -> "arbitrary"
            dimension_semantics=("arbitrary",)),
    )


def nca_forward(x_nchw, steps, params):
    """Mirrors NCA.forward: returns (N, steps + 1, 1, H, W)."""
    N, C, H, W = x_nchw.shape
    assert C == 1
    assert steps >= 1
    HW = H * W
    NP = max(8, ((N + 7) // 8) * 8)                        # sublane-pad batch rows

    x0 = x_nchw[:, 0].reshape(N, HW).astype(jnp.float32)   # (N, HW)
    x0p = jnp.zeros((NP, HW), jnp.float32).at[:N].set(x0)  # zero rows stay zero

    # 1) Fold the KSxKS kernel onto the (H, W) torus (exact for circular padding).
    conv_flat = params["conv_w"].reshape(-1).astype(jnp.float32)       # (KS*KS,)
    a_idx = (np.arange(KS) - PAD) % H
    b_idx = (np.arange(KS) - PAD) % W
    fold_idx = (a_idx[:, None] * W + b_idx[None, :]).reshape(-1)       # static
    w_eff = jnp.zeros((HW,), jnp.float32).at[fold_idx].add(conv_flat)  # (HW,)

    # 2) Expand the folded kernel into a circulant matrix M with
    #    conv_flat[q] = sum_p x_flat[p] * M[p, q],
    #    M[p, q] = w_eff[((py - qy) % H) * W + (px - qx) % W].
    gy, gx = np.meshgrid(np.arange(H), np.arange(W), indexing="ij")
    fy, fx = gy.reshape(-1), gx.reshape(-1)                            # (HW,)
    dy = (fy[:, None] - fy[None, :]) % H
    dx = (fx[:, None] - fx[None, :]) % W
    gather_idx = (dy * W + dx).astype(np.int32)                        # static (HW, HW)
    w_circ = jnp.take(w_eff, jnp.asarray(gather_idx))                  # (HW, HW) f32

    w12 = jnp.concatenate([
        params["w1"].reshape(-1).astype(jnp.float32),
        params["w2"].reshape(-1).astype(jnp.float32),
    ])

    # 3) Step blocking (extra padded steps are computed and discarded).
    s_inner = min(8, steps)
    steps_pad = ((steps + s_inner - 1) // s_inner) * s_inner

    raw = make_nca_call(steps_pad, s_inner, NP, HW)(w12, x0p, w_circ)  # (steps_pad, NP, HW)
    seq = raw[:steps, :N].reshape(steps, N, H, W)
    all_x = jnp.concatenate([x0.reshape(1, N, H, W), seq], axis=0)     # (steps+1, N, H, W)
    # torch.stack(seq, dim=1) layout: (N, steps+1, 1, H, W)
    return jnp.transpose(all_x, (1, 0, 2, 3))[:, :, None]


def _reference_forward(x_nchw, steps, params):
    """Pure-JAX reference for correctness checking."""
    x = x_nchw.astype(jnp.float32)
    w = params["conv_w"].reshape(1, 1, KS, KS).astype(jnp.float32)
    w1 = params["w1"].reshape(1, HID, 1, 1).astype(jnp.float32)
    w2 = params["w2"].reshape(1, HID, 1, 1).astype(jnp.float32)
    seq = [x]
    for _ in range(steps):
        xp = jnp.pad(x, ((0, 0), (0, 0), (PAD, PAD), (PAD, PAD)), mode="wrap")
        c = lax.conv_general_dilated(
            xp, w, window_strides=(1, 1), padding="VALID",
            dimension_numbers=("NCHW", "OIHW", "NCHW"),
            precision=lax.Precision.HIGHEST)                        # (N, 1, H, W)
        h = jnp.maximum(w1 * jnp.maximum(c, 0.0), 0.0)              # (N, HID, H, W)
        net = jnp.sum(w2 * h, axis=1, keepdims=True)                # (N, 1, H, W)
        x = jnp.tanh(x + net)
        seq.append(x)
    return jnp.stack(seq, axis=1)                                   # (N, steps+1, 1, H, W)


if __name__ == "__main__":
    key = jax.random.PRNGKey(0)
    kx, kc, k1, k2 = jax.random.split(key, 4)

    N, C, H, W = 2, 1, 16, 16
    steps = 3
    x = jax.random.uniform(kx, (N, C, H, W), jnp.float32)

    # Parameter shapes match the module.  The conv weight scale is reduced from the
    # module's normal(0, 0.8) init: with std 0.8 the 441-tap conv makes tanh(x + net(x))
    # strongly chaotic, so benign fp-reassociation differences between two correct
    # implementations diverge and a numerical equivalence check is meaningless.
    params = {
        "conv_w": 0.05 * jax.random.normal(kc, (1, 1, KS, KS), jnp.float32),
        "w1": 0.8 * jax.random.normal(k1, (HID, 1, 1, 1), jnp.float32),
        "w2": 0.8 * jax.random.normal(k2, (1, HID, 1, 1), jnp.float32),
    }

    out = nca_forward(x, steps, params)
    jax.block_until_ready(out)

    ref = _reference_forward(x, steps, params)
    assert out.shape == ref.shape == (N, steps + 1, 1, H, W)
    assert out.dtype == ref.dtype
    err = float(jnp.max(jnp.abs(out - ref)))
    assert err < 1e-3, f"mismatch vs reference: max abs err = {err}"
    print("KERNEL_OK")
</pallas_src>

<mosaic_0001>
module attributes {stable_mosaic.version = 11 : i64} {
  func.func @_nca_kernel(%arg0: i32, %arg1: memref<20xf32, #tpu.memory_space<smem>>, %arg2: memref<8x256xf32, #tpu.memory_space<vmem>>, %arg3: memref<256x256xf32, #tpu.memory_space<vmem>>, %arg4: memref<3x8x256xf32, #tpu.memory_space<vmem>>, %arg5: memref<8x256xf32, #tpu.memory_space<vmem>>) attributes {dimension_semantics = [#tpu.dimension_semantics<arbitrary>], iteration_bounds = array<i64: 1>, scalar_prefetch = 0 : i64, scratch_operands = 1 : i64, tpu.core_type = #tpu.core_type<tc>, window_params = [{transform_indices = @transform_0, window_bounds = array<i64: 20>}, {pipeline_mode = #tpu.pipeline_mode<synchronous>, transform_indices = @transform_1, window_bounds = array<i64: 8, 256>}, {pipeline_mode = #tpu.pipeline_mode<synchronous>, transform_indices = @transform_2, window_bounds = array<i64: 256, 256>}, {transform_indices = @transform_3, window_bounds = array<i64: 3, 8, 256>}]} {
    %c0_i32 = arith.constant 0 : i32
    %0 = arith.cmpi eq, %arg0, %c0_i32 : i32
    %1 = arith.extui %0 : i1 to i32
    %c0_i32_0 = arith.constant 0 : i32
    %2 = arith.cmpi ne, %1, %c0_i32_0 : i32
    scf.if %2 {
      %c0_95 = arith.constant 0 : index
      %c0_96 = arith.constant 0 : index
      %299 = vector.load %arg2[%c0_95, %c0_96] : memref<8x256xf32, #tpu.memory_space<vmem>>, vector<8x256xf32>
      %c0_97 = arith.constant 0 : index
      %c0_98 = arith.constant 0 : index
      %300 = vector.load %arg5[%c0_97, %c0_98] : memref<8x256xf32, #tpu.memory_space<vmem>>, vector<8x256xf32>
      tpu.vector_store %arg5[%c0_97, %c0_98], %299 {strides = array<i32>} : memref<8x256xf32, #tpu.memory_space<vmem>>, vector<8x256xf32>,
    } else {
    }
    %c0 = arith.constant 0 : index
    %c0_1 = arith.constant 0 : index
    %3 = vector.load %arg5[%c0, %c0_1] : memref<8x256xf32, #tpu.memory_space<vmem>>, vector<8x256xf32>
    %c0_2 = arith.constant 0 : index
    %c0_3 = arith.constant 0 : index
    %4 = vector.load %arg3[%c0_2, %c0_3] : memref<256x256xf32, #tpu.memory_space<vmem>>, vector<256x256xf32>
    %cst = arith.constant dense<0.000000e+00> : vector<8x256xf32>
    %5 = tpu.matmul %3, %4, %cst {dimension_numbers = #tpu.dot_dimension_numbers<[1], [0], [0], [1], [0, 0, 1, 1], [], []>, precision = #tpu.contract_precision<fp32>} : vector<8x256xf32>, vector<256x256xf32>, vector<8x256xf32> -> vector<8x256xf32>
    %cst_4 = arith.constant 0.000000e+00 : f32
    %6 = vector.broadcast %cst_4 : f32 to vector<8x256xf32>
    %7 = arith.maximumf %5, %6 : vector<8x256xf32>
    %c10 = arith.constant 10 : index
    %8 = memref.load %arg1[%c10] : memref<20xf32, #tpu.memory_space<smem>>
    %c0_5 = arith.constant 0 : index
    %9 = memref.load %arg1[%c0_5] : memref<20xf32, #tpu.memory_space<smem>>
    %10 = vector.broadcast %9 : f32 to vector<8x256xf32>
    %11 = arith.mulf %10, %7 : vector<8x256xf32>
    %cst_6 = arith.constant 0.000000e+00 : f32
    %12 = vector.broadcast %cst_6 : f32 to vector<8x256xf32>
    %13 = arith.maximumf %11, %12 : vector<8x256xf32>
    %14 = vector.broadcast %8 : f32 to vector<8x256xf32>
    %15 = arith.mulf %14, %13 : vector<8x256xf32>
    %c11 = arith.constant 11 : index
    %16 = memref.load %arg1[%c11] : memref<20xf32, #tpu.memory_space<smem>>
    %c1 = arith.constant 1 : index
    %17 = memref.load %arg1[%c1] : memref<20xf32, #tpu.memory_space<smem>>
    %18 = vector.broadcast %17 : f32 to vector<8x256xf32>
    %19 = arith.mulf %18, %7 : vector<8x256xf32>
    %cst_7 = arith.constant 0.000000e+00 : f32
    %20 = vector.broadcast %cst_7 : f32 to vector<8x256xf32>
    %21 = arith.maximumf %19, %20 : vector<8x256xf32>
    %22 = vector.broadcast %16 : f32 to vector<8x256xf32>
    %23 = arith.mulf %22, %21 : vector<8x256xf32>
    %c12 = arith.constant 12 : index
    %24 = memref.load %arg1[%c12] : memref<20xf32, #tpu.memory_space<smem>>
    %c2 = arith.constant 2 : index
    %25 = memref.load %arg1[%c2] : memref<20xf32, #tpu.memory_space<smem>>
    %26 = vector.broadcast %25 : f32 to vector<8x256xf32>
    %27 = arith.mulf %26, %7 : vector<8x256xf32>
    %cst_8 = arith.constant 0.000000e+00 : f32
    %28 = vector.broadcast %cst_8 : f32 to vector<8x256xf32>
    %29 = arith.maximumf %27, %28 : vector<8x256xf32>
    %30 = vector.broadcast %24 : f32 to vector<8x256xf32>
    %31 = arith.mulf %30, %29 : vector<8x256xf32>
    %32 = arith.addf %15, %31 : vector<8x256xf32>
    %c13 = arith.constant 13 : index
    %33 = memref.load %arg1[%c13] : memref<20xf32, #tpu.memory_space<smem>>
    %c3 = arith.constant 3 : index
    %34 = memref.load %arg1[%c3] : memref<20xf32, #tpu.memory_space<smem>>
    %35 = vector.broadcast %34 : f32 to vector<8x256xf32>
    %36 = arith.mulf %35, %7 : vector<8x256xf32>
    %cst_9 = arith.constant 0.000000e+00 : f32
    %37 = vector.broadcast %cst_9 : f32 to vector<8x256xf32>
    %38 = arith.maximumf %36, %37 : vector<8x256xf32>
    %39 = vector.broadcast %33 : f32 to vector<8x256xf32>
    %40 = arith.mulf %39, %38 : vector<8x256xf32>
    %41 = arith.addf %23, %40 : vector<8x256xf32>
    %c14 = arith.constant 14 : index
    %42 = memref.load %arg1[%c14] : memref<20xf32, #tpu.memory_space<smem>>
    %c4 = arith.constant 4 : index
    %43 = memref.load %arg1[%c4] : memref<20xf32, #tpu.memory_space<smem>>
    %44 = vector.broadcast %43 : f32 to vector<8x256xf32>
    %45 = arith.mulf %44, %7 : vector<8x256xf32>
    %cst_10 = arith.constant 0.000000e+00 : f32
    %46 = vector.broadcast %cst_10 : f32 to vector<8x256xf32>
    %47 = arith.maximumf %45, %46 : vector<8x256xf32>
    %48 = vector.broadcast %42 : f32 to vector<8x256xf32>
    %49 = arith.mulf %48, %47 : vector<8x256xf32>
    %50 = arith.addf %32, %49 : vector<8x256xf32>
    %c15 = arith.constant 15 : index
    %51 = memref.load %arg1[%c15] : memref<20xf32, #tpu.memory_space<smem>>
    %c5 = arith.constant 5 : index
    %52 = memref.load %arg1[%c5] : memref<20xf32, #tpu.memory_space<smem>>
    %53 = vector.broadcast %52 : f32 to vector<8x256xf32>
    %54 = arith.mulf %53, %7 : vector<8x256xf32>
    %cst_11 = arith.constant 0.000000e+00 : f32
    %55 = vector.broadcast %cst_11 : f32 to vector<8x256xf32>
    %56 = arith.maximumf %54, %55 : vector<8x256xf32>
    %57 = vector.broadcast %51 : f32 to vector<8x256xf32>
    %58 = arith.mulf %57, %56 : vector<8x256xf32>
    %59 = arith.addf %41, %58 : vector<8x256xf32>
    %c16 = arith.constant 16 : index
    %60 = memref.load %arg1[%c16] : memref<20xf32, #tpu.memory_space<smem>>
    %c6 = arith.constant 6 : index
    %61 = memref.load %arg1[%c6] : memref<20xf32, #tpu.memory_space<smem>>
    %62 = vector.broadcast %61 : f32 to vector<8x256xf32>
    %63 = arith.mulf %62, %7 : vector<8x256xf32>
    %cst_12 = arith.constant 0.000000e+00 : f32
    %64 = vector.broadcast %cst_12 : f32 to vector<8x256xf32>
    %65 = arith.maximumf %63, %64 : vector<8x256xf32>
    %66 = vector.broadcast %60 : f32 to vector<8x256xf32>
    %67 = arith.mulf %66, %65 : vector<8x256xf32>
    %68 = arith.addf %50, %67 : vector<8x256xf32>
    %c17 = arith.constant 17 : index
    %69 = memref.load %arg1[%c17] : memref<20xf32, #tpu.memory_space<smem>>
    %c7 = arith.constant 7 : index
    %70 = memref.load %arg1[%c7] : memref<20xf32, #tpu.memory_space<smem>>
    %71 = vector.broadcast %70 : f32 to vector<8x256xf32>
    %72 = arith.mulf %71, %7 : vector<8x256xf32>
    %cst_13 = arith.constant 0.000000e+00 : f32
    %73 = vector.broadcast %cst_13 : f32 to vector<8x256xf32>
    %74 = arith.maximumf %72, %73 : vector<8x256xf32>
    %75 = vector.broadcast %69 : f32 to vector<8x256xf32>
    %76 = arith.mulf %75, %74 : vector<8x256xf32>
    %77 = arith.addf %59, %76 : vector<8x256xf32>
    %c18 = arith.constant 18 : index
    %78 = memref.load %arg1[%c18] : memref<20xf32, #tpu.memory_space<smem>>
    %c8 = arith.constant 8 : index
    %79 = memref.load %arg1[%c8] : memref<20xf32, #tpu.memory_space<smem>>
    %80 = vector.broadcast %79 : f32 to vector<8x256xf32>
    %81 = arith.mulf %80, %7 : vector<8x256xf32>
    %cst_14 = arith.constant 0.000000e+00 : f32
    %82 = vector.broadcast %cst_14 : f32 to vector<8x256xf32>
    %83 = arith.maximumf %81, %82 : vector<8x256xf32>
    %84 = vector.broadcast %78 : f32 to vector<8x256xf32>
    %85 = arith.mulf %84, %83 : vector<8x256xf32>
    %86 = arith.addf %68, %85 : vector<8x256xf32>
    %c19 = arith.constant 19 : index
    %87 = memref.load %arg1[%c19] : memref<20xf32, #tpu.memory_space<smem>>
    %c9 = arith.constant 9 : index
    %88 = memref.load %arg1[%c9] : memref<20xf32, #tpu.memory_space<smem>>
    %89 = vector.broadcast %88 : f32 to vector<8x256xf32>
    %90 = arith.mulf %89, %7 : vector<8x256xf32>
    %cst_15 = arith.constant 0.000000e+00 : f32
    %91 = vector.broadcast %cst_15 : f32 to vector<8x256xf32>
    %92 = arith.maximumf %90, %91 : vector<8x256xf32>
    %93 = vector.broadcast %87 : f32 to vector<8x256xf32>
    %94 = arith.mulf %93, %92 : vector<8x256xf32>
    %95 = arith.addf %77, %94 : vector<8x256xf32>
    %96 = arith.addf %86, %95 : vector<8x256xf32>
    %97 = arith.addf %3, %96 : vector<8x256xf32>
    %98 = math.tanh %97 : vector<8x256xf32>
    %c0_16 = arith.constant 0 : index
    %c0_17 = arith.constant 0 : index
    %c0_18 = arith.constant 0 : index
    %99 = vector.load %arg4[%c0_16, %c0_17, %c0_18] : memref<3x8x256xf32, #tpu.memory_space<vmem>>, vector<1x8x256xf32>
    %100 = vector.shape_cast %99 : vector<1x8x256xf32> to vector<8x256xf32>
    %101 = vector.shape_cast %98 : vector<8x256xf32> to vector<1x8x256xf32>
    tpu.vector_store %arg4[%c0_16, %c0_17, %c0_18], %101 {strides = array<i32>} : memref<3x8x256xf32, #tpu.memory_space<vmem>>, vector<1x8x256xf32>,
    %c0_19 = arith.constant 0 : index
    %c0_20 = arith.constant 0 : index
    %102 = vector.load %arg3[%c0_19, %c0_20] : memref<256x256xf32, #tpu.memory_space<vmem>>, vector<256x256xf32>
    %cst_21 = arith.constant dense<0.000000e+00> : vector<8x256xf32>
    %103 = tpu.matmul %98, %102, %cst_21 {dimension_numbers = #tpu.dot_dimension_numbers<[1], [0], [0], [1], [0, 0, 1, 1], [], []>, precision = #tpu.contract_precision<fp32>} : vector<8x256xf32>, vector<256x256xf32>, vector<8x256xf32> -> vector<8x256xf32>
    %cst_22 = arith.constant 0.000000e+00 : f32
    %104 = vector.broadcast %cst_22 : f32 to vector<8x256xf32>
    %105 = arith.maximumf %103, %104 : vector<8x256xf32>
    %c10_23 = arith.constant 10 : index
    %106 = memref.load %arg1[%c10_23] : memref<20xf32, #tpu.memory_space<smem>>
    %c0_24 = arith.constant 0 : index
    %107 = memref.load %arg1[%c0_24] : memref<20xf32, #tpu.memory_space<smem>>
    %108 = vector.broadcast %107 : f32 to vector<8x256xf32>
    %109 = arith.mulf %108, %105 : vector<8x256xf32>
    %cst_25 = arith.constant 0.000000e+00 : f32
    %110 = vector.broadcast %cst_25 : f32 to vector<8x256xf32>
    %111 = arith.maximumf %109, %110 : vector<8x256xf32>
    %112 = vector.broadcast %106 : f32 to vector<8x256xf32>
    %113 = arith.mulf %112, %111 : vector<8x256xf32>
    %c11_26 = arith.constant 11 : index
    %114 = memref.load %arg1[%c11_26] : memref<20xf32, #tpu.memory_space<smem>>
    %c1_27 = arith.constant 1 : index
    %115 = memref.load %arg1[%c1_27] : memref<20xf32, #tpu.memory_space<smem>>
    %116 = vector.broadcast %115 : f32 to vector<8x256xf32>
    %117 = arith.mulf %116, %105 : vector<8x256xf32>
    %cst_28 = arith.constant 0.000000e+00 : f32
    %118 = vector.broadcast %cst_28 : f32 to vector<8x256xf32>
    %119 = arith.maximumf %117, %118 : vector<8x256xf32>
    %120 = vector.broadcast %114 : f32 to vector<8x256xf32>
    %121 = arith.mulf %120, %119 : vector<8x256xf32>
    %c12_29 = arith.constant 12 : index
    %122 = memref.load %arg1[%c12_29] : memref<20xf32, #tpu.memory_space<smem>>
    %c2_30 = arith.constant 2 : index
    %123 = memref.load %arg1[%c2_30] : memref<20xf32, #tpu.memory_space<smem>>
    %124 = vector.broadcast %123 : f32 to vector<8x256xf32>
    %125 = arith.mulf %124, %105 : vector<8x256xf32>
    %cst_31 = arith.constant 0.000000e+00 : f32
    %126 = vector.broadcast %cst_31 : f32 to vector<8x256xf32>
    %127 = arith.maximumf %125, %126 : vector<8x256xf32>
    %128 = vector.broadcast %122 : f32 to vector<8x256xf32>
    %129 = arith.mulf %128, %127 : vector<8x256xf32>
    %130 = arith.addf %113, %129 : vector<8x256xf32>
    %c13_32 = arith.constant 13 : index
    %131 = memref.load %arg1[%c13_32] : memref<20xf32, #tpu.memory_space<smem>>
    %c3_33 = arith.constant 3 : index
    %132 = memref.load %arg1[%c3_33] : memref<20xf32, #tpu.memory_space<smem>>
    %133 = vector.broadcast %132 : f32 to vector<8x256xf32>
    %134 = arith.mulf %133, %105 : vector<8x256xf32>
    %cst_34 = arith.constant 0.000000e+00 : f32
    %135 = vector.broadcast %cst_34 : f32 to vector<8x256xf32>
    %136 = arith.maximumf %134, %135 : vector<8x256xf32>
    %137 = vector.broadcast %131 : f32 to vector<8x256xf32>
    %138 = arith.mulf %137, %136 : vector<8x256xf32>
    %139 = arith.addf %121, %138 : vector<8x256xf32>
    %c14_35 = arith.constant 14 : index
    %140 = memref.load %arg1[%c14_35] : memref<20xf32, #tpu.memory_space<smem>>
    %c4_36 = arith.constant 4 : index
    %141 = memref.load %arg1[%c4_36] : memref<20xf32, #tpu.memory_space<smem>>
    %142 = vector.broadcast %141 : f32 to vector<8x256xf32>
    %143 = arith.mulf %142, %105 : vector<8x256xf32>
    %cst_37 = arith.constant 0.000000e+00 : f32
    %144 = vector.broadcast %cst_37 : f32 to vector<8x256xf32>
    %145 = arith.maximumf %143, %144 : vector<8x256xf32>
    %146 = vector.broadcast %140 : f32 to vector<8x256xf32>
    %147 = arith.mulf %146, %145 : vector<8x256xf32>
    %148 = arith.addf %130, %147 : vector<8x256xf32>
    %c15_38 = arith.constant 15 : index
    %149 = memref.load %arg1[%c15_38] : memref<20xf32, #tpu.memory_space<smem>>
    %c5_39 = arith.constant 5 : index
    %150 = memref.load %arg1[%c5_39] : memref<20xf32, #tpu.memory_space<smem>>
    %151 = vector.broadcast %150 : f32 to vector<8x256xf32>
    %152 = arith.mulf %151, %105 : vector<8x256xf32>
    %cst_40 = arith.constant 0.000000e+00 : f32
    %153 = vector.broadcast %cst_40 : f32 to vector<8x256xf32>
    %154 = arith.maximumf %152, %153 : vector<8x256xf32>
    %155 = vector.broadcast %149 : f32 to vector<8x256xf32>
    %156 = arith.mulf %155, %154 : vector<8x256xf32>
    %157 = arith.addf %139, %156 : vector<8x256xf32>
    %c16_41 = arith.constant 16 : index
    %158 = memref.load %arg1[%c16_41] : memref<20xf32, #tpu.memory_space<smem>>
    %c6_42 = arith.constant 6 : index
    %159 = memref.load %arg1[%c6_42] : memref<20xf32, #tpu.memory_space<smem>>
    %160 = vector.broadcast %159 : f32 to vector<8x256xf32>
    %161 = arith.mulf %160, %105 : vector<8x256xf32>
    %cst_43 = arith.constant 0.000000e+00 : f32
    %162 = vector.broadcast %cst_43 : f32 to vector<8x256xf32>
    %163 = arith.maximumf %161, %162 : vector<8x256xf32>
    %164 = vector.broadcast %158 : f32 to vector<8x256xf32>
    %165 = arith.mulf %164, %163 : vector<8x256xf32>
    %166 = arith.addf %148, %165 : vector<8x256xf32>
    %c17_44 = arith.constant 17 : index
    %167 = memref.load %arg1[%c17_44] : memref<20xf32, #tpu.memory_space<smem>>
    %c7_45 = arith.constant 7 : index
    %168 = memref.load %arg1[%c7_45] : memref<20xf32, #tpu.memory_space<smem>>
    %169 = vector.broadcast %168 : f32 to vector<8x256xf32>
    %170 = arith.mulf %169, %105 : vector<8x256xf32>
    %cst_46 = arith.constant 0.000000e+00 : f32
    %171 = vector.broadcast %cst_46 : f32 to vector<8x256xf32>
    %172 = arith.maximumf %170, %171 : vector<8x256xf32>
    %173 = vector.broadcast %167 : f32 to vector<8x256xf32>
    %174 = arith.mulf %173, %172 : vector<8x256xf32>
    %175 = arith.addf %157, %174 : vector<8x256xf32>
    %c18_47 = arith.constant 18 : index
    %176 = memref.load %arg1[%c18_47] : memref<20xf32, #tpu.memory_space<smem>>
    %c8_48 = arith.constant 8 : index
    %177 = memref.load %arg1[%c8_48] : memref<20xf32, #tpu.memory_space<smem>>
    %178 = vector.broadcast %177 : f32 to vector<8x256xf32>
    %179 = arith.mulf %178, %105 : vector<8x256xf32>
    %cst_49 = arith.constant 0.000000e+00 : f32
    %180 = vector.broadcast %cst_49 : f32 to vector<8x256xf32>
    %181 = arith.maximumf %179, %180 : vector<8x256xf32>
    %182 = vector.broadcast %176 : f32 to vector<8x256xf32>
    %183 = arith.mulf %182, %181 : vector<8x256xf32>
    %184 = arith.addf %166, %183 : vector<8x256xf32>
    %c19_50 = arith.constant 19 : index
    %185 = memref.load %arg1[%c19_50] : memref<20xf32, #tpu.memory_space<smem>>
    %c9_51 = arith.constant 9 : index
    %186 = memref.load %arg1[%c9_51] : memref<20xf32, #tpu.memory_space<smem>>
    %187 = vector.broadcast %186 : f32 to vector<8x256xf32>
    %188 = arith.mulf %187, %105 : vector<8x256xf32>
    %cst_52 = arith.constant 0.000000e+00 : f32
    %189 = vector.broadcast %cst_52 : f32 to vector<8x256xf32>
    %190 = arith.maximumf %188, %189 : vector<8x256xf32>
    %191 = vector.broadcast %185 : f32 to vector<8x256xf32>
    %192 = arith.mulf %191, %190 : vector<8x256xf32>
    %193 = arith.addf %175, %192 : vector<8x256xf32>
    %194 = arith.addf %184, %193 : vector<8x256xf32>
    %195 = arith.addf %98, %194 : vector<8x256xf32>
    %196 = math.tanh %195 : vector<8x256xf32>
    %c1_53 = arith.constant 1 : index
    %c0_54 = arith.constant 0 : index
    %c0_55 = arith.constant 0 : index
    %197 = vector.load %arg4[%c1_53, %c0_54, %c0_55] : memref<3x8x256xf32, #tpu.memory_space<vmem>>, vector<1x8x256xf32>
    %198 = vector.shape_cast %197 : vector<1x8x256xf32> to vector<8x256xf32>
    %199 = vector.shape_cast %196 : vector<8x256xf32> to vector<1x8x256xf32>
    tpu.vector_store %arg4[%c1_53, %c0_54, %c0_55], %199 {strides = array<i32>} : memref<3x8x256xf32, #tpu.memory_space<vmem>>, vector<1x8x256xf32>,
    %c0_56 = arith.constant 0 : index
    %c0_57 = arith.constant 0 : index
    %200 = vector.load %arg3[%c0_56, %c0_57] : memref<256x256xf32, #tpu.memory_space<vmem>>, vector<256x256xf32>
    %cst_58 = arith.constant dense<0.000000e+00> : vector<8x256xf32>
    %201 = tpu.matmul %196, %200, %cst_58 {dimension_numbers = #tpu.dot_dimension_numbers<[1], [0], [0], [1], [0, 0, 1, 1], [], []>, precision = #tpu.contract_precision<fp32>} : vector<8x256xf32>, vector<256x256xf32>, vector<8x256xf32> -> vector<8x256xf32>
    %cst_59 = arith.constant 0.000000e+00 : f32
    %202 = vector.broadcast %cst_59 : f32 to vector<8x256xf32>
    %203 = arith.maximumf %201, %202 : vector<8x256xf32>
    %c10_60 = arith.constant 10 : index
    %204 = memref.load %arg1[%c10_60] : memref<20xf32, #tpu.memory_space<smem>>
    %c0_61 = arith.constant 0 : index
    %205 = memref.load %arg1[%c0_61] : memref<20xf32, #tpu.memory_space<smem>>
    %206 = vector.broadcast %205 : f32 to vector<8x256xf32>
    %207 = arith.mulf %206, %203 : vector<8x256xf32>
    %cst_62 = arith.constant 0.000000e+00 : f32
    %208 = vector.broadcast %cst_62 : f32 to vector<8x256xf32>
    %209 = arith.maximumf %207, %208 : vector<8x256xf32>
    %210 = vector.broadcast %204 : f32 to vector<8x256xf32>
    %211 = arith.mulf %210, %209 : vector<8x256xf32>
    %c11_63 = arith.constant 11 : index
    %212 = memref.load %arg1[%c11_63] : memref<20xf32, #tpu.memory_space<smem>>
    %c1_64 = arith.constant 1 : index
    %213 = memref.load %arg1[%c1_64] : memref<20xf32, #tpu.memory_space<smem>>
    %214 = vector.broadcast %213 : f32 to vector<8x256xf32>
    %215 = arith.mulf %214, %203 : vector<8x256xf32>
    %cst_65 = arith.constant 0.000000e+00 : f32
    %216 = vector.broadcast %cst_65 : f32 to vector<8x256xf32>
    %217 = arith.maximumf %215, %216 : vector<8x256xf32>
    %218 = vector.broadcast %212 : f32 to vector<8x256xf32>
    %219 = arith.mulf %218, %217 : vector<8x256xf32>
    %c12_66 = arith.constant 12 : index
    %220 = memref.load %arg1[%c12_66] : memref<20xf32, #tpu.memory_space<smem>>
    %c2_67 = arith.constant 2 : index
    %221 = memref.load %arg1[%c2_67] : memref<20xf32, #tpu.memory_space<smem>>
    %222 = vector.broadcast %221 : f32 to vector<8x256xf32>
    %223 = arith.mulf %222, %203 : vector<8x256xf32>
    %cst_68 = arith.constant 0.000000e+00 : f32
    %224 = vector.broadcast %cst_68 : f32 to vector<8x256xf32>
    %225 = arith.maximumf %223, %224 : vector<8x256xf32>
    %226 = vector.broadcast %220 : f32 to vector<8x256xf32>
    %227 = arith.mulf %226, %225 : vector<8x256xf32>
    %228 = arith.addf %211, %227 : vector<8x256xf32>
    %c13_69 = arith.constant 13 : index
    %229 = memref.load %arg1[%c13_69] : memref<20xf32, #tpu.memory_space<smem>>
    %c3_70 = arith.constant 3 : index
    %230 = memref.load %arg1[%c3_70] : memref<20xf32, #tpu.memory_space<smem>>
    %231 = vector.broadcast %230 : f32 to vector<8x256xf32>
    %232 = arith.mulf %231, %203 : vector<8x256xf32>
    %cst_71 = arith.constant 0.000000e+00 : f32
    %233 = vector.broadcast %cst_71 : f32 to vector<8x256xf32>
    %234 = arith.maximumf %232, %233 : vector<8x256xf32>
    %235 = vector.broadcast %229 : f32 to vector<8x256xf32>
    %236 = arith.mulf %235, %234 : vector<8x256xf32>
    %237 = arith.addf %219, %236 : vector<8x256xf32>
    %c14_72 = arith.constant 14 : index
    %238 = memref.load %arg1[%c14_72] : memref<20xf32, #tpu.memory_space<smem>>
    %c4_73 = arith.constant 4 : index
    %239 = memref.load %arg1[%c4_73] : memref<20xf32, #tpu.memory_space<smem>>
    %240 = vector.broadcast %239 : f32 to vector<8x256xf32>
    %241 = arith.mulf %240, %203 : vector<8x256xf32>
    %cst_74 = arith.constant 0.000000e+00 : f32
    %242 = vector.broadcast %cst_74 : f32 to vector<8x256xf32>
    %243 = arith.maximumf %241, %242 : vector<8x256xf32>
    %244 = vector.broadcast %238 : f32 to vector<8x256xf32>
    %245 = arith.mulf %244, %243 : vector<8x256xf32>
    %246 = arith.addf %228, %245 : vector<8x256xf32>
    %c15_75 = arith.constant 15 : index
    %247 = memref.load %arg1[%c15_75] : memref<20xf32, #tpu.memory_space<smem>>
    %c5_76 = arith.constant 5 : index
    %248 = memref.load %arg1[%c5_76] : memref<20xf32, #tpu.memory_space<smem>>
    %249 = vector.broadcast %248 : f32 to vector<8x256xf32>
    %250 = arith.mulf %249, %203 : vector<8x256xf32>
    %cst_77 = arith.constant 0.000000e+00 : f32
    %251 = vector.broadcast %cst_77 : f32 to vector<8x256xf32>
    %252 = arith.maximumf %250, %251 : vector<8x256xf32>
    %253 = vector.broadcast %247 : f32 to vector<8x256xf32>
    %254 = arith.mulf %253, %252 : vector<8x256xf32>
    %255 = arith.addf %237, %254 : vector<8x256xf32>
    %c16_78 = arith.constant 16 : index
    %256 = memref.load %arg1[%c16_78] : memref<20xf32, #tpu.memory_space<smem>>
    %c6_79 = arith.constant 6 : index
    %257 = memref.load %arg1[%c6_79] : memref<20xf32, #tpu.memory_space<smem>>
    %258 = vector.broadcast %257 : f32 to vector<8x256xf32>
    %259 = arith.mulf %258, %203 : vector<8x256xf32>
    %cst_80 = arith.constant 0.000000e+00 : f32
    %260 = vector.broadcast %cst_80 : f32 to vector<8x256xf32>
    %261 = arith.maximumf %259, %260 : vector<8x256xf32>
    %262 = vector.broadcast %256 : f32 to vector<8x256xf32>
    %263 = arith.mulf %262, %261 : vector<8x256xf32>
    %264 = arith.addf %246, %263 : vector<8x256xf32>
    %c17_81 = arith.constant 17 : index
    %265 = memref.load %arg1[%c17_81] : memref<20xf32, #tpu.memory_space<smem>>
    %c7_82 = arith.constant 7 : index
    %266 = memref.load %arg1[%c7_82] : memref<20xf32, #tpu.memory_space<smem>>
    %267 = vector.broadcast %266 : f32 to vector<8x256xf32>
    %268 = arith.mulf %267, %203 : vector<8x256xf32>
    %cst_83 = arith.constant 0.000000e+00 : f32
    %269 = vector.broadcast %cst_83 : f32 to vector<8x256xf32>
    %270 = arith.maximumf %268, %269 : vector<8x256xf32>
    %271 = vector.broadcast %265 : f32 to vector<8x256xf32>
    %272 = arith.mulf %271, %270 : vector<8x256xf32>
    %273 = arith.addf %255, %272 : vector<8x256xf32>
    %c18_84 = arith.constant 18 : index
    %274 = memref.load %arg1[%c18_84] : memref<20xf32, #tpu.memory_space<smem>>
    %c8_85 = arith.constant 8 : index
    %275 = memref.load %arg1[%c8_85] : memref<20xf32, #tpu.memory_space<smem>>
    %276 = vector.broadcast %275 : f32 to vector<8x256xf32>
    %277 = arith.mulf %276, %203 : vector<8x256xf32>
    %cst_86 = arith.constant 0.000000e+00 : f32
    %278 = vector.broadcast %cst_86 : f32 to vector<8x256xf32>
    %279 = arith.maximumf %277, %278 : vector<8x256xf32>
    %280 = vector.broadcast %274 : f32 to vector<8x256xf32>
    %281 = arith.mulf %280, %279 : vector<8x256xf32>
    %282 = arith.addf %264, %281 : vector<8x256xf32>
    %c19_87 = arith.constant 19 : index
    %283 = memref.load %arg1[%c19_87] : memref<20xf32, #tpu.memory_space<smem>>
    %c9_88 = arith.constant 9 : index
    %284 = memref.load %arg1[%c9_88] : memref<20xf32, #tpu.memory_space<smem>>
    %285 = vector.broadcast %284 : f32 to vector<8x256xf32>
    %286 = arith.mulf %285, %203 : vector<8x256xf32>
    %cst_89 = arith.constant 0.000000e+00 : f32
    %287 = vector.broadcast %cst_89 : f32 to vector<8x256xf32>
    %288 = arith.maximumf %286, %287 : vector<8x256xf32>
    %289 = vector.broadcast %283 : f32 to vector<8x256xf32>
    %290 = arith.mulf %289, %288 : vector<8x256xf32>
    %291 = arith.addf %273, %290 : vector<8x256xf32>
    %292 = arith.addf %282, %291 : vector<8x256xf32>
    %293 = arith.addf %196, %292 : vector<8x256xf32>
    %294 = math.tanh %293 : vector<8x256xf32>
    %c2_90 = arith.constant 2 : index
    %c0_91 = arith.constant 0 : index
    %c0_92 = arith.constant 0 : index
    %295 = vector.load %arg4[%c2_90, %c0_91, %c0_92] : memref<3x8x256xf32, #tpu.memory_space<vmem>>, vector<1x8x256xf32>
    %296 = vector.shape_cast %295 : vector<1x8x256xf32> to vector<8x256xf32>
    %297 = vector.shape_cast %294 : vector<8x256xf32> to vector<1x8x256xf32>
    tpu.vector_store %arg4[%c2_90, %c0_91, %c0_92], %297 {strides = array<i32>} : memref<3x8x256xf32, #tpu.memory_space<vmem>>, vector<1x8x256xf32>,
    %c0_93 = arith.constant 0 : index
    %c0_94 = arith.constant 0 : index
    %298 = vector.load %arg5[%c0_93, %c0_94] : memref<8x256xf32, #tpu.memory_space<vmem>>, vector<8x256xf32>
    tpu.vector_store %arg5[%c0_93, %c0_94], %294 {strides = array<i32>} : memref<8x256xf32, #tpu.memory_space<vmem>>, vector<8x256xf32>,
    return
  }
  func.func @transform_0(%arg0: i32) -> i32 {
    %c0_i32 = arith.constant 0 : i32
    %c0_i32_0 = arith.constant 0 : i32
    return %c0_i32 : i32
  }
  func.func @transform_1(%arg0: i32) -> (i32, i32) {
    %c0_i32 = arith.constant 0 : i32
    %c0_i32_0 = arith.constant 0 : i32
    %c0_i32_1 = arith.constant 0 : i32
    return %c0_i32, %c0_i32_0 : i32, i32
  }
  func.func @transform_2(%arg0: i32) -> (i32, i32) {
    %c0_i32 = arith.constant 0 : i32
    %c0_i32_0 = arith.constant 0 : i32
    %c0_i32_1 = arith.constant 0 : i32
    return %c0_i32, %c0_i32_0 : i32, i32
  }
  func.func @transform_3(%arg0: i32) -> (i32, i32, i32) {
    %c0_i32 = arith.constant 0 : i32
    %c0_i32_0 = arith.constant 0 : i32
    %c0_i32_1 = arith.constant 0 : i32
    return %arg0, %c0_i32, %c0_i32_0 : i32, i32, i32
  }
}

</mosaic_0001>

<llo_original>
// kernel: tpu_custom_call.1
$region0: #{tpu_custom_call.1}
  #allocation0 [shape = 'u32[]', space=smem, size = 0x4, offset = 0x4, fixed_abs, tag = 'smem constant byte address 0x4 - core index']
  #allocation1 [shape = 'u32[144,128]{1,0:T(1,128)}', space=vmem, size = 0x12000, scoped, tag = 'internal scratch']
  #allocation2 [shape = 'f32[8,256]{1,0:T(8,128)}', space=vmem, size = 0x2000, scoped, tag = 'scratch operand']
  %s0 = inlined_call_operand.hbm [shape: f32[20], index: 0, kind: input, shape index: {}]
  %s1 = inlined_call_operand.hbm [shape: f32[8,256], index: 1, kind: input, shape index: {}]
  %s2 = inlined_call_operand.hbm [shape: f32[256,256], index: 2, kind: input, shape index: {}]
  %s3 = inlined_call_operand.hbm [shape: f32[3,8,256], index: 3, kind: output, shape index: {}]
  %s4 = sld [smem:[#allocation0]]
  $region38: #{tpu_custom_call.1} parent=0
    _
  %s6 = ssub.s32 1, %s4
  %s7 = scalar_select 0, %s6, %s4
  $region1: #{tpu_custom_call.1} parent=0
    #allocation3 [shape = 'u8[512]{0}', space=smem, size = 0x200, scoped, tag = 'input window, operand 0, single buffered']
    #allocation4 [shape = 's32[1]{0}', space=sflag, size = 0x4, scoped, tag = 'scoped memory for tpu_custom_call.1']
    #allocation5 [shape = 's32[1]{0}', space=sflag, size = 0x4, scoped, tag = 'scoped memory for tpu_custom_call.1']
    #allocation6 [shape = 's32[1]{0}', space=sflag, size = 0x4, scoped, tag = 'scoped memory for tpu_custom_call.1']
    #allocation7 [shape = 'u8[8192]{0}', space=vmem, size = 0x2000, scoped, tag = 'input window, operand 1, single buffered']
    #allocation8 [shape = 'u8[262144]{0}', space=vmem, size = 0x40000, scoped, tag = 'input window, operand 2, single buffered']
    #allocation9 [shape = 's32[1]{0}', space=sflag, size = 0x4, scoped, tag = 'scoped memory for tpu_custom_call.1']
    #allocation10 [shape = 'u8[24576]{0}', space=vmem, size = 0x6000, scoped, tag = 'output window, operand 0, single buffered']
    %8 = vsyncpa [#allocation6], 0
    %9 = vsyncpa [#allocation4], 0
    %10 = vsyncpa [#allocation9], 0
    %11 = vsyncpa [#allocation5], 0
    // Predicated region
    $region2: #{tpu_custom_call.1} parent=1 // pred_check
      _
    $region3: #{tpu_custom_call.1} parent=1 // pred_check_branch
      %13 = sbr.rel (0) target = $region5
    $region4: #{tpu_custom_call.1} parent=1 // pred_region
      %s15 = ssub.s32 16, 16
      %16 = vsyncadd [#allocation6], %s15
      %19 = dma.hbm_to_smem %s0, 16, [#allocation3], [#allocation6]
    $region5: #{tpu_custom_call.1} parent=1 // pred_fallthru
      _
    // Predicated region
    $region6: #{tpu_custom_call.1} parent=1 // pred_check
      _
    $region7: #{tpu_custom_call.1} parent=1 // pred_check_branch
      %21 = sbr.rel (0) target = $region9
    $region8: #{tpu_custom_call.1} parent=1 // pred_region
      %s23 = ssub.s32 256, 256
      %24 = vsyncadd [#allocation4], %s23
      %s26 = sshll.u32 [#allocation7], 4
      %s27 = int_to_ptr.vmem [resolvable:$true] %s26
      %29 = dma.hbm_to_vmem [thread:$0]  %s1, 256, %s27, [#allocation4]
    $region9: #{tpu_custom_call.1} parent=1 // pred_fallthru
      _
    // Predicated region
    $region10: #{tpu_custom_call.1} parent=1 // pred_check
      _
    $region11: #{tpu_custom_call.1} parent=1 // pred_check_branch
      %31 = sbr.rel (0) target = $region13
    $region12: #{tpu_custom_call.1} parent=1 // pred_region
      %s33 = ssub.s32 8192, 8192
      %34 = vsyncadd [#allocation9], %s33
      %s35 = sshll.u32 [#allocation8], 4
      %s36 = int_to_ptr.vmem [resolvable:$true] %s35
      %41 = dma.hbm_to_vmem [thread:$0]  %s2, 8192, %s36, [#allocation9], 256, 256, 16
    $region13: #{tpu_custom_call.1} parent=1 // pred_fallthru
      _
    // Predicated region
    $region14: #{tpu_custom_call.1} parent=1 // pred_check
      _
    $region15: #{tpu_custom_call.1} parent=1 // pred_check_branch
      %43 = sbr.rel (0) target = $region17
    $region16: #{tpu_custom_call.1} parent=1 // pred_region
      %44 = dma.done [#allocation6], 16
    $region17: #{tpu_custom_call.1} parent=1 // pred_fallthru
      _
    // Predicated region
    $region18: #{tpu_custom_call.1} parent=1 // pred_check
      _
    $region19: #{tpu_custom_call.1} parent=1 // pred_check_branch
      %46 = sbr.rel (0) target = $region21
    $region20: #{tpu_custom_call.1} parent=1 // pred_region
      %47 = dma.done [#allocation4], 256
    $region21: #{tpu_custom_call.1} parent=1 // pred_fallthru
      _
    // Predicated region
    $region22: #{tpu_custom_call.1} parent=1 // pred_check
      _
    $region23: #{tpu_custom_call.1} parent=1 // pred_check_branch
      %49 = sbr.rel (0) target = $region25
    $region24: #{tpu_custom_call.1} parent=1 // pred_region
      %50 = dma.done [#allocation9], 8192
    $region25: #{tpu_custom_call.1} parent=1 // pred_fallthru
      _
    %51 = sfence
    %p52 = scmp.eq.s32.totalorder 0, 0
    // Predicated region
    $region26: #{tpu_custom_call.1} parent=1 // pred_check
      %p53 = pneg %p52
    $region27: #{tpu_custom_call.1} parent=1 // pred_check_branch
      %55 = sbr.rel (%p53) target = $region29
    $region28: #{tpu_custom_call.1} parent=1 // pred_region
      %v56 = vld [vmem:[#allocation7] sm:$0xff]
      %v57 = vld [vmem:[#allocation7 + $0x8] sm:$0xff]
      %58 = vst [vmem:[#allocation2] sm:$0xff] %v56
      %59 = vst [vmem:[#allocation2 + $0x8] sm:$0xff] %v57
    $region29: #{tpu_custom_call.1} parent=1 // pred_fallthru
      _
    %v60 = vld [vmem:[#allocation2] sm:$0xff]
    %v61 = vld [vmem:[#allocation2 + $0x8] sm:$0xff]
    %v62 = vld [vmem:[#allocation8] sm:$0xff]
    %v63 = vld [vmem:[#allocation8 + $0x8] sm:$0xff]
    %v64 = vld [vmem:[#allocation8 + $0x10] sm:$0xff]
    %v65 = vld [vmem:[#allocation8 + $0x18] sm:$0xff]
    %v66 = vld [vmem:[#allocation8 + $0x20] sm:$0xff]
    %v67 = vld [vmem:[#allocation8 + $0x28] sm:$0xff]
    %v68 = vld [vmem:[#allocation8 + $0x30] sm:$0xff]
    %v69 = vld [vmem:[#allocation8 + $0x38] sm:$0xff]
    %v70 = vld [vmem:[#allocation8 + $0x40] sm:$0xff]
    %v71 = vld [vmem:[#allocation8 + $0x48] sm:$0xff]
    %v72 = vld [vmem:[#allocation8 + $0x50] sm:$0xff]
    %v73 = vld [vmem:[#allocation8 + $0x58] sm:$0xff]
    %v74 = vld [vmem:[#allocation8 + $0x60] sm:$0xff]
    %v75 = vld [vmem:[#allocation8 + $0x68] sm:$0xff]
    %v76 = vld [vmem:[#allocation8 + $0x70] sm:$0xff]
    %v77 = vld [vmem:[#allocation8 + $0x78] sm:$0xff]
    %v78 = vld [vmem:[#allocation8 + $0x80] sm:$0xff]
    %v79 = vld [vmem:[#allocation8 + $0x88] sm:$0xff]
    %v80 = vld [vmem:[#allocation8 + $0x90] sm:$0xff]
    %v81 = vld [vmem:[#allocation8 + $0x98] sm:$0xff]
    %v82 = vld [vmem:[#allocation8 + $0xa0] sm:$0xff]
    %v83 = vld [vmem:[#allocation8 + $0xa8] sm:$0xff]
    %v84 = vld [vmem:[#allocation8 + $0xb0] sm:$0xff]
    %v85 = vld [vmem:[#allocation8 + $0xb8] sm:$0xff]
    %v86 = vld [vmem:[#allocation8 + $0xc0] sm:$0xff]
    %v87 = vld [vmem:[#allocation8 + $0xc8] sm:$0xff]
    %v88 = vld [vmem:[#allocation8 + $0xd0] sm:$0xff]
    %v89 = vld [vmem:[#allocation8 + $0xd8] sm:$0xff]
    %v90 = vld [vmem:[#allocation8 + $0xe0] sm:$0xff]
    %v91 = vld [vmem:[#allocation8 + $0xe8] sm:$0xff]
    %v92 = vld [vmem:[#allocation8 + $0xf0] sm:$0xff]
    %v93 = vld [vmem:[#allocation8 + $0xf8] sm:$0xff]
    %v94 = vld [vmem:[#allocation8 + $0x100] sm:$0xff]
    %v95 = vld [vmem:[#allocation8 + $0x108] sm:$0xff]
    %v96 = vld [vmem:[#allocation8 + $0x110] sm:$0xff]
    %v97 = vld [vmem:[#allocation8 + $0x118] sm:$0xff]
    %v98 = vld [vmem:[#allocation8 + $0x120] sm:$0xff]
    %v99 = vld [vmem:[#allocation8 + $0x128] sm:$0xff]
    %v100 = vld [vmem:[#allocation8 + $0x130] sm:$0xff]
    %v101 = vld [vmem:[#allocation8 + $0x138] sm:$0xff]
    %v102 = vld [vmem:[#allocation8 + $0x140] sm:$0xff]
    %v103 = vld [vmem:[#allocation8 + $0x148] sm:$0xff]
    %v104 = vld [vmem:[#allocation8 + $0x150] sm:$0xff]
    %v105 = vld [vmem:[#allocation8 + $0x158] sm:$0xff]
    %v106 = vld [vmem:[#allocation8 + $0x160] sm:$0xff]
    %v107 = vld [vmem:[#allocation8 + $0x168] sm:$0xff]
    %v108 = vld [vmem:[#allocation8 + $0x170] sm:$0xff]
    %v109 = vld [vmem:[#allocation8 + $0x178] sm:$0xff]
    %v110 = vld [vmem:[#allocation8 + $0x180] sm:$0xff]
    %v111 = vld [vmem:[#allocation8 + $0x188] sm:$0xff]
    %v112 = vld [vmem:[#allocation8 + $0x190] sm:$0xff]
    %v113 = vld [vmem:[#allocation8 + $0x198] sm:$0xff]
    %v114 = vld [vmem:[#allocation8 + $0x1a0] sm:$0xff]
    %v115 = vld [vmem:[#allocation8 + $0x1a8] sm:$0xff]
    %v116 = vld [vmem:[#allocation8 + $0x1b0] sm:$0xff]
    %v117 = vld [vmem:[#allocation8 + $0x1b8] sm:$0xff]
    %v118 = vld [vmem:[#allocation8 + $0x1c0] sm:$0xff]
    %v119 = vld [vmem:[#allocation8 + $0x1c8] sm:$0xff]
    %v120 = vld [vmem:[#allocation8 + $0x1d0] sm:$0xff]
    %v121 = vld [vmem:[#allocation8 + $0x1d8] sm:$0xff]
    %v122 = vld [vmem:[#allocation8 + $0x1e0] sm:$0xff]
    %v123 = vld [vmem:[#allocation8 + $0x1e8] sm:$0xff]
    %v124 = vld [vmem:[#allocation8 + $0x1f0] sm:$0xff]
    %v125 = vld [vmem:[#allocation8 + $0x1f8] sm:$0xff]
    %v126 = vand.u32 %v93, 4294901760
    %127 = vmatprep.subr.mxu0 %v126
    %v128 = vand.u32 %v92, 4294901760
    %129 = vmatpush1.msra.mxu0 %v128
    %v130 = vand.u32 %v91, 4294901760
    %131 = vmatprep.subr.mxu0 %v130
    %v132 = vand.u32 %v90, 4294901760
    %133 = vmatpush1.msra.mxu0 %v132
    %v134 = vand.u32 %v89, 4294901760
    %135 = vmatprep.subr.mxu0 %v134
    %v136 = vand.u32 %v88, 4294901760
    %137 = vmatpush1.msra.mxu0 %v136
    %v138 = vand.u32 %v87, 4294901760
    %139 = vmatprep.subr.mxu0 %v138
    %v140 = vand.u32 %v86, 4294901760
    %141 = vmatpush1.msra.mxu0 %v140
    %v142 = vand.u32 %v85, 4294901760
    %143 = vmatprep.subr.mxu0 %v142
    %v144 = vand.u32 %v84, 4294901760
    %145 = vmatpush1.msra.mxu0 %v144
    %v146 = vand.u32 %v83, 4294901760
    %147 = vmatprep.subr.mxu0 %v146
    %v148 = vand.u32 %v82, 4294901760
    %149 = vmatpush1.msra.mxu0 %v148
    %v150 = vand.u32 %v81, 4294901760
    %151 = vmatprep.subr.mxu0 %v150
    %v152 = vand.u32 %v80, 4294901760
    %153 = vmatpush1.msra.mxu0 %v152
    %v154 = vand.u32 %v79, 4294901760
    %155 = vmatprep.subr.mxu0 %v154
    %v156 = vand.u32 %v78, 4294901760
    %157 = vmatpush1.msra.mxu0 %v156
    %v158 = vand.u32 %v77, 4294901760
    %159 = vmatprep.subr.mxu0 %v158
    %v160 = vand.u32 %v76, 4294901760
    %161 = vmatpush1.msra.mxu0 %v160
    %v162 = vand.u32 %v75, 4294901760
    %163 = vmatprep.subr.mxu0 %v162
    %v164 = vand.u32 %v74, 4294901760
    %165 = vmatpush1.msra.mxu0 %v164
    %v166 = vand.u32 %v73, 4294901760
    %167 = vmatprep.subr.mxu0 %v166
    %v168 = vand.u32 %v72, 4294901760
    %169 = vmatpush1.msra.mxu0 %v168
    %v170 = vand.u32 %v71, 4294901760
    %171 = vmatprep.subr.mxu0 %v170
    %v172 = vand.u32 %v70, 4294901760
    %173 = vmatpush1.msra.mxu0 %v172
    %v174 = vand.u32 %v69, 4294901760
    %175 = vmatprep.subr.mxu0 %v174
    %v176 = vand.u32 %v68, 4294901760
    %177 = vmatpush1.msra.mxu0 %v176
    %v178 = vand.u32 %v67, 4294901760
    %179 = vmatprep.subr.mxu0 %v178
    %v180 = vand.u32 %v66, 4294901760
    %181 = vmatpush1.msra.mxu0 %v180
    %v182 = vand.u32 %v65, 4294901760
    %183 = vmatprep.subr.mxu0 %v182
    %v184 = vand.u32 %v64, 4294901760
    %185 = vmatpush1.msra.mxu0 %v184
    %v186 = vand.u32 %v63, 4294901760
    %187 = vmatprep.subr.mxu0 %v186
    %v188 = vand.u32 %v62, 4294901760
    %189 = vmatpush1.msra.mxu0 %v188
    %v190 = vand.u32 %v125, 4294901760
    %191 = vmatprep.subr.mxu0 %v190
    %v192 = vand.u32 %v124, 4294901760
    %193 = vmatpush2.msra.mxu0 %v192
    %v194 = vand.u32 %v123, 4294901760
    %195 = vmatprep.subr.mxu0 %v194
    %v196 = vand.u32 %v122, 4294901760
    %197 = vmatpush2.msra.mxu0 %v196
    %v198 = vand.u32 %v121, 4294901760
    %199 = vmatprep.subr.mxu0 %v198
    %v200 = vand.u32 %v120, 4294901760
    %201 = vmatpush2.msra.mxu0 %v200
    %v202 = vand.u32 %v119, 4294901760
    %203 = vmatprep.subr.mxu0 %v202
    %v204 = vand.u32 %v118, 4294901760
    %205 = vmatpush2.msra.mxu0 %v204
    %v206 = vand.u32 %v117, 4294901760
    %207 = vmatprep.subr.mxu0 %v206
    %v208 = vand.u32 %v116, 4294901760
    %209 = vmatpush2.msra.mxu0 %v208
    %v210 = vand.u32 %v115, 4294901760
    %211 = vmatprep.subr.mxu0 %v210
    %v212 = vand.u32 %v114, 4294901760
    %213 = vmatpush2.msra.mxu0 %v212
    %v214 = vand.u32 %v113, 4294901760
    %215 = vmatprep.subr.mxu0 %v214
    %v216 = vand.u32 %v112, 4294901760
    %217 = vmatpush2.msra.mxu0 %v216
    %v218 = vand.u32 %v111, 4294901760
    %219 = vmatprep.subr.mxu0 %v218
    %v220 = vand.u32 %v110, 4294901760
    %221 = vmatpush2.msra.mxu0 %v220
    %v222 = vand.u32 %v109, 4294901760
    %223 = vmatprep.subr.mxu0 %v222
    %v224 = vand.u32 %v108, 4294901760
    %225 = vmatpush2.msra.mxu0 %v224
    %v226 = vand.u32 %v107, 4294901760
    %227 = vmatprep.subr.mxu0 %v226
    %v228 = vand.u32 %v106, 4294901760
    %229 = vmatpush2.msra.mxu0 %v228
    %v230 = vand.u32 %v105, 4294901760
    %231 = vmatprep.subr.mxu0 %v230
    %v232 = vand.u32 %v104, 4294901760
    %233 = vmatpush2.msra.mxu0 %v232
    %v234 = vand.u32 %v103, 4294901760
    %235 = vmatprep.subr.mxu0 %v234
    %v236 = vand.u32 %v102, 4294901760
    %237 = vmatpush2.msra.mxu0 %v236
    %v238 = vand.u32 %v101, 4294901760
    %239 = vmatprep.subr.mxu0 %v238
    %v240 = vand.u32 %v100, 4294901760
    %241 = vmatpush2.msra.mxu0 %v240
    %v242 = vand.u32 %v99, 4294901760
    %243 = vmatprep.subr.mxu0 %v242
    %v244 = vand.u32 %v98, 4294901760
    %245 = vmatpush2.msra.mxu0 %v244
    %v246 = vand.u32 %v97, 4294901760
    %247 = vmatprep.subr.mxu0 %v246
    %v248 = vand.u32 %v96, 4294901760
    %249 = vmatpush2.msra.mxu0 %v248
    %v250 = vand.u32 %v95, 4294901760
    %251 = vmatprep.subr.mxu0 %v250
    %v252 = vand.u32 %v94, 4294901760
    %253 = vmatpush2.msra.mxu0 %v252
    %v254 = vand.u32 %v61, 4294901760
    %v255 = vsub.f32 %v61, %v254
    %v256 = vand.u32 %v255, 4294901760
    %v257 = vsub.f32 %v255, %v256
    %v258 = vand.u32 %v257, 4294901760
    %259 = vmatprep.mubr.f32.mxu0 %v258
    %v260 = vand.u32 %v60, 4294901760
    %v261 = vsub.f32 %v60, %v260
    %v262 = vand.u32 %v261, 4294901760
    %v263 = vsub.f32 %v261, %v262
    %v264 = vand.u32 %v263, 4294901760
    %265 = vmatmul.mubr.f32.gmra.mxu0 %v264
    %v266 = vpop.f32.mrf.mxu0
    %v267 = vadd.f32 0.0, %v266
    %v268 = vpop.f32.mrf.mxu0
    %v269 = vadd.f32 0.0, %v268
    %270 = vdwg.mxu0
    %v271 = vand.u32 %v93, 4294901760
    %v272 = vsub.f32 %v93, %v271
    %v273 = vand.u32 %v272, 4294901760
    %v274 = vsub.f32 %v272, %v273
    %v275 = vand.u32 %v274, 4294901760
    %276 = vmatprep.subr.mxu0 %v275
    %v277 = vand.u32 %v92, 4294901760
    %v278 = vsub.f32 %v92, %v277
    %v279 = vand.u32 %v278, 4294901760
    %v280 = vsub.f32 %v278, %v279
    %v281 = vand.u32 %v280, 4294901760
    %282 = vmatpush1.msra.mxu0 %v281
    %v283 = vand.u32 %v91, 4294901760
    %v284 = vsub.f32 %v91, %v283
    %v285 = vand.u32 %v284, 4294901760
    %v286 = vsub.f32 %v284, %v285
    %v287 = vand.u32 %v286, 4294901760
    %288 = vmatprep.subr.mxu0 %v287
    %v289 = vand.u32 %v90, 4294901760
    %v290 = vsub.f32 %v90, %v289
    %v291 = vand.u32 %v290, 4294901760
    %v292 = vsub.f32 %v290, %v291
    %v293 = vand.u32 %v292, 4294901760
    %294 = vmatpush1.msra.mxu0 %v293
    %v295 = vand.u32 %v89, 4294901760
    %v296 = vsub.f32 %v89, %v295
    %v297 = vand.u32 %v296, 4294901760
    %v298 = vsub.f32 %v296, %v297
    %v299 = vand.u32 %v298, 4294901760
    %300 = vmatprep.subr.mxu0 %v299
    %v301 = vand.u32 %v88, 4294901760
    %v302 = vsub.f32 %v88, %v301
    %v303 = vand.u32 %v302, 4294901760
    %v304 = vsub.f32 %v302, %v303
    %v305 = vand.u32 %v304, 4294901760
    %306 = vmatpush1.msra.mxu0 %v305
    %v307 = vand.u32 %v87, 4294901760
    %v308 = vsub.f32 %v87, %v307
    %v309 = vand.u32 %v308, 4294901760
    %v310 = vsub.f32 %v308, %v309
    %v311 = vand.u32 %v310, 4294901760
    %312 = vmatprep.subr.mxu0 %v311
    %v313 = vand.u32 %v86, 4294901760
    %v314 = vsub.f32 %v86, %v313
    %v315 = vand.u32 %v314, 4294901760
    %v316 = vsub.f32 %v314, %v315
    %v317 = vand.u32 %v316, 4294901760
    %318 = vmatpush1.msra.mxu0 %v317
    %v319 = vand.u32 %v85, 4294901760
    %v320 = vsub.f32 %v85, %v319
    %v321 = vand.u32 %v320, 4294901760
    %v322 = vsub.f32 %v320, %v321
    %v323 = vand.u32 %v322, 4294901760
    %324 = vmatprep.subr.mxu0 %v323
    %v325 = vand.u32 %v84, 4294901760
    %v326 = vsub.f32 %v84, %v325
    %v327 = vand.u32 %v326, 4294901760
    %v328 = vsub.f32 %v326, %v327
    %v329 = vand.u32 %v328, 4294901760
    %330 = vmatpush1.msra.mxu0 %v329
    %v331 = vand.u32 %v83, 4294901760
    %v332 = vsub.f32 %v83, %v331
    %v333 = vand.u32 %v332, 4294901760
    %v334 = vsub.f32 %v332, %v333
    %v335 = vand.u32 %v334, 4294901760
    %336 = vmatprep.subr.mxu0 %v335
    %v337 = vand.u32 %v82, 4294901760
    %v338 = vsub.f32 %v82, %v337
    %v339 = vand.u32 %v338, 4294901760
    %v340 = vsub.f32 %v338, %v339
    %v341 = vand.u32 %v340, 4294901760
    %342 = vmatpush1.msra.mxu0 %v341
    %v343 = vand.u32 %v81, 4294901760
    %v344 = vsub.f32 %v81, %v343
    %v345 = vand.u32 %v344, 4294901760
    %v346 = vsub.f32 %v344, %v345
    %v347 = vand.u32 %v346, 4294901760
    %348 = vmatprep.subr.mxu0 %v347
    %v349 = vand.u32 %v80, 4294901760
    %v350 = vsub.f32 %v80, %v349
    %v351 = vand.u32 %v350, 4294901760
    %v352 = vsub.f32 %v350, %v351
    %v353 = vand.u32 %v352, 4294901760
    %354 = vmatpush1.msra.mxu0 %v353
    %v355 = vand.u32 %v79, 4294901760
    %v356 = vsub.f32 %v79, %v355
    %v357 = vand.u32 %v356, 4294901760
    %v358 = vsub.f32 %v356, %v357
    %v359 = vand.u32 %v358, 4294901760
    %360 = vmatprep.subr.mxu0 %v359
    %v361 = vand.u32 %v78, 4294901760
    %v362 = vsub.f32 %v78, %v361
    %v363 = vand.u32 %v362, 4294901760
    %v364 = vsub.f32 %v362, %v363
    %v365 = vand.u32 %v364, 4294901760
    %366 = vmatpush1.msra.mxu0 %v365
    %v367 = vand.u32 %v77, 4294901760
    %v368 = vsub.f32 %v77, %v367
    %v369 = vand.u32 %v368, 4294901760
    %v370 = vsub.f32 %v368, %v369
    %v371 = vand.u32 %v370, 4294901760
    %372 = vmatprep.subr.mxu0 %v371
    %v373 = vand.u32 %v76, 4294901760
    %v374 = vsub.f32 %v76, %v373
    %v375 = vand.u32 %v374, 4294901760
    %v376 = vsub.f32 %v374, %v375
    %v377 = vand.u32 %v376, 4294901760
    %378 = vmatpush1.msra.mxu0 %v377
    %v379 = vand.u32 %v75, 4294901760
    %v380 = vsub.f32 %v75, %v379
    %v381 = vand.u32 %v380, 4294901760
    %v382 = vsub.f32 %v380, %v381
    %v383 = vand.u32 %v382, 4294901760
    %384 = vmatprep.subr.mxu0 %v383
    %v385 = vand.u32 %v74, 4294901760
    %v386 = vsub.f32 %v74, %v385
    %v387 = vand.u32 %v386, 4294901760
    %v388 = vsub.f32 %v386, %v387
    %v389 = vand.u32 %v388, 4294901760
    %390 = vmatpush1.msra.mxu0 %v389
    %v391 = vand.u32 %v73, 4294901760
    %v392 = vsub.f32 %v73, %v391
    %v393 = vand.u32 %v392, 4294901760
    %v394 = vsub.f32 %v392, %v393
    %v395 = vand.u32 %v394, 4294901760
    %396 = vmatprep.subr.mxu0 %v395
    %v397 = vand.u32 %v72, 4294901760
    %v398 = vsub.f32 %v72, %v397
    %v399 = vand.u32 %v398, 4294901760
    %v400 = vsub.f32 %v398, %v399
    %v401 = vand.u32 %v400, 4294901760
    %402 = vmatpush1.msra.mxu0 %v401
    %v403 = vand.u32 %v71, 4294901760
    %v404 = vsub.f32 %v71, %v403
    %v405 = vand.u32 %v404, 4294901760
    %v406 = vsub.f32 %v404, %v405
    %v407 = vand.u32 %v406, 4294901760
    %408 = vmatprep.subr.mxu0 %v407
    %v409 = vand.u32 %v70, 4294901760
    %v410 = vsub.f32 %v70, %v409
    %v411 = vand.u32 %v410, 4294901760
    %v412 = vsub.f32 %v410, %v411
    %v413 = vand.u32 %v412, 4294901760
    %414 = vmatpush1.msra.mxu0 %v413
    %v415 = vand.u32 %v69, 4294901760
    %v416 = vsub.f32 %v69, %v415
    %v417 = vand.u32 %v416, 4294901760
    %v418 = vsub.f32 %v416, %v417
    %v419 = vand.u32 %v418, 4294901760
    %420 = vmatprep.subr.mxu0 %v419
    %v421 = vand.u32 %v68, 4294901760
    %v422 = vsub.f32 %v68, %v421
    %v423 = vand.u32 %v422, 4294901760
    %v424 = vsub.f32 %v422, %v423
    %v425 = vand.u32 %v424, 4294901760
    %426 = vmatpush1.msra.mxu0 %v425
    %v427 = vand.u32 %v67, 4294901760
    %v428 = vsub.f32 %v67, %v427
    %v429 = vand.u32 %v428, 4294901760
    %v430 = vsub.f32 %v428, %v429
    %v431 = vand.u32 %v430, 4294901760
    %432 = vmatprep.subr.mxu0 %v431
    %v433 = vand.u32 %v66, 4294901760
    %v434 = vsub.f32 %v66, %v433
    %v435 = vand.u32 %v434, 4294901760
    %v436 = vsub.f32 %v434, %v435
    %v437 = vand.u32 %v436, 4294901760
    %438 = vmatpush1.msra.mxu0 %v437
    %v439 = vand.u32 %v65, 4294901760
    %v440 = vsub.f32 %v65, %v439
    %v441 = vand.u32 %v440, 4294901760
    %v442 = vsub.f32 %v440, %v441
    %v443 = vand.u32 %v442, 4294901760
    %444 = vmatprep.subr.mxu0 %v443
    %v445 = vand.u32 %v64, 4294901760
    %v446 = vsub.f32 %v64, %v445
    %v447 = vand.u32 %v446, 4294901760
    %v448 = vsub.f32 %v446, %v447
    %v449 = vand.u32 %v448, 4294901760
    %450 = vmatpush1.msra.mxu0 %v449
    %v451 = vand.u32 %v63, 4294901760
    %v452 = vsub.f32 %v63, %v451
    %v453 = vand.u32 %v452, 4294901760
    %v454 = vsub.f32 %v452, %v453
    %v455 = vand.u32 %v454, 4294901760
    %456 = vmatprep.subr.mxu0 %v455
    %v457 = vand.u32 %v62, 4294901760
    %v458 = vsub.f32 %v62, %v457
    %v459 = vand.u32 %v458, 4294901760
    %v460 = vsub.f32 %v458, %v459
    %v461 = vand.u32 %v460, 4294901760
    %462 = vmatpush1.msra.mxu0 %v461
    %v463 = vand.u32 %v125, 4294901760
    %v464 = vsub.f32 %v125, %v463
    %v465 = vand.u32 %v464, 4294901760
    %v466 = vsub.f32 %v464, %v465
    %v467 = vand.u32 %v466, 4294901760
    %468 = vmatprep.subr.mxu0 %v467
    %v469 = vand.u32 %v124, 4294901760
    %v470 = vsub.f32 %v124, %v469
    %v471 = vand.u32 %v470, 4294901760
    %v472 = vsub.f32 %v470, %v471
    %v473 = vand.u32 %v472, 4294901760
    %474 = vmatpush2.msra.mxu0 %v473
    %v475 = vand.u32 %v123, 4294901760
    %v476 = vsub.f32 %v123, %v475
    %v477 = vand.u32 %v476, 4294901760
    %v478 = vsub.f32 %v476, %v477
    %v479 = vand.u32 %v478, 4294901760
    %480 = vmatprep.subr.mxu0 %v479
    %v481 = vand.u32 %v122, 4294901760
    %v482 = vsub.f32 %v122, %v481
    %v483 = vand.u32 %v482, 4294901760
    %v484 = vsub.f32 %v482, %v483
    %v485 = vand.u32 %v484, 4294901760
    %486 = vmatpush2.msra.mxu0 %v485
    %v487 = vand.u32 %v121, 4294901760
    %v488 = vsub.f32 %v121, %v487
    %v489 = vand.u32 %v488, 4294901760
    %v490 = vsub.f32 %v488, %v489
    %v491 = vand.u32 %v490, 4294901760
    %492 = vmatprep.subr.mxu0 %v491
    %v493 = vand.u32 %v120, 4294901760
    %v494 = vsub.f32 %v120, %v493
    %v495 = vand.u32 %v494, 4294901760
    %v496 = vsub.f32 %v494, %v495
    %v497 = vand.u32 %v496, 4294901760
    %498 = vmatpush2.msra.mxu0 %v497
    %v499 = vand.u32 %v119, 4294901760
    %v500 = vsub.f32 %v119, %v499
    %v501 = vand.u32 %v500, 4294901760
    %v502 = vsub.f32 %v500, %v501
    %v503 = vand.u32 %v502, 4294901760
    %504 = vmatprep.subr.mxu0 %v503
    %v505 = vand.u32 %v118, 4294901760
    %v506 = vsub.f32 %v118, %v505
    %v507 = vand.u32 %v506, 4294901760
    %v508 = vsub.f32 %v506, %v507
    %v509 = vand.u32 %v508, 4294901760
    %510 = vmatpush2.msra.mxu0 %v509
    %v511 = vand.u32 %v117, 4294901760
    %v512 = vsub.f32 %v117, %v511
    %v513 = vand.u32 %v512, 4294901760
    %v514 = vsub.f32 %v512, %v513
    %v515 = vand.u32 %v514, 4294901760
    %516 = vmatprep.subr.mxu0 %v515
    %v517 = vand.u32 %v116, 4294901760
    %v518 = vsub.f32 %v116, %v517
    %v519 = vand.u32 %v518, 4294901760
    %v520 = vsub.f32 %v518, %v519
    %v521 = vand.u32 %v520, 4294901760
    %522 = vmatpush2.msra.mxu0 %v521
    %v523 = vand.u32 %v115, 4294901760
    %v524 = vsub.f32 %v115, %v523
    %v525 = vand.u32 %v524, 4294901760
    %v526 = vsub.f32 %v524, %v525
    %v527 = vand.u32 %v526, 4294901760
    %528 = vmatprep.subr.mxu0 %v527
    %v529 = vand.u32 %v114, 4294901760
    %v530 = vsub.f32 %v114, %v529
    %v531 = vand.u32 %v530, 4294901760
    %v532 = vsub.f32 %v530, %v531
    %v533 = vand.u32 %v532, 4294901760
    %534 = vmatpush2.msra.mxu0 %v533
    %v535 = vand.u32 %v113, 4294901760
    %v536 = vsub.f32 %v113, %v535
    %v537 = vand.u32 %v536, 4294901760
    %v538 = vsub.f32 %v536, %v537
    %v539 = vand.u32 %v538, 4294901760
    %540 = vmatprep.subr.mxu0 %v539
    %v541 = vand.u32 %v112, 4294901760
    %v542 = vsub.f32 %v112, %v541
    %v543 = vand.u32 %v542, 4294901760
    %v544 = vsub.f32 %v542, %v543
    %v545 = vand.u32 %v544, 4294901760
    %546 = vmatpush2.msra.mxu0 %v545
    %v547 = vand.u32 %v111, 4294901760
    %v548 = vsub.f32 %v111, %v547
    %v549 = vand.u32 %v548, 4294901760
    %v550 = vsub.f32 %v548, %v549
    %v551 = vand.u32 %v550, 4294901760
    %552 = vmatprep.subr.mxu0 %v551
    %v553 = vand.u32 %v110, 4294901760
    %v554 = vsub.f32 %v110, %v553
    %v555 = vand.u32 %v554, 4294901760
    %v556 = vsub.f32 %v554, %v555
    %v557 = vand.u32 %v556, 4294901760
    %558 = vmatpush2.msra.mxu0 %v557
    %v559 = vand.u32 %v109, 4294901760
    %v560 = vsub.f32 %v109, %v559
    %v561 = vand.u32 %v560, 4294901760
    %v562 = vsub.f32 %v560, %v561
    %v563 = vand.u32 %v562, 4294901760
    %564 = vmatprep.subr.mxu0 %v563
    %v565 = vand.u32 %v108, 4294901760
    %v566 = vsub.f32 %v108, %v565
    %v567 = vand.u32 %v566, 4294901760
    %v568 = vsub.f32 %v566, %v567
    %v569 = vand.u32 %v568, 4294901760
    %570 = vmatpush2.msra.mxu0 %v569
    %v571 = vand.u32 %v107, 4294901760
    %v572 = vsub.f32 %v107, %v571
    %v573 = vand.u32 %v572, 4294901760
    %v574 = vsub.f32 %v572, %v573
    %v575 = vand.u32 %v574, 4294901760
    %576 = vmatprep.subr.mxu0 %v575
    %v577 = vand.u32 %v106, 4294901760
    %v578 = vsub.f32 %v106, %v577
    %v579 = vand.u32 %v578, 4294901760
    %v580 = vsub.f32 %v578, %v579
    %v581 = vand.u32 %v580, 4294901760
    %582 = vmatpush2.msra.mxu0 %v581
    %v583 = vand.u32 %v105, 4294901760
    %v584 = vsub.f32 %v105, %v583
    %v585 = vand.u32 %v584, 4294901760
    %v586 = vsub.f32 %v584, %v585
    %v587 = vand.u32 %v586, 4294901760
    %588 = vmatprep.subr.mxu0 %v587
    %v589 = vand.u32 %v104, 4294901760
    %v590 = vsub.f32 %v104, %v589
    %v591 = vand.u32 %v590, 4294901760
    %v592 = vsub.f32 %v590, %v591
    %v593 = vand.u32 %v592, 4294901760
    %594 = vmatpush2.msra.mxu0 %v593
    %v595 = vand.u32 %v103, 4294901760
    %v596 = vsub.f32 %v103, %v595
    %v597 = vand.u32 %v596, 4294901760
    %v598 = vsub.f32 %v596, %v597
    %v599 = vand.u32 %v598, 4294901760
    %600 = vmatprep.subr.mxu0 %v599
    %v601 = vand.u32 %v102, 4294901760
    %v602 = vsub.f32 %v102, %v601
    %v603 = vand.u32 %v602, 4294901760
    %v604 = vsub.f32 %v602, %v603
    %v605 = vand.u32 %v604, 4294901760
    %606 = vmatpush2.msra.mxu0 %v605
    %v607 = vand.u32 %v101, 4294901760
    %v608 = vsub.f32 %v101, %v607
    %v609 = vand.u32 %v608, 4294901760
    %v610 = vsub.f32 %v608, %v609
    %v611 = vand.u32 %v610, 4294901760
    %612 = vmatprep.subr.mxu0 %v611
    %v613 = vand.u32 %v100, 4294901760
    %v614 = vsub.f32 %v100, %v613
    %v615 = vand.u32 %v614, 4294901760
    %v616 = vsub.f32 %v614, %v615
    %v617 = vand.u32 %v616, 4294901760
    %618 = vmatpush2.msra.mxu0 %v617
    %v619 = vand.u32 %v99, 4294901760
    %v620 = vsub.f32 %v99, %v619
    %v621 = vand.u32 %v620, 4294901760
    %v622 = vsub.f32 %v620, %v621
    %v623 = vand.u32 %v622, 4294901760
    %624 = vmatprep.subr.mxu0 %v623
    %v625 = vand.u32 %v98, 4294901760
    %v626 = vsub.f32 %v98, %v625
    %v627 = vand.u32 %v626, 4294901760
    %v628 = vsub.f32 %v626, %v627
    %v629 = vand.u32 %v628, 4294901760
    %630 = vmatpush2.msra.mxu0 %v629
    %v631 = vand.u32 %v97, 4294901760
    %v632 = vsub.f32 %v97, %v631
    %v633 = vand.u32 %v632, 4294901760
    %v634 = vsub.f32 %v632, %v633
    %v635 = vand.u32 %v634, 4294901760
    %636 = vmatprep.subr.mxu0 %v635
    %v637 = vand.u32 %v96, 4294901760
    %v638 = vsub.f32 %v96, %v637
    %v639 = vand.u32 %v638, 4294901760
    %v640 = vsub.f32 %v638, %v639
    %v641 = vand.u32 %v640, 4294901760
    %642 = vmatpush2.msra.mxu0 %v641
    %v643 = vand.u32 %v95, 4294901760
    %v644 = vsub.f32 %v95, %v643
    %v645 = vand.u32 %v644, 4294901760
    %v646 = vsub.f32 %v644, %v645
    %v647 = vand.u32 %v646, 4294901760
    %648 = vmatprep.subr.mxu0 %v647
    %v649 = vand.u32 %v94, 4294901760
    %v650 = vsub.f32 %v94, %v649
    %v651 = vand.u32 %v650, 4294901760
    %v652 = vsub.f32 %v650, %v651
    %v653 = vand.u32 %v652, 4294901760
    %654 = vmatpush2.msra.mxu0 %v653
    %v655 = vand.u32 %v61, 4294901760
    %656 = vmatprep.mubr.f32.mxu0 %v655
    %v657 = vand.u32 %v60, 4294901760
    %658 = vmatmul.mubr.f32.gmra.mxu0 %v657
    %v659 = vpop.f32.mrf.mxu0
    %v660 = vadd.f32 %v267, %v659
    %v661 = vpop.f32.mrf.mxu0
    %v662 = vadd.f32 %v269, %v661
    %663 = vdwg.mxu0
    %v664 = vand.u32 %v93, 4294901760
    %v665 = vsub.f32 %v93, %v664
    %666 = vmatprep.subr.mxu0 %v665
    %v667 = vand.u32 %v92, 4294901760
    %v668 = vsub.f32 %v92, %v667
    %669 = vmatpush1.msra.mxu0 %v668
    %v670 = vand.u32 %v91, 4294901760
    %v671 = vsub.f32 %v91, %v670
    %672 = vmatprep.subr.mxu0 %v671
    %v673 = vand.u32 %v90, 4294901760
    %v674 = vsub.f32 %v90, %v673
    %675 = vmatpush1.msra.mxu0 %v674
    %v676 = vand.u32 %v89, 4294901760
    %v677 = vsub.f32 %v89, %v676
    %678 = vmatprep.subr.mxu0 %v677
    %v679 = vand.u32 %v88, 4294901760
    %v680 = vsub.f32 %v88, %v679
    %681 = vmatpush1.msra.mxu0 %v680
    %v682 = vand.u32 %v87, 4294901760
    %v683 = vsub.f32 %v87, %v682
    %684 = vmatprep.subr.mxu0 %v683
    %v685 = vand.u32 %v86, 4294901760
    %v686 = vsub.f32 %v86, %v685
    %687 = vmatpush1.msra.mxu0 %v686
    %v688 = vand.u32 %v85, 4294901760
    %v689 = vsub.f32 %v85, %v688
    %690 = vmatprep.subr.mxu0 %v689
    %v691 = vand.u32 %v84, 4294901760
    %v692 = vsub.f32 %v84, %v691
    %693 = vmatpush1.msra.mxu0 %v692
    %v694 = vand.u32 %v83, 4294901760
    %v695 = vsub.f32 %v83, %v694
    %696 = vmatprep.subr.mxu0 %v695
    %v697 = vand.u32 %v82, 4294901760
    %v698 = vsub.f32 %v82, %v697
    %699 = vmatpush1.msra.mxu0 %v698
    %v700 = vand.u32 %v81, 4294901760
    %v701 = vsub.f32 %v81, %v700
    %702 = vmatprep.subr.mxu0 %v701
    %v703 = vand.u32 %v80, 4294901760
    %v704 = vsub.f32 %v80, %v703
    %705 = vmatpush1.msra.mxu0 %v704
    %v706 = vand.u32 %v79, 4294901760
    %v707 = vsub.f32 %v79, %v706
    %708 = vmatprep.subr.mxu0 %v707
    %v709 = vand.u32 %v78, 4294901760
    %v710 = vsub.f32 %v78, %v709
    %711 = vmatpush1.msra.mxu0 %v710
    %v712 = vand.u32 %v77, 4294901760
    %v713 = vsub.f32 %v77, %v712
    %714 = vmatprep.subr.mxu0 %v713
    %v715 = vand.u32 %v76, 4294901760
    %v716 = vsub.f32 %v76, %v715
    %717 = vmatpush1.msra.mxu0 %v716
    %v718 = vand.u32 %v75, 4294901760
    %v719 = vsub.f32 %v75, %v718
    %720 = vmatprep.subr.mxu0 %v719
    %v721 = vand.u32 %v74, 4294901760
    %v722 = vsub.f32 %v74, %v721
    %723 = vmatpush1.msra.mxu0 %v722
    %v724 = vand.u32 %v73, 4294901760
    %v725 = vsub.f32 %v73, %v724
    %726 = vmatprep.subr.mxu0 %v725
    %v727 = vand.u32 %v72, 4294901760
    %v728 = vsub.f32 %v72, %v727
    %729 = vmatpush1.msra.mxu0 %v728
    %v730 = vand.u32 %v71, 4294901760
    %v731 = vsub.f32 %v71, %v730
    %732 = vmatprep.subr.mxu0 %v731
    %v733 = vand.u32 %v70, 4294901760
    %v734 = vsub.f32 %v70, %v733
    %735 = vmatpush1.msra.mxu0 %v734
    %v736 = vand.u32 %v69, 4294901760
    %v737 = vsub.f32 %v69, %v736
    %738 = vmatprep.subr.mxu0 %v737
    %v739 = vand.u32 %v68, 4294901760
    %v740 = vsub.f32 %v68, %v739
    %741 = vmatpush1.msra.mxu0 %v740
    %v742 = vand.u32 %v67, 4294901760
    %v743 = vsub.f32 %v67, %v742
    %744 = vmatprep.subr.mxu0 %v743
    %v745 = vand.u32 %v66, 4294901760
    %v746 = vsub.f32 %v66, %v745
    %747 = vmatpush1.msra.mxu0 %v746
    %v748 = vand.u32 %v65, 4294901760
    %v749 = vsub.f32 %v65, %v748
    %750 = vmatprep.subr.mxu0 %v749
    %v751 = vand.u32 %v64, 4294901760
    %v752 = vsub.f32 %v64, %v751
    %753 = vmatpush1.msra.mxu0 %v752
    %v754 = vand.u32 %v63, 4294901760
    %v755 = vsub.f32 %v63, %v754
    %756 = vmatprep.subr.mxu0 %v755
    %v757 = vand.u32 %v62, 4294901760
    %v758 = vsub.f32 %v62, %v757
    %759 = vmatpush1.msra.mxu0 %v758
    %v760 = vand.u32 %v125, 4294901760
    %v761 = vsub.f32 %v125, %v760
    %762 = vmatprep.subr.mxu0 %v761
    %v763 = vand.u32 %v124, 4294901760
    %v764 = vsub.f32 %v124, %v763
    %765 = vmatpush2.msra.mxu0 %v764
    %v766 = vand.u32 %v123, 4294901760
    %v767 = vsub.f32 %v123, %v766
    %768 = vmatprep.subr.mxu0 %v767
    %v769 = vand.u32 %v122, 4294901760
    %v770 = vsub.f32 %v122, %v769
    %771 = vmatpush2.msra.mxu0 %v770
    %v772 = vand.u32 %v121, 4294901760
    %v773 = vsub.f32 %v121, %v772
    %774 = vmatprep.subr.mxu0 %v773
    %v775 = vand.u32 %v120, 4294901760
    %v776 = vsub.f32 %v120, %v775
    %777 = vmatpush2.msra.mxu0 %v776
    %v778 = vand.u32 %v119, 4294901760
    %v779 = vsub.f32 %v119, %v778
    %780 = vmatprep.subr.mxu0 %v779
    %v781 = vand.u32 %v118, 4294901760
    %v782 = vsub.f32 %v118, %v781
    %783 = vmatpush2.msra.mxu0 %v782
    %v784 = vand.u32 %v117, 4294901760
    %v785 = vsub.f32 %v117, %v784
    %786 = vmatprep.subr.mxu0 %v785
    %v787 = vand.u32 %v116, 4294901760
    %v788 = vsub.f32 %v116, %v787
    %789 = vmatpush2.msra.mxu0 %v788
    %v790 = vand.u32 %v115, 4294901760
    %v791 = vsub.f32 %v115, %v790
    %792 = vmatprep.subr.mxu0 %v791
    %v793 = vand.u32 %v114, 4294901760
    %v794 = vsub.f32 %v114, %v793
    %795 = vmatpush2.msra.mxu0 %v794
    %v796 = vand.u32 %v113, 4294901760
    %v797 = vsub.f32 %v113, %v796
    %798 = vmatprep.subr.mxu0 %v797
    %v799 = vand.u32 %v112, 4294901760
    %v800 = vsub.f32 %v112, %v799
    %801 = vmatpush2.msra.mxu0 %v800
    %v802 = vand.u32 %v111, 4294901760
    %v803 = vsub.f32 %v111, %v802
    %804 = vmatprep.subr.mxu0 %v803
    %v805 = vand.u32 %v110, 4294901760
    %v806 = vsub.f32 %v110, %v805
    %807 = vmatpush2.msra.mxu0 %v806
    %v808 = vand.u32 %v109, 4294901760
    %v809 = vsub.f32 %v109, %v808
    %810 = vmatprep.subr.mxu0 %v809
    %v811 = vand.u32 %v108, 4294901760
    %v812 = vsub.f32 %v108, %v811
    %813 = vmatpush2.msra.mxu0 %v812
    %v814 = vand.u32 %v107, 4294901760
    %v815 = vsub.f32 %v107, %v814
    %816 = vmatprep.subr.mxu0 %v815
    %v817 = vand.u32 %v106, 4294901760
    %v818 = vsub.f32 %v106, %v817
    %819 = vmatpush2.msra.mxu0 %v818
    %v820 = vand.u32 %v105, 4294901760
    %v821 = vsub.f32 %v105, %v820
    %822 = vmatprep.subr.mxu0 %v821
    %v823 = vand.u32 %v104, 4294901760
    %v824 = vsub.f32 %v104, %v823
    %825 = vmatpush2.msra.mxu0 %v824
    %v826 = vand.u32 %v103, 4294901760
    %v827 = vsub.f32 %v103, %v826
    %828 = vmatprep.subr.mxu0 %v827
    %v829 = vand.u32 %v102, 4294901760
    %v830 = vsub.f32 %v102, %v829
    %831 = vmatpush2.msra.mxu0 %v830
    %v832 = vand.u32 %v101, 4294901760
    %v833 = vsub.f32 %v101, %v832
    %834 = vmatprep.subr.mxu0 %v833
    %v835 = vand.u32 %v100, 4294901760
    %v836 = vsub.f32 %v100, %v835
    %837 = vmatpush2.msra.mxu0 %v836
    %v838 = vand.u32 %v99, 4294901760
    %v839 = vsub.f32 %v99, %v838
    %840 = vmatprep.subr.mxu0 %v839
    %v841 = vand.u32 %v98, 4294901760
    %v842 = vsub.f32 %v98, %v841
    %843 = vmatpush2.msra.mxu0 %v842
    %v844 = vand.u32 %v97, 4294901760
    %v845 = vsub.f32 %v97, %v844
    %846 = vmatprep.subr.mxu0 %v845
    %v847 = vand.u32 %v96, 4294901760
    %v848 = vsub.f32 %v96, %v847
    %849 = vmatpush2.msra.mxu0 %v848
    %v850 = vand.u32 %v95, 4294901760
    %v851 = vsub.f32 %v95, %v850
    %852 = vmatprep.subr.mxu0 %v851
    %v853 = vand.u32 %v94, 4294901760
    %v854 = vsub.f32 %v94, %v853
    %855 = vmatpush2.msra.mxu0 %v854
    %v856 = vand.u32 %v61, 4294901760
    %v857 = vsub.f32 %v61, %v856
    %858 = vmatprep.mubr.f32.mxu0 %v857
    %v859 = vand.u32 %v60, 4294901760
    %v860 = vsub.f32 %v60, %v859
    %861 = vmatmul.mubr.f32.gmra.mxu0 %v860
    %v862 = vpop.f32.mrf.mxu0
    %v863 = vadd.f32 %v660, %v862
    %v864 = vpop.f32.mrf.mxu0
    %v865 = vadd.f32 %v662, %v864
    %866 = vdwg.mxu0
    %v867 = vand.u32 %v93, 4294901760
    %868 = vmatprep.subr.mxu0 %v867
    %v869 = vand.u32 %v92, 4294901760
    %870 = vmatpush1.msra.mxu0 %v869
    %v871 = vand.u32 %v91, 4294901760
    %872 = vmatprep.subr.mxu0 %v871
    %v873 = vand.u32 %v90, 4294901760
    %874 = vmatpush1.msra.mxu0 %v873
    %v875 = vand.u32 %v89, 4294901760
    %876 = vmatprep.subr.mxu0 %v875
    %v877 = vand.u32 %v88, 4294901760
    %878 = vmatpush1.msra.mxu0 %v877
    %v879 = vand.u32 %v87, 4294901760
    %880 = vmatprep.subr.mxu0 %v879
    %v881 = vand.u32 %v86, 4294901760
    %882 = vmatpush1.msra.mxu0 %v881
    %v883 = vand.u32 %v85, 4294901760
    %884 = vmatprep.subr.mxu0 %v883
    %v885 = vand.u32 %v84, 4294901760
    %886 = vmatpush1.msra.mxu0 %v885
    %v887 = vand.u32 %v83, 4294901760
    %888 = vmatprep.subr.mxu0 %v887
    %v889 = vand.u32 %v82, 4294901760
    %890 = vmatpush1.msra.mxu0 %v889
    %v891 = vand.u32 %v81, 4294901760
    %892 = vmatprep.subr.mxu0 %v891
    %v893 = vand.u32 %v80, 4294901760
    %894 = vmatpush1.msra.mxu0 %v893
    %v895 = vand.u32 %v79, 4294901760
    %896 = vmatprep.subr.mxu0 %v895
    %v897 = vand.u32 %v78, 4294901760
    %898 = vmatpush1.msra.mxu0 %v897
    %v899 = vand.u32 %v77, 4294901760
    %900 = vmatprep.subr.mxu0 %v899
    %v901 = vand.u32 %v76, 4294901760
    %902 = vmatpush1.msra.mxu0 %v901
    %v903 = vand.u32 %v75, 4294901760
    %904 = vmatprep.subr.mxu0 %v903
    %v905 = vand.u32 %v74, 4294901760
    %906 = vmatpush1.msra.mxu0 %v905
    %v907 = vand.u32 %v73, 4294901760
    %908 = vmatprep.subr.mxu0 %v907
    %v909 = vand.u32 %v72, 4294901760
    %910 = vmatpush1.msra.mxu0 %v909
    %v911 = vand.u32 %v71, 4294901760
    %912 = vmatprep.subr.mxu0 %v911
    %v913 = vand.u32 %v70, 4294901760
    %914 = vmatpush1.msra.mxu0 %v913
    %v915 = vand.u32 %v69, 4294901760
    %916 = vmatprep.subr.mxu0 %v915
    %v917 = vand.u32 %v68, 4294901760
    %918 = vmatpush1.msra.mxu0 %v917
    %v919 = vand.u32 %v67, 4294901760
    %920 = vmatprep.subr.mxu0 %v919
    %v921 = vand.u32 %v66, 4294901760
    %922 = vmatpush1.msra.mxu0 %v921
    %v923 = vand.u32 %v65, 4294901760
    %924 = vmatprep.subr.mxu0 %v923
    %v925 = vand.u32 %v64, 4294901760
    %926 = vmatpush1.msra.mxu0 %v925
    %v927 = vand.u32 %v63, 4294901760
    %928 = vmatprep.subr.mxu0 %v927
    %v929 = vand.u32 %v62, 4294901760
    %930 = vmatpush1.msra.mxu0 %v929
    %v931 = vand.u32 %v125, 4294901760
    %932 = vmatprep.subr.mxu0 %v931
    %v933 = vand.u32 %v124, 4294901760
    %934 = vmatpush2.msra.mxu0 %v933
    %v935 = vand.u32 %v123, 4294901760
    %936 = vmatprep.subr.mxu0 %v935
    %v937 = vand.u32 %v122, 4294901760
    %938 = vmatpush2.msra.mxu0 %v937
    %v939 = vand.u32 %v121, 4294901760
    %940 = vmatprep.subr.mxu0 %v939
    %v941 = vand.u32 %v120, 4294901760
    %942 = vmatpush2.msra.mxu0 %v941
    %v943 = vand.u32 %v119, 4294901760
    %944 = vmatprep.subr.mxu0 %v943
    %v945 = vand.u32 %v118, 4294901760
    %946 = vmatpush2.msra.mxu0 %v945
    %v947 = vand.u32 %v117, 4294901760
    %948 = vmatprep.subr.mxu0 %v947
    %v949 = vand.u32 %v116, 4294901760
    %950 = vmatpush2.msra.mxu0 %v949
    %v951 = vand.u32 %v115, 4294901760
    %952 = vmatprep.subr.mxu0 %v951
    %v953 = vand.u32 %v114, 4294901760
    %954 = vmatpush2.msra.mxu0 %v953
    %v955 = vand.u32 %v113, 4294901760
    %956 = vmatprep.subr.mxu0 %v955
    %v957 = vand.u32 %v112, 4294901760
    %958 = vmatpush2.msra.mxu0 %v957
    %v959 = vand.u32 %v111, 4294901760
    %960 = vmatprep.subr.mxu0 %v959
    %v961 = vand.u32 %v110, 4294901760
    %962 = vmatpush2.msra.mxu0 %v961
    %v963 = vand.u32 %v109, 4294901760
    %964 = vmatprep.subr.mxu0 %v963
    %v965 = vand.u32 %v108, 4294901760
    %966 = vmatpush2.msra.mxu0 %v965
    %v967 = vand.u32 %v107, 4294901760
    %968 = vmatprep.subr.mxu0 %v967
    %v969 = vand.u32 %v106, 4294901760
    %970 = vmatpush2.msra.mxu0 %v969
    %v971 = vand.u32 %v105, 4294901760
    %972 = vmatprep.subr.mxu0 %v971
    %v973 = vand.u32 %v104, 4294901760
    %974 = vmatpush2.msra.mxu0 %v973
    %v975 = vand.u32 %v103, 4294901760
    %976 = vmatprep.subr.mxu0 %v975
    %v977 = vand.u32 %v102, 4294901760
    %978 = vmatpush2.msra.mxu0 %v977
    %v979 = vand.u32 %v101, 4294901760
    %980 = vmatprep.subr.mxu0 %v979
    %v981 = vand.u32 %v100, 4294901760
    %982 = vmatpush2.msra.mxu0 %v981
    %v983 = vand.u32 %v99, 4294901760
    %984 = vmatprep.subr.mxu0 %v983
    %v985 = vand.u32 %v98, 4294901760
    %986 = vmatpush2.msra.mxu0 %v985
    %v987 = vand.u32 %v97, 4294901760
    %988 = vmatprep.subr.mxu0 %v987
    %v989 = vand.u32 %v96, 4294901760
    %990 = vmatpush2.msra.mxu0 %v989
    %v991 = vand.u32 %v95, 4294901760
    %992 = vmatprep.subr.mxu0 %v991
    %v993 = vand.u32 %v94, 4294901760
    %994 = vmatpush2.msra.mxu0 %v993
    %v995 = vand.u32 %v61, 4294901760
    %v996 = vsub.f32 %v61, %v995
    %v997 = vand.u32 %v996, 4294901760
    %998 = vmatprep.mubr.f32.mxu0 %v997
    %v999 = vand.u32 %v60, 4294901760
    %v1000 = vsub.f32 %v60, %v999
    %v1001 = vand.u32 %v1000, 4294901760
    %1002 = vmatmul.mubr.f32.gmra.mxu0 %v1001
    %v1003 = vpop.f32.mrf.mxu0
    %v1004 = vadd.f32 %v863, %v1003
    %v1005 = vpop.f32.mrf.mxu0
    %v1006 = vadd.f32 %v865, %v1005
    %1007 = vdwg.mxu0
    %v1008 = vand.u32 %v93, 4294901760
    %v1009 = vsub.f32 %v93, %v1008
    %v1010 = vand.u32 %v1009, 4294901760
    %1011 = vmatprep.subr.mxu0 %v1010
    %v1012 = vand.u32 %v92, 4294901760
    %v1013 = vsub.f32 %v92, %v1012
    %v1014 = vand.u32 %v1013, 4294901760
    %1015 = vmatpush1.msra.mxu0 %v1014
    %v1016 = vand.u32 %v91, 4294901760
    %v1017 = vsub.f32 %v91, %v1016
    %v1018 = vand.u32 %v1017, 4294901760
    %1019 = vmatprep.subr.mxu0 %v1018
    %v1020 = vand.u32 %v90, 4294901760
    %v1021 = vsub.f32 %v90, %v1020
    %v1022 = vand.u32 %v1021, 4294901760
    %1023 = vmatpush1.msra.mxu0 %v1022
    %v1024 = vand.u32 %v89, 4294901760
    %v1025 = vsub.f32 %v89, %v1024
    %v1026 = vand.u32 %v1025, 4294901760
    %1027 = vmatprep.subr.mxu0 %v1026
    %v1028 = vand.u32 %v88, 4294901760
    %v1029 = vsub.f32 %v88, %v1028
    %v1030 = vand.u32 %v1029, 4294901760
    %1031 = vmatpush1.msra.mxu0 %v1030
    %v1032 = vand.u32 %v87, 4294901760
    %v1033 = vsub.f32 %v87, %v1032
    %v1034 = vand.u32 %v1033, 4294901760
    %1035 = vmatprep.subr.mxu0 %v1034
    %v1036 = vand.u32 %v86, 4294901760
    %v1037 = vsub.f32 %v86, %v1036
    %v1038 = vand.u32 %v1037, 4294901760
    %1039 = vmatpush1.msra.mxu0 %v1038
    %v1040 = vand.u32 %v85, 4294901760
    %v1041 = vsub.f32 %v85, %v1040
    %v1042 = vand.u32 %v1041, 4294901760
    %1043 = vmatprep.subr.mxu0 %v1042
    %v1044 = vand.u32 %v84, 4294901760
    %v1045 = vsub.f32 %v84, %v1044
    %v1046 = vand.u32 %v1045, 4294901760
    %1047 = vmatpush1.msra.mxu0 %v1046
    %v1048 = vand.u32 %v83, 4294901760
    %v1049 = vsub.f32 %v83, %v1048
    %v1050 = vand.u32 %v1049, 4294901760
    %1051 = vmatprep.subr.mxu0 %v1050
    %v1052 = vand.u32 %v82, 4294901760
    %v1053 = vsub.f32 %v82, %v1052
    %v1054 = vand.u32 %v1053, 4294901760
    %1055 = vmatpush1.msra.mxu0 %v1054
    %v1056 = vand.u32 %v81, 4294901760
    %v1057 = vsub.f32 %v81, %v1056
    %v1058 = vand.u32 %v1057, 4294901760
    %1059 = vmatprep.subr.mxu0 %v1058
    %v1060 = vand.u32 %v80, 4294901760
    %v1061 = vsub.f32 %v80, %v1060
    %v1062 = vand.u32 %v1061, 4294901760
    %1063 = vmatpush1.msra.mxu0 %v1062
    %v1064 = vand.u32 %v79, 4294901760
    %v1065 = vsub.f32 %v79, %v1064
    %v1066 = vand.u32 %v1065, 4294901760
    %1067 = vmatprep.subr.mxu0 %v1066
    %v1068 = vand.u32 %v78, 4294901760
    %v1069 = vsub.f32 %v78, %v1068
    %v1070 = vand.u32 %v1069, 4294901760
    %1071 = vmatpush1.msra.mxu0 %v1070
    %v1072 = vand.u32 %v77, 4294901760
    %v1073 = vsub.f32 %v77, %v1072
    %v1074 = vand.u32 %v1073, 4294901760
    %1075 = vmatprep.subr.mxu0 %v1074
    %v1076 = vand.u32 %v76, 4294901760
    %v1077 = vsub.f32 %v76, %v1076
    %v1078 = vand.u32 %v1077, 4294901760
    %1079 = vmatpush1.msra.mxu0 %v1078
    %v1080 = vand.u32 %v75, 4294901760
    %v1081 = vsub.f32 %v75, %v1080
    %v1082 = vand.u32 %v1081, 4294901760
    %1083 = vmatprep.subr.mxu0 %v1082
    %v1084 = vand.u32 %v74, 4294901760
    %v1085 = vsub.f32 %v74, %v1084
    %v1086 = vand.u32 %v1085, 4294901760
    %1087 = vmatpush1.msra.mxu0 %v1086
    %v1088 = vand.u32 %v73, 4294901760
    %v1089 = vsub.f32 %v73, %v1088
    %v1090 = vand.u32 %v1089, 4294901760
    %1091 = vmatprep.subr.mxu0 %v1090
    %v1092 = vand.u32 %v72, 4294901760
    %v1093 = vsub.f32 %v72, %v1092
    %v1094 = vand.u32 %v1093, 4294901760
    %1095 = vmatpush1.msra.mxu0 %v1094
    %v1096 = vand.u32 %v71, 4294901760
    %v1097 = vsub.f32 %v71, %v1096
    %v1098 = vand.u32 %v1097, 4294901760
    %1099 = vmatprep.subr.mxu0 %v1098
    %v1100 = vand.u32 %v70, 4294901760
    %v1101 = vsub.f32 %v70, %v1100
    %v1102 = vand.u32 %v1101, 4294901760
    %1103 = vmatpush1.msra.mxu0 %v1102
    %v1104 = vand.u32 %v69, 4294901760
    %v1105 = vsub.f32 %v69, %v1104
    %v1106 = vand.u32 %v1105, 4294901760
    %1107 = vmatprep.subr.mxu0 %v1106
    %v1108 = vand.u32 %v68, 4294901760
    %v1109 = vsub.f32 %v68, %v1108
    %v1110 = vand.u32 %v1109, 4294901760
    %1111 = vmatpush1.msra.mxu0 %v1110
    %v1112 = vand.u32 %v67, 4294901760
    %v1113 = vsub.f32 %v67, %v1112
    %v1114 = vand.u32 %v1113, 4294901760
    %1115 = vmatprep.subr.mxu0 %v1114
    %v1116 = vand.u32 %v66, 4294901760
    %v1117 = vsub.f32 %v66, %v1116
    %v1118 = vand.u32 %v1117, 4294901760
    %1119 = vmatpush1.msra.mxu0 %v1118
    %v1120 = vand.u32 %v65, 4294901760
    %v1121 = vsub.f32 %v65, %v1120
    %v1122 = vand.u32 %v1121, 4294901760
    %1123 = vmatprep.subr.mxu0 %v1122
    %v1124 = vand.u32 %v64, 4294901760
    %v1125 = vsub.f32 %v64, %v1124
    %v1126 = vand.u32 %v1125, 4294901760
    %1127 = vmatpush1.msra.mxu0 %v1126
    %v1128 = vand.u32 %v63, 4294901760
    %v1129 = vsub.f32 %v63, %v1128
    %v1130 = vand.u32 %v1129, 4294901760
    %1131 = vmatprep.subr.mxu0 %v1130
    %v1132 = vand.u32 %v62, 4294901760
    %v1133 = vsub.f32 %v62, %v1132
    %v1134 = vand.u32 %v1133, 4294901760
    %1135 = vmatpush1.msra.mxu0 %v1134
    %v1136 = vand.u32 %v125, 4294901760
    %v1137 = vsub.f32 %v125, %v1136
    %v1138 = vand.u32 %v1137, 4294901760
    %1139 = vmatprep.subr.mxu0 %v1138
    %v1140 = vand.u32 %v124, 4294901760
    %v1141 = vsub.f32 %v124, %v1140
    %v1142 = vand.u32 %v1141, 4294901760
    %1143 = vmatpush2.msra.mxu0 %v1142
    %v1144 = vand.u32 %v123, 4294901760
    %v1145 = vsub.f32 %v123, %v1144
    %v1146 = vand.u32 %v1145, 4294901760
    %1147 = vmatprep.subr.mxu0 %v1146
    %v1148 = vand.u32 %v122, 4294901760
    %v1149 = vsub.f32 %v122, %v1148
    %v1150 = vand.u32 %v1149, 4294901760
    %1151 = vmatpush2.msra.mxu0 %v1150
    %v1152 = vand.u32 %v121, 4294901760
    %v1153 = vsub.f32 %v121, %v1152
    %v1154 = vand.u32 %v1153, 4294901760
    %1155 = vmatprep.subr.mxu0 %v1154
    %v1156 = vand.u32 %v120, 4294901760
    %v1157 = vsub.f32 %v120, %v1156
    %v1158 = vand.u32 %v1157, 4294901760
    %1159 = vmatpush2.msra.mxu0 %v1158
    %v1160 = vand.u32 %v119, 4294901760
    %v1161 = vsub.f32 %v119, %v1160
    %v1162 = vand.u32 %v1161, 4294901760
    %1163 = vmatprep.subr.mxu0 %v1162
    %v1164 = vand.u32 %v118, 4294901760
    %v1165 = vsub.f32 %v118, %v1164
    %v1166 = vand.u32 %v1165, 4294901760
    %1167 = vmatpush2.msra.mxu0 %v1166
    %v1168 = vand.u32 %v117, 4294901760
    %v1169 = vsub.f32 %v117, %v1168
    %v1170 = vand.u32 %v1169, 4294901760
    %1171 = vmatprep.subr.mxu0 %v1170
    %v1172 = vand.u32 %v116, 4294901760
    %v1173 = vsub.f32 %v116, %v1172
    %v1174 = vand.u32 %v1173, 4294901760
    %1175 = vmatpush2.msra.mxu0 %v1174
    %v1176 = vand.u32 %v115, 4294901760
    %v1177 = vsub.f32 %v115, %v1176
    %v1178 = vand.u32 %v1177, 4294901760
    %1179 = vmatprep.subr.mxu0 %v1178
    %v1180 = vand.u32 %v114, 4294901760
    %v1181 = vsub.f32 %v114, %v1180
    %v1182 = vand.u32 %v1181, 4294901760
    %1183 = vmatpush2.msra.mxu0 %v1182
    %v1184 = vand.u32 %v113, 4294901760
    %v1185 = vsub.f32 %v113, %v1184
    %v1186 = vand.u32 %v1185, 4294901760
    %1187 = vmatprep.subr.mxu0 %v1186
    %v1188 = vand.u32 %v112, 4294901760
    %v1189 = vsub.f32 %v112, %v1188
    %v1190 = vand.u32 %v1189, 4294901760
    %1191 = vmatpush2.msra.mxu0 %v1190
    %v1192 = vand.u32 %v111, 4294901760
    %v1193 = vsub.f32 %v111, %v1192
    %v1194 = vand.u32 %v1193, 4294901760
    %1195 = vmatprep.subr.mxu0 %v1194
    %v1196 = vand.u32 %v110, 4294901760
    %v1197 = vsub.f32 %v110, %v1196
    %v1198 = vand.u32 %v1197, 4294901760
    %1199 = vmatpush2.msra.mxu0 %v1198
    %v1200 = vand.u32 %v109, 4294901760
    %v1201 = vsub.f32 %v109, %v1200
    %v1202 = vand.u32 %v1201, 4294901760
    %1203 = vmatprep.subr.mxu0 %v1202
    %v1204 = vand.u32 %v108, 4294901760
    %v1205 = vsub.f32 %v108, %v1204
    %v1206 = vand.u32 %v1205, 4294901760
    %1207 = vmatpush2.msra.mxu0 %v1206
    %v1208 = vand.u32 %v107, 4294901760
    %v1209 = vsub.f32 %v107, %v1208
    %v1210 = vand.u32 %v1209, 4294901760
    %1211 = vmatprep.subr.mxu0 %v1210
    %v1212 = vand.u32 %v106, 4294901760
    %v1213 = vsub.f32 %v106, %v1212
    %v1214 = vand.u32 %v1213, 4294901760
    %1215 = vmatpush2.msra.mxu0 %v1214
    %v1216 = vand.u32 %v105, 4294901760
    %v1217 = vsub.f32 %v105, %v1216
    %v1218 = vand.u32 %v1217, 4294901760
    %1219 = vmatprep.subr.mxu0 %v1218
    %v1220 = vand.u32 %v104, 4294901760
    %v1221 = vsub.f32 %v104, %v1220
    %v1222 = vand.u32 %v1221, 4294901760
    %1223 = vmatpush2.msra.mxu0 %v1222
    %v1224 = vand.u32 %v103, 4294901760
    %v1225 = vsub.f32 %v103, %v1224
    %v1226 = vand.u32 %v1225, 4294901760
    %1227 = vmatprep.subr.mxu0 %v1226
    %v1228 = vand.u32 %v102, 4294901760
    %v1229 = vsub.f32 %v102, %v1228
    %v1230 = vand.u32 %v1229, 4294901760
    %1231 = vmatpush2.msra.mxu0 %v1230
    %v1232 = vand.u32 %v101, 4294901760
    %v1233 = vsub.f32 %v101, %v1232
    %v1234 = vand.u32 %v1233, 4294901760
    %1235 = vmatprep.subr.mxu0 %v1234
    %v1236 = vand.u32 %v100, 4294901760
    %v1237 = vsub.f32 %v100, %v1236
    %v1238 = vand.u32 %v1237, 4294901760
    %1239 = vmatpush2.msra.mxu0 %v1238
    %v1240 = vand.u32 %v99, 4294901760
    %v1241 = vsub.f32 %v99, %v1240
    %v1242 = vand.u32 %v1241, 4294901760
    %1243 = vmatprep.subr.mxu0 %v1242
    %v1244 = vand.u32 %v98, 4294901760
    %v1245 = vsub.f32 %v98, %v1244
    %v1246 = vand.u32 %v1245, 4294901760
    %1247 = vmatpush2.msra.mxu0 %v1246
    %v1248 = vand.u32 %v97, 4294901760
    %v1249 = vsub.f32 %v97, %v1248
    %v1250 = vand.u32 %v1249, 4294901760
    %1251 = vmatprep.subr.mxu0 %v1250
    %v1252 = vand.u32 %v96, 4294901760
    %v1253 = vsub.f32 %v96, %v1252
    %v1254 = vand.u32 %v1253, 4294901760
    %1255 = vmatpush2.msra.mxu0 %v1254
    %v1256 = vand.u32 %v95, 4294901760
    %v1257 = vsub.f32 %v95, %v1256
    %v1258 = vand.u32 %v1257, 4294901760
    %1259 = vmatprep.subr.mxu0 %v1258
    %v1260 = vand.u32 %v94, 4294901760
    %v1261 = vsub.f32 %v94, %v1260
    %v1262 = vand.u32 %v1261, 4294901760
    %1263 = vmatpush2.msra.mxu0 %v1262
    %v1264 = vand.u32 %v61, 4294901760
    %1265 = vmatprep.mubr.f32.mxu0 %v1264
    %v1266 = vand.u32 %v60, 4294901760
    %1267 = vmatmul.mubr.f32.gmra.mxu0 %v1266
    %v1268 = vpop.f32.mrf.mxu0
    %v1269 = vadd.f32 %v1004, %v1268
    %v1270 = vpop.f32.mrf.mxu0
    %v1271 = vadd.f32 %v1006, %v1270
    %1272 = vdwg.mxu0
    %v1273 = vand.u32 %v93, 4294901760
    %1274 = vmatprep.subr.mxu0 %v1273
    %v1275 = vand.u32 %v92, 4294901760
    %1276 = vmatpush1.msra.mxu0 %v1275
    %v1277 = vand.u32 %v91, 4294901760
    %1278 = vmatprep.subr.mxu0 %v1277
    %v1279 = vand.u32 %v90, 4294901760
    %1280 = vmatpush1.msra.mxu0 %v1279
    %v1281 = vand.u32 %v89, 4294901760
    %1282 = vmatprep.subr.mxu0 %v1281
    %v1283 = vand.u32 %v88, 4294901760
    %1284 = vmatpush1.msra.mxu0 %v1283
    %v1285 = vand.u32 %v87, 4294901760
    %1286 = vmatprep.subr.mxu0 %v1285
    %v1287 = vand.u32 %v86, 4294901760
    %1288 = vmatpush1.msra.mxu0 %v1287
    %v1289 = vand.u32 %v85, 4294901760
    %1290 = vmatprep.subr.mxu0 %v1289
    %v1291 = vand.u32 %v84, 4294901760
    %1292 = vmatpush1.msra.mxu0 %v1291
    %v1293 = vand.u32 %v83, 4294901760
    %1294 = vmatprep.subr.mxu0 %v1293
    %v1295 = vand.u32 %v82, 4294901760
    %1296 = vmatpush1.msra.mxu0 %v1295
    %v1297 = vand.u32 %v81, 4294901760
    %1298 = vmatprep.subr.mxu0 %v1297
    %v1299 = vand.u32 %v80, 4294901760
    %1300 = vmatpush1.msra.mxu0 %v1299
    %v1301 = vand.u32 %v79, 4294901760
    %1302 = vmatprep.subr.mxu0 %v1301
    %v1303 = vand.u32 %v78, 4294901760
    %1304 = vmatpush1.msra.mxu0 %v1303
    %v1305 = vand.u32 %v77, 4294901760
    %1306 = vmatprep.subr.mxu0 %v1305
    %v1307 = vand.u32 %v76, 4294901760
    %1308 = vmatpush1.msra.mxu0 %v1307
    %v1309 = vand.u32 %v75, 4294901760
    %1310 = vmatprep.subr.mxu0 %v1309
    %v1311 = vand.u32 %v74, 4294901760
    %1312 = vmatpush1.msra.mxu0 %v1311
    %v1313 = vand.u32 %v73, 4294901760
    %1314 = vmatprep.subr.mxu0 %v1313
    %v1315 = vand.u32 %v72, 4294901760
    %1316 = vmatpush1.msra.mxu0 %v1315
    %v1317 = vand.u32 %v71, 4294901760
    %1318 = vmatprep.subr.mxu0 %v1317
    %v1319 = vand.u32 %v70, 4294901760
    %1320 = vmatpush1.msra.mxu0 %v1319
    %v1321 = vand.u32 %v69, 4294901760
    %1322 = vmatprep.subr.mxu0 %v1321
    %v1323 = vand.u32 %v68, 4294901760
    %1324 = vmatpush1.msra.mxu0 %v1323
    %v1325 = vand.u32 %v67, 4294901760
    %1326 = vmatprep.subr.mxu0 %v1325
    %v1327 = vand.u32 %v66, 4294901760
    %1328 = vmatpush1.msra.mxu0 %v1327
    %v1329 = vand.u32 %v65, 4294901760
    %1330 = vmatprep.subr.mxu0 %v1329
    %v1331 = vand.u32 %v64, 4294901760
    %1332 = vmatpush1.msra.mxu0 %v1331
    %v1333 = vand.u32 %v63, 4294901760
    %1334 = vmatprep.subr.mxu0 %v1333
    %v1335 = vand.u32 %v62, 4294901760
    %1336 = vmatpush1.msra.mxu0 %v1335
    %v1337 = vand.u32 %v125, 4294901760
    %1338 = vmatprep.subr.mxu0 %v1337
    %v1339 = vand.u32 %v124, 4294901760
    %1340 = vmatpush2.msra.mxu0 %v1339
    %v1341 = vand.u32 %v123, 4294901760
    %1342 = vmatprep.subr.mxu0 %v1341
    %v1343 = vand.u32 %v122, 4294901760
    %1344 = vmatpush2.msra.mxu0 %v1343
    %v1345 = vand.u32 %v121, 4294901760
    %1346 = vmatprep.subr.mxu0 %v1345
    %v1347 = vand.u32 %v120, 4294901760
    %1348 = vmatpush2.msra.mxu0 %v1347
    %v1349 = vand.u32 %v119, 4294901760
    %1350 = vmatprep.subr.mxu0 %v1349
    %v1351 = vand.u32 %v118, 4294901760
    %1352 = vmatpush2.msra.mxu0 %v1351
    %v1353 = vand.u32 %v117, 4294901760
    %1354 = vmatprep.subr.mxu0 %v1353
    %v1355 = vand.u32 %v116, 4294901760
    %1356 = vmatpush2.msra.mxu0 %v1355
    %v1357 = vand.u32 %v115, 4294901760
    %1358 = vmatprep.subr.mxu0 %v1357
    %v1359 = vand.u32 %v114, 4294901760
    %1360 = vmatpush2.msra.mxu0 %v1359
    %v1361 = vand.u32 %v113, 4294901760
    %1362 = vmatprep.subr.mxu0 %v1361
    %v1363 = vand.u32 %v112, 4294901760
    %1364 = vmatpush2.msra.mxu0 %v1363
    %v1365 = vand.u32 %v111, 4294901760
    %1366 = vmatprep.subr.mxu0 %v1365
    %v1367 = vand.u32 %v110, 4294901760
    %1368 = vmatpush2.msra.mxu0 %v1367
    %v1369 = vand.u32 %v109, 4294901760
    %1370 = vmatprep.subr.mxu0 %v1369
    %v1371 = vand.u32 %v108, 4294901760
    %1372 = vmatpush2.msra.mxu0 %v1371
    %v1373 = vand.u32 %v107, 4294901760
    %1374 = vmatprep.subr.mxu0 %v1373
    %v1375 = vand.u32 %v106, 4294901760
    %1376 = vmatpush2.msra.mxu0 %v1375
    %v1377 = vand.u32 %v105, 4294901760
    %1378 = vmatprep.subr.mxu0 %v1377
    %v1379 = vand.u32 %v104, 4294901760
    %1380 = vmatpush2.msra.mxu0 %v1379
    %v1381 = vand.u32 %v103, 4294901760
    %1382 = vmatprep.subr.mxu0 %v1381
    %v1383 = vand.u32 %v102, 4294901760
    %1384 = vmatpush2.msra.mxu0 %v1383
    %v1385 = vand.u32 %v101, 4294901760
    %1386 = vmatprep.subr.mxu0 %v1385
    %v1387 = vand.u32 %v100, 4294901760
    %1388 = vmatpush2.msra.mxu0 %v1387
    %v1389 = vand.u32 %v99, 4294901760
    %1390 = vmatprep.subr.mxu0 %v1389
    %v1391 = vand.u32 %v98, 4294901760
    %1392 = vmatpush2.msra.mxu0 %v1391
    %v1393 = vand.u32 %v97, 4294901760
    %1394 = vmatprep.subr.mxu0 %v1393
    %v1395 = vand.u32 %v96, 4294901760
    %1396 = vmatpush2.msra.mxu0 %v1395
    %v1397 = vand.u32 %v95, 4294901760
    %1398 = vmatprep.subr.mxu0 %v1397
    %v1399 = vand.u32 %v94, 4294901760
    %1400 = vmatpush2.msra.mxu0 %v1399
    %v1401 = vand.u32 %v61, 4294901760
    %1402 = vmatprep.mubr.f32.mxu0 %v1401
    %v1403 = vand.u32 %v60, 4294901760
    %1404 = vmatmul.mubr.f32.gmra.mxu0 %v1403
    %v1405 = vpop.f32.mrf.mxu0
    %v1406 = vadd.f32 %v1269, %v1405
    %v1407 = vpop.f32.mrf.mxu0
    %v1408 = vadd.f32 %v1271, %v1407
    %1409 = vdwg.mxu0
    %v1410 = vmax.f32 %v1406, 0.0
    %v1411 = vmax.f32 %v1408, 0.0
    %s1412 = sld [smem:[#allocation3 + $0xa]]
    %s1413 = sld [smem:[#allocation3]]
    %v1414 = vstv %s1413
    %v1415 = vmul.f32 %v1414, %v1410
    %v1416 = vmul.f32 %v1414, %v1411
    %v1417 = vmax.f32 %v1415, 0.0
    %v1418 = vmax.f32 %v1416, 0.0
    %v1419 = vstv %s1412
    %v1420 = vmul.f32 %v1419, %v1417
    %v1421 = vmul.f32 %v1419, %v1418
    %s1422 = sld [smem:[#allocation3 + $0xb]]
    %s1423 = sld [smem:[#allocation3 + $0x1]]
    %v1424 = vstv %s1423
    %v1425 = vmul.f32 %v1424, %v1410
    %v1426 = vmul.f32 %v1424, %v1411
    %v1427 = vmax.f32 %v1425, 0.0
    %v1428 = vmax.f32 %v1426, 0.0
    %v1429 = vstv %s1422
    %v1430 = vmul.f32 %v1429, %v1427
    %v1431 = vmul.f32 %v1429, %v1428
    %s1432 = sld [smem:[#allocation3 + $0xc]]
    %s1433 = sld [smem:[#allocation3 + $0x2]]
    %v1434 = vstv %s1433
    %v1435 = vmul.f32 %v1434, %v1410
    %v1436 = vmul.f32 %v1434, %v1411
    %v1437 = vmax.f32 %v1435, 0.0
    %v1438 = vmax.f32 %v1436, 0.0
    %v1439 = vstv %s1432
    %v1440 = vmul.f32 %v1439, %v1437
    %v1441 = vmul.f32 %v1439, %v1438
    %v1442 = vadd.f32 %v1420, %v1440
    %v1443 = vadd.f32 %v1421, %v1441
    %s1444 = sld [smem:[#allocation3 + $0xd]]
    %s1445 = sld [smem:[#allocation3 + $0x3]]
    %v1446 = vstv %s1445
    %v1447 = vmul.f32 %v1446, %v1410
    %v1448 = vmul.f32 %v1446, %v1411
    %v1449 = vmax.f32 %v1447, 0.0
    %v1450 = vmax.f32 %v1448, 0.0
    %v1451 = vstv %s1444
    %v1452 = vmul.f32 %v1451, %v1449
    %v1453 = vmul.f32 %v1451, %v1450
    %v1454 = vadd.f32 %v1430, %v1452
    %v1455 = vadd.f32 %v1431, %v1453
    %s1456 = sld [smem:[#allocation3 + $0xe]]
    %s1457 = sld [smem:[#allocation3 + $0x4]]
    %v1458 = vstv %s1457
    %v1459 = vmul.f32 %v1458, %v1410
    %v1460 = vmul.f32 %v1458, %v1411
    %v1461 = vmax.f32 %v1459, 0.0
    %v1462 = vmax.f32 %v1460, 0.0
    %v1463 = vstv %s1456
    %v1464 = vmul.f32 %v1463, %v1461
    %v1465 = vmul.f32 %v1463, %v1462
    %v1466 = vadd.f32 %v1442, %v1464
    %v1467 = vadd.f32 %v1443, %v1465
    %s1468 = sld [smem:[#allocation3 + $0xf]]
    %s1469 = sld [smem:[#allocation3 + $0x5]]
    %v1470 = vstv %s1469
    %v1471 = vmul.f32 %v1470, %v1410
    %v1472 = vmul.f32 %v1470, %v1411
    %v1473 = vmax.f32 %v1471, 0.0
    %v1474 = vmax.f32 %v1472, 0.0
    %v1475 = vstv %s1468
    %v1476 = vmul.f32 %v1475, %v1473
    %v1477 = vmul.f32 %v1475, %v1474
    %v1478 = vadd.f32 %v1454, %v1476
    %v1479 = vadd.f32 %v1455, %v1477
    %s1480 = sld [smem:[#allocation3 + $0x10]]
    %s1481 = sld [smem:[#allocation3 + $0x6]]
    %v1482 = vstv %s1481
    %v1483 = vmul.f32 %v1482, %v1410
    %v1484 = vmul.f32 %v1482, %v1411
    %v1485 = vmax.f32 %v1483, 0.0
    %v1486 = vmax.f32 %v1484, 0.0
    %v1487 = vstv %s1480
    %v1488 = vmul.f32 %v1487, %v1485
    %v1489 = vmul.f32 %v1487, %v1486
    %v1490 = vadd.f32 %v1466, %v1488
    %v1491 = vadd.f32 %v1467, %v1489
    %s1492 = sld [smem:[#allocation3 + $0x11]]
    %s1493 = sld [smem:[#allocation3 + $0x7]]
    %v1494 = vstv %s1493
    %v1495 = vmul.f32 %v1494, %v1410
    %v1496 = vmul.f32 %v1494, %v1411
    %v1497 = vmax.f32 %v1495, 0.0
    %v1498 = vmax.f32 %v1496, 0.0
    %v1499 = vstv %s1492
    %v1500 = vmul.f32 %v1499, %v1497
    %v1501 = vmul.f32 %v1499, %v1498
    %v1502 = vadd.f32 %v1478, %v1500
    %v1503 = vadd.f32 %v1479, %v1501
    %s1504 = sld [smem:[#allocation3 + $0x12]]
    %s1505 = sld [smem:[#allocation3 + $0x8]]
    %v1506 = vstv %s1505
    %v1507 = vmul.f32 %v1506, %v1410
    %v1508 = vmul.f32 %v1506, %v1411
    %v1509 = vmax.f32 %v1507, 0.0
    %v1510 = vmax.f32 %v1508, 0.0
    %v1511 = vstv %s1504
    %v1512 = vmul.f32 %v1511, %v1509
    %v1513 = vmul.f32 %v1511, %v1510
    %v1514 = vadd.f32 %v1490, %v1512
    %v1515 = vadd.f32 %v1491, %v1513
    %s1516 = sld [smem:[#allocation3 + $0x13]]
    %s1517 = sld [smem:[#allocation3 + $0x9]]
    %v1518 = vstv %s1517
    %v1519 = vmul.f32 %v1518, %v1410
    %v1520 = vmul.f32 %v1518, %v1411
    %v1521 = vmax.f32 %v1519, 0.0
    %v1522 = vmax.f32 %v1520, 0.0
    %v1523 = vstv %s1516
    %v1524 = vmul.f32 %v1523, %v1521
    %v1525 = vmul.f32 %v1523, %v1522
    %v1526 = vadd.f32 %v1502, %v1524
    %v1527 = vadd.f32 %v1503, %v1525
    %v1528 = vadd.f32 %v1514, %v1526
    %v1529 = vadd.f32 %v1515, %v1527
    %v1530 = vadd.f32 %v60, %v1528
    %v1531 = vadd.f32 %v61, %v1529
    %v1532 = vtanh.pop %v1530
    %v1533 = vtanh.pop %v1531
    %1534 = vst [vmem:[#allocation10] sm:$0xff] %v1532
    %1535 = vst [vmem:[#allocation10 + $0x8] sm:$0xff] %v1533
    %v1536 = vld [vmem:[#allocation8] sm:$0xff]
    %v1537 = vld [vmem:[#allocation8 + $0x8] sm:$0xff]
    %v1538 = vld [vmem:[#allocation8 + $0x10] sm:$0xff]
    %v1539 = vld [vmem:[#allocation8 + $0x18] sm:$0xff]
    %v1540 = vld [vmem:[#allocation8 + $0x20] sm:$0xff]
    %v1541 = vld [vmem:[#allocation8 + $0x28] sm:$0xff]
    %v1542 = vld [vmem:[#allocation8 + $0x30] sm:$0xff]
    %v1543 = vld [vmem:[#allocation8 + $0x38] sm:$0xff]
    %v1544 = vld [vmem:[#allocation8 + $0x40] sm:$0xff]
    %v1545 = vld [vmem:[#allocation8 + $0x48] sm:$0xff]
    %v1546 = vld [vmem:[#allocation8 + $0x50] sm:$0xff]
    %v1547 = vld [vmem:[#allocation8 + $0x58] sm:$0xff]
    %v1548 = vld [vmem:[#allocation8 + $0x60] sm:$0xff]
    %v1549 = vld [vmem:[#allocation8 + $0x68] sm:$0xff]
    %v1550 = vld [vmem:[#allocation8 + $0x70] sm:$0xff]
    %v1551 = vld [vmem:[#allocation8 + $0x78] sm:$0xff]
    %v1552 = vld [vmem:[#allocation8 + $0x80] sm:$0xff]
    %v1553 = vld [vmem:[#allocation8 + $0x88] sm:$0xff]
    %v1554 = vld [vmem:[#allocation8 + $0x90] sm:$0xff]
    %v1555 = vld [vmem:[#allocation8 + $0x98] sm:$0xff]
    %v1556 = vld [vmem:[#allocation8 + $0xa0] sm:$0xff]
    %v1557 = vld [vmem:[#allocation8 + $0xa8] sm:$0xff]
    %v1558 = vld [vmem:[#allocation8 + $0xb0] sm:$0xff]
    %v1559 = vld [vmem:[#allocation8 + $0xb8] sm:$0xff]
    %v1560 = vld [vmem:[#allocation8 + $0xc0] sm:$0xff]
    %v1561 = vld [vmem:[#allocation8 + $0xc8] sm:$0xff]
    %v1562 = vld [vmem:[#allocation8 + $0xd0] sm:$0xff]
    %v1563 = vld [vmem:[#allocation8 + $0xd8] sm:$0xff]
    %v1564 = vld [vmem:[#allocation8 + $0xe0] sm:$0xff]
    %v1565 = vld [vmem:[#allocation8 + $0xe8] sm:$0xff]
    %v1566 = vld [vmem:[#allocation8 + $0xf0] sm:$0xff]
    %v1567 = vld [vmem:[#allocation8 + $0xf8] sm:$0xff]
    %v1568 = vld [vmem:[#allocation8 + $0x100] sm:$0xff]
    %v1569 = vld [vmem:[#allocation8 + $0x108] sm:$0xff]
    %v1570 = vld [vmem:[#allocation8 + $0x110] sm:$0xff]
    %v1571 = vld [vmem:[#allocation8 + $0x118] sm:$0xff]
    %v1572 = vld [vmem:[#allocation8 + $0x120] sm:$0xff]
    %v1573 = vld [vmem:[#allocation8 + $0x128] sm:$0xff]
    %v1574 = vld [vmem:[#allocation8 + $0x130] sm:$0xff]
    %v1575 = vld [vmem:[#allocation8 + $0x138] sm:$0xff]
    %v1576 = vld [vmem:[#allocation8 + $0x140] sm:$0xff]
    %v1577 = vld [vmem:[#allocation8 + $0x148] sm:$0xff]
    %v1578 = vld [vmem:[#allocation8 + $0x150] sm:$0xff]
    %v1579 = vld [vmem:[#allocation8 + $0x158] sm:$0xff]
    %v1580 = vld [vmem:[#allocation8 + $0x160] sm:$0xff]
    %v1581 = vld [vmem:[#allocation8 + $0x168] sm:$0xff]
    %v1582 = vld [vmem:[#allocation8 + $0x170] sm:$0xff]
    %v1583 = vld [vmem:[#allocation8 + $0x178] sm:$0xff]
    %v1584 = vld [vmem:[#allocation8 + $0x180] sm:$0xff]
    %v1585 = vld [vmem:[#allocation8 + $0x188] sm:$0xff]
    %v1586 = vld [vmem:[#allocation8 + $0x190] sm:$0xff]
    %v1587 = vld [vmem:[#allocation8 + $0x198] sm:$0xff]
    %v1588 = vld [vmem:[#allocation8 + $0x1a0] sm:$0xff]
    %v1589 = vld [vmem:[#allocation8 + $0x1a8] sm:$0xff]
    %v1590 = vld [vmem:[#allocation8 + $0x1b0] sm:$0xff]
    %v1591 = vld [vmem:[#allocation8 + $0x1b8] sm:$0xff]
    %v1592 = vld [vmem:[#allocation8 + $0x1c0] sm:$0xff]
    %v1593 = vld [vmem:[#allocation8 + $0x1c8] sm:$0xff]
    %v1594 = vld [vmem:[#allocation8 + $0x1d0] sm:$0xff]
    %v1595 = vld [vmem:[#allocation8 + $0x1d8] sm:$0xff]
    %v1596 = vld [vmem:[#allocation8 + $0x1e0] sm:$0xff]
    %v1597 = vld [vmem:[#allocation8 + $0x1e8] sm:$0xff]
    %v1598 = vld [vmem:[#allocation8 + $0x1f0] sm:$0xff]
    %v1599 = vld [vmem:[#allocation8 + $0x1f8] sm:$0xff]
    %v1600 = vand.u32 %v1567, 4294901760
    %1601 = vmatprep.subr.mxu0 %v1600
    %v1602 = vand.u32 %v1566, 4294901760
    %1603 = vmatpush1.msra.mxu0 %v1602
    %v1604 = vand.u32 %v1565, 4294901760
    %1605 = vmatprep.subr.mxu0 %v1604
    %v1606 = vand.u32 %v1564, 4294901760
    %1607 = vmatpush1.msra.mxu0 %v1606
    %v1608 = vand.u32 %v1563, 4294901760
    %1609 = vmatprep.subr.mxu0 %v1608
    %v1610 = vand.u32 %v1562, 4294901760
    %1611 = vmatpush1.msra.mxu0 %v1610
    %v1612 = vand.u32 %v1561, 4294901760
    %1613 = vmatprep.subr.mxu0 %v1612
    %v1614 = vand.u32 %v1560, 4294901760
    %1615 = vmatpush1.msra.mxu0 %v1614
    %v1616 = vand.u32 %v1559, 4294901760
    %1617 = vmatprep.subr.mxu0 %v1616
    %v1618 = vand.u32 %v1558, 4294901760
    %1619 = vmatpush1.msra.mxu0 %v1618
    %v1620 = vand.u32 %v1557, 4294901760
    %1621 = vmatprep.subr.mxu0 %v1620
    %v1622 = vand.u32 %v1556, 4294901760
    %1623 = vmatpush1.msra.mxu0 %v1622
    %v1624 = vand.u32 %v1555, 4294901760
    %1625 = vmatprep.subr.mxu0 %v1624
    %v1626 = vand.u32 %v1554, 4294901760
    %1627 = vmatpush1.msra.mxu0 %v1626
    %v1628 = vand.u32 %v1553, 4294901760
    %1629 = vmatprep.subr.mxu0 %v1628
    %v1630 = vand.u32 %v1552, 4294901760
    %1631 = vmatpush1.msra.mxu0 %v1630
    %v1632 = vand.u32 %v1551, 4294901760
    %1633 = vmatprep.subr.mxu0 %v1632
    %v1634 = vand.u32 %v1550, 4294901760
    %1635 = vmatpush1.msra.mxu0 %v1634
    %v1636 = vand.u32 %v1549, 4294901760
    %1637 = vmatprep.subr.mxu0 %v1636
    %v1638 = vand.u32 %v1548, 4294901760
    %1639 = vmatpush1.msra.mxu0 %v1638
    %v1640 = vand.u32 %v1547, 4294901760
    %1641 = vmatprep.subr.mxu0 %v1640
    %v1642 = vand.u32 %v1546, 4294901760
    %1643 = vmatpush1.msra.mxu0 %v1642
    %v1644 = vand.u32 %v1545, 4294901760
    %1645 = vmatprep.subr.mxu0 %v1644
    %v1646 = vand.u32 %v1544, 4294901760
    %1647 = vmatpush1.msra.mxu0 %v1646
    %v1648 = vand.u32 %v1543, 4294901760
    %1649 = vmatprep.subr.mxu0 %v1648
    %v1650 = vand.u32 %v1542, 4294901760
    %1651 = vmatpush1.msra.mxu0 %v1650
    %v1652 = vand.u32 %v1541, 4294901760
    %1653 = vmatprep.subr.mxu0 %v1652
    %v1654 = vand.u32 %v1540, 4294901760
    %1655 = vmatpush1.msra.mxu0 %v1654
    %v1656 = vand.u32 %v1539, 4294901760
    %1657 = vmatprep.subr.mxu0 %v1656
    %v1658 = vand.u32 %v1538, 4294901760
    %1659 = vmatpush1.msra.mxu0 %v1658
    %v1660 = vand.u32 %v1537, 4294901760
    %1661 = vmatprep.subr.mxu0 %v1660
    %v1662 = vand.u32 %v1536, 4294901760
    %1663 = vmatpush1.msra.mxu0 %v1662
    %v1664 = vand.u32 %v1599, 4294901760
    %1665 = vmatprep.subr.mxu0 %v1664
    %v1666 = vand.u32 %v1598, 4294901760
    %1667 = vmatpush2.msra.mxu0 %v1666
    %v1668 = vand.u32 %v1597, 4294901760
    %1669 = vmatprep.subr.mxu0 %v1668
    %v1670 = vand.u32 %v1596, 4294901760
    %1671 = vmatpush2.msra.mxu0 %v1670
    %v1672 = vand.u32 %v1595, 4294901760
    %1673 = vmatprep.subr.mxu0 %v1672
    %v1674 = vand.u32 %v1594, 4294901760
    %1675 = vmatpush2.msra.mxu0 %v1674
    %v1676 = vand.u32 %v1593, 4294901760
    %1677 = vmatprep.subr.mxu0 %v1676
    %v1678 = vand.u32 %v1592, 4294901760
    %1679 = vmatpush2.msra.mxu0 %v1678
    %v1680 = vand.u32 %v1591, 4294901760
    %1681 = vmatprep.subr.mxu0 %v1680
    %v1682 = vand.u32 %v1590, 4294901760
    %1683 = vmatpush2.msra.mxu0 %v1682
    %v1684 = vand.u32 %v1589, 4294901760
    %1685 = vmatprep.subr.mxu0 %v1684
    %v1686 = vand.u32 %v1588, 4294901760
    %1687 = vmatpush2.msra.mxu0 %v1686
    %v1688 = vand.u32 %v1587, 4294901760
    %1689 = vmatprep.subr.mxu0 %v1688
    %v1690 = vand.u32 %v1586, 4294901760
    %1691 = vmatpush2.msra.mxu0 %v1690
    %v1692 = vand.u32 %v1585, 4294901760
    %1693 = vmatprep.subr.mxu0 %v1692
    %v1694 = vand.u32 %v1584, 4294901760
    %1695 = vmatpush2.msra.mxu0 %v1694
    %v1696 = vand.u32 %v1583, 4294901760
    %1697 = vmatprep.subr.mxu0 %v1696
    %v1698 = vand.u32 %v1582, 4294901760
    %1699 = vmatpush2.msra.mxu0 %v1698
    %v1700 = vand.u32 %v1581, 4294901760
    %1701 = vmatprep.subr.mxu0 %v1700
    %v1702 = vand.u32 %v1580, 4294901760
    %1703 = vmatpush2.msra.mxu0 %v1702
    %v1704 = vand.u32 %v1579, 4294901760
    %1705 = vmatprep.subr.mxu0 %v1704
    %v1706 = vand.u32 %v1578, 4294901760
    %1707 = vmatpush2.msra.mxu0 %v1706
    %v1708 = vand.u32 %v1577, 4294901760
    %1709 = vmatprep.subr.mxu0 %v1708
    %v1710 = vand.u32 %v1576, 4294901760
    %1711 = vmatpush2.msra.mxu0 %v1710
    %v1712 = vand.u32 %v1575, 4294901760
    %1713 = vmatprep.subr.mxu0 %v1712
    %v1714 = vand.u32 %v1574, 4294901760
    %1715 = vmatpush2.msra.mxu0 %v1714
    %v1716 = vand.u32 %v1573, 4294901760
    %1717 = vmatprep.subr.mxu0 %v1716
    %v1718 = vand.u32 %v1572, 4294901760
    %1719 = vmatpush2.msra.mxu0 %v1718
    %v1720 = vand.u32 %v1571, 4294901760
    %1721 = vmatprep.subr.mxu0 %v1720
    %v1722 = vand.u32 %v1570, 4294901760
    %1723 = vmatpush2.msra.mxu0 %v1722
    %v1724 = vand.u32 %v1569, 4294901760
    %1725 = vmatprep.subr.mxu0 %v1724
    %v1726 = vand.u32 %v1568, 4294901760
    %1727 = vmatpush2.msra.mxu0 %v1726
    %v1728 = vand.u32 %v1533, 4294901760
    %v1729 = vsub.f32 %v1533, %v1728
    %v1730 = vand.u32 %v1729, 4294901760
    %v1731 = vsub.f32 %v1729, %v1730
    %v1732 = vand.u32 %v1731, 4294901760
    %1733 = vmatprep.mubr.f32.mxu0 %v1732
    %v1734 = vand.u32 %v1532, 4294901760
    %v1735 = vsub.f32 %v1532, %v1734
    %v1736 = vand.u32 %v1735, 4294901760
    %v1737 = vsub.f32 %v1735, %v1736
    %v1738 = vand.u32 %v1737, 4294901760
    %1739 = vmatmul.mubr.f32.gmra.mxu0 %v1738
    %v1740 = vpop.f32.mrf.mxu0
    %v1741 = vadd.f32 0.0, %v1740
    %v1742 = vpop.f32.mrf.mxu0
    %v1743 = vadd.f32 0.0, %v1742
    %1744 = vdwg.mxu0
    %v1745 = vand.u32 %v1567, 4294901760
    %v1746 = vsub.f32 %v1567, %v1745
    %v1747 = vand.u32 %v1746, 4294901760
    %v1748 = vsub.f32 %v1746, %v1747
    %v1749 = vand.u32 %v1748, 4294901760
    %1750 = vmatprep.subr.mxu0 %v1749
    %v1751 = vand.u32 %v1566, 4294901760
    %v1752 = vsub.f32 %v1566, %v1751
    %v1753 = vand.u32 %v1752, 4294901760
    %v1754 = vsub.f32 %v1752, %v1753
    %v1755 = vand.u32 %v1754, 4294901760
    %1756 = vmatpush1.msra.mxu0 %v1755
    %v1757 = vand.u32 %v1565, 4294901760
    %v1758 = vsub.f32 %v1565, %v1757
    %v1759 = vand.u32 %v1758, 4294901760
    %v1760 = vsub.f32 %v1758, %v1759
    %v1761 = vand.u32 %v1760, 4294901760
    %1762 = vmatprep.subr.mxu0 %v1761
    %v1763 = vand.u32 %v1564, 4294901760
    %v1764 = vsub.f32 %v1564, %v1763
    %v1765 = vand.u32 %v1764, 4294901760
    %v1766 = vsub.f32 %v1764, %v1765
    %v1767 = vand.u32 %v1766, 4294901760
    %1768 = vmatpush1.msra.mxu0 %v1767
    %v1769 = vand.u32 %v1563, 4294901760
    %v1770 = vsub.f32 %v1563, %v1769
    %v1771 = vand.u32 %v1770, 4294901760
    %v1772 = vsub.f32 %v1770, %v1771
    %v1773 = vand.u32 %v1772, 4294901760
    %1774 = vmatprep.subr.mxu0 %v1773
    %v1775 = vand.u32 %v1562, 4294901760
    %v1776 = vsub.f32 %v1562, %v1775
    %v1777 = vand.u32 %v1776, 4294901760
    %v1778 = vsub.f32 %v1776, %v1777
    %v1779 = vand.u32 %v1778, 4294901760
    %1780 = vmatpush1.msra.mxu0 %v1779
    %v1781 = vand.u32 %v1561, 4294901760
    %v1782 = vsub.f32 %v1561, %v1781
    %v1783 = vand.u32 %v1782, 4294901760
    %v1784 = vsub.f32 %v1782, %v1783
    %v1785 = vand.u32 %v1784, 4294901760
    %1786 = vmatprep.subr.mxu0 %v1785
    %v1787 = vand.u32 %v1560, 4294901760
    %v1788 = vsub.f32 %v1560, %v1787
    %v1789 = vand.u32 %v1788, 4294901760
    %v1790 = vsub.f32 %v1788, %v1789
    %v1791 = vand.u32 %v1790, 4294901760
    %1792 = vmatpush1.msra.mxu0 %v1791
    %v1793 = vand.u32 %v1559, 4294901760
    %v1794 = vsub.f32 %v1559, %v1793
    %v1795 = vand.u32 %v1794, 4294901760
    %v1796 = vsub.f32 %v1794, %v1795
    %v1797 = vand.u32 %v1796, 4294901760
    %1798 = vmatprep.subr.mxu0 %v1797
    %v1799 = vand.u32 %v1558, 4294901760
    %v1800 = vsub.f32 %v1558, %v1799
    %v1801 = vand.u32 %v1800, 4294901760
    %v1802 = vsub.f32 %v1800, %v1801
    %v1803 = vand.u32 %v1802, 4294901760
    %1804 = vmatpush1.msra.mxu0 %v1803
    %v1805 = vand.u32 %v1557, 4294901760
    %v1806 = vsub.f32 %v1557, %v1805
    %v1807 = vand.u32 %v1806, 4294901760
    %v1808 = vsub.f32 %v1806, %v1807
    %v1809 = vand.u32 %v1808, 4294901760
    %1810 = vmatprep.subr.mxu0 %v1809
    %v1811 = vand.u32 %v1556, 4294901760
    %v1812 = vsub.f32 %v1556, %v1811
    %v1813 = vand.u32 %v1812, 4294901760
    %v1814 = vsub.f32 %v1812, %v1813
    %v1815 = vand.u32 %v1814, 4294901760
    %1816 = vmatpush1.msra.mxu0 %v1815
    %v1817 = vand.u32 %v1555, 4294901760
    %v1818 = vsub.f32 %v1555, %v1817
    %v1819 = vand.u32 %v1818, 4294901760
    %v1820 = vsub.f32 %v1818, %v1819
    %v1821 = vand.u32 %v1820, 4294901760
    %1822 = vmatprep.subr.mxu0 %v1821
    %v1823 = vand.u32 %v1554, 4294901760
    %v1824 = vsub.f32 %v1554, %v1823
    %v1825 = vand.u32 %v1824, 4294901760
    %v1826 = vsub.f32 %v1824, %v1825
    %v1827 = vand.u32 %v1826, 4294901760
    %1828 = vmatpush1.msra.mxu0 %v1827
    %v1829 = vand.u32 %v1553, 4294901760
    %v1830 = vsub.f32 %v1553, %v1829
    %v1831 = vand.u32 %v1830, 4294901760
    %v1832 = vsub.f32 %v1830, %v1831
    %v1833 = vand.u32 %v1832, 4294901760
    %1834 = vmatprep.subr.mxu0 %v1833
    %v1835 = vand.u32 %v1552, 4294901760
    %v1836 = vsub.f32 %v1552, %v1835
    %v1837 = vand.u32 %v1836, 4294901760
    %v1838 = vsub.f32 %v1836, %v1837
    %v1839 = vand.u32 %v1838, 4294901760
    %1840 = vmatpush1.msra.mxu0 %v1839
    %v1841 = vand.u32 %v1551, 4294901760
    %v1842 = vsub.f32 %v1551, %v1841
    %v1843 = vand.u32 %v1842, 4294901760
    %v1844 = vsub.f32 %v1842, %v1843
    %v1845 = vand.u32 %v1844, 4294901760
    %1846 = vmatprep.subr.mxu0 %v1845
    %v1847 = vand.u32 %v1550, 4294901760
    %v1848 = vsub.f32 %v1550, %v1847
    %v1849 = vand.u32 %v1848, 4294901760
    %v1850 = vsub.f32 %v1848, %v1849
    %v1851 = vand.u32 %v1850, 4294901760
    %1852 = vmatpush1.msra.mxu0 %v1851
    %v1853 = vand.u32 %v1549, 4294901760
    %v1854 = vsub.f32 %v1549, %v1853
    %v1855 = vand.u32 %v1854, 4294901760
    %v1856 = vsub.f32 %v1854, %v1855
    %v1857 = vand.u32 %v1856, 4294901760
    %1858 = vmatprep.subr.mxu0 %v1857
    %v1859 = vand.u32 %v1548, 4294901760
    %v1860 = vsub.f32 %v1548, %v1859
    %v1861 = vand.u32 %v1860, 4294901760
    %v1862 = vsub.f32 %v1860, %v1861
    %v1863 = vand.u32 %v1862, 4294901760
    %1864 = vmatpush1.msra.mxu0 %v1863
    %v1865 = vand.u32 %v1547, 4294901760
    %v1866 = vsub.f32 %v1547, %v1865
    %v1867 = vand.u32 %v1866, 4294901760
    %v1868 = vsub.f32 %v1866, %v1867
    %v1869 = vand.u32 %v1868, 4294901760
    %1870 = vmatprep.subr.mxu0 %v1869
    %v1871 = vand.u32 %v1546, 4294901760
    %v1872 = vsub.f32 %v1546, %v1871
    %v1873 = vand.u32 %v1872, 4294901760
    %v1874 = vsub.f32 %v1872, %v1873
    %v1875 = vand.u32 %v1874, 4294901760
    %1876 = vmatpush1.msra.mxu0 %v1875
    %v1877 = vand.u32 %v1545, 4294901760
    %v1878 = vsub.f32 %v1545, %v1877
    %v1879 = vand.u32 %v1878, 4294901760
    %v1880 = vsub.f32 %v1878, %v1879
    %v1881 = vand.u32 %v1880, 4294901760
    %1882 = vmatprep.subr.mxu0 %v1881
    %v1883 = vand.u32 %v1544, 4294901760
    %v1884 = vsub.f32 %v1544, %v1883
    %v1885 = vand.u32 %v1884, 4294901760
    %v1886 = vsub.f32 %v1884, %v1885
    %v1887 = vand.u32 %v1886, 4294901760
    %1888 = vmatpush1.msra.mxu0 %v1887
    %v1889 = vand.u32 %v1543, 4294901760
    %v1890 = vsub.f32 %v1543, %v1889
    %v1891 = vand.u32 %v1890, 4294901760
    %v1892 = vsub.f32 %v1890, %v1891
    %v1893 = vand.u32 %v1892, 4294901760
    %1894 = vmatprep.subr.mxu0 %v1893
    %v1895 = vand.u32 %v1542, 4294901760
    %v1896 = vsub.f32 %v1542, %v1895
    %v1897 = vand.u32 %v1896, 4294901760
    %v1898 = vsub.f32 %v1896, %v1897
    %v1899 = vand.u32 %v1898, 4294901760
    %1900 = vmatpush1.msra.mxu0 %v1899
    %v1901 = vand.u32 %v1541, 4294901760
    %v1902 = vsub.f32 %v1541, %v1901
    %v1903 = vand.u32 %v1902, 4294901760
    %v1904 = vsub.f32 %v1902, %v1903
    %v1905 = vand.u32 %v1904, 4294901760
    %1906 = vmatprep.subr.mxu0 %v1905
    %v1907 = vand.u32 %v1540, 4294901760
    %v1908 = vsub.f32 %v1540, %v1907
    %v1909 = vand.u32 %v1908, 4294901760
    %v1910 = vsub.f32 %v1908, %v1909
    %v1911 = vand.u32 %v1910, 4294901760
    %1912 = vmatpush1.msra.mxu0 %v1911
    %v1913 = vand.u32 %v1539, 4294901760
    %v1914 = vsub.f32 %v1539, %v1913
    %v1915 = vand.u32 %v1914, 4294901760
    %v1916 = vsub.f32 %v1914, %v1915
    %v1917 = vand.u32 %v1916, 4294901760
    %1918 = vmatprep.subr.mxu0 %v1917
    %v1919 = vand.u32 %v1538, 4294901760
    %v1920 = vsub.f32 %v1538, %v1919
    %v1921 = vand.u32 %v1920, 4294901760
    %v1922 = vsub.f32 %v1920, %v1921
    %v1923 = vand.u32 %v1922, 4294901760
    %1924 = vmatpush1.msra.mxu0 %v1923
    %v1925 = vand.u32 %v1537, 4294901760
    %v1926 = vsub.f32 %v1537, %v1925
    %v1927 = vand.u32 %v1926, 4294901760
    %v1928 = vsub.f32 %v1926, %v1927
    %v1929 = vand.u32 %v1928, 4294901760
    %1930 = vmatprep.subr.mxu0 %v1929
    %v1931 = vand.u32 %v1536, 4294901760
    %v1932 = vsub.f32 %v1536, %v1931
    %v1933 = vand.u32 %v1932, 4294901760
    %v1934 = vsub.f32 %v1932, %v1933
    %v1935 = vand.u32 %v1934, 4294901760
    %1936 = vmatpush1.msra.mxu0 %v1935
    %v1937 = vand.u32 %v1599, 4294901760
    %v1938 = vsub.f32 %v1599, %v1937
    %v1939 = vand.u32 %v1938, 4294901760
    %v1940 = vsub.f32 %v1938, %v1939
    %v1941 = vand.u32 %v1940, 4294901760
    %1942 = vmatprep.subr.mxu0 %v1941
    %v1943 = vand.u32 %v1598, 4294901760
    %v1944 = vsub.f32 %v1598, %v1943
    %v1945 = vand.u32 %v1944, 4294901760
    %v1946 = vsub.f32 %v1944, %v1945
    %v1947 = vand.u32 %v1946, 4294901760
    %1948 = vmatpush2.msra.mxu0 %v1947
    %v1949 = vand.u32 %v1597, 4294901760
    %v1950 = vsub.f32 %v1597, %v1949
    %v1951 = vand.u32 %v1950, 4294901760
    %v1952 = vsub.f32 %v1950, %v1951
    %v1953 = vand.u32 %v1952, 4294901760
    %1954 = vmatprep.subr.mxu0 %v1953
    %v1955 = vand.u32 %v1596, 4294901760
    %v1956 = vsub.f32 %v1596, %v1955
    %v1957 = vand.u32 %v1956, 4294901760
    %v1958 = vsub.f32 %v1956, %v1957
    %v1959 = vand.u32 %v1958, 4294901760
    %1960 = vmatpush2.msra.mxu0 %v1959
    %v1961 = vand.u32 %v1595, 4294901760
    %v1962 = vsub.f32 %v1595, %v1961
    %v1963 = vand.u32 %v1962, 4294901760
    %v1964 = vsub.f32 %v1962, %v1963
    %v1965 = vand.u32 %v1964, 4294901760
    %1966 = vmatprep.subr.mxu0 %v1965
    %v1967 = vand.u32 %v1594, 4294901760
    %v1968 = vsub.f32 %v1594, %v1967
    %v1969 = vand.u32 %v1968, 4294901760
    %v1970 = vsub.f32 %v1968, %v1969
    %v1971 = vand.u32 %v1970, 4294901760
    %1972 = vmatpush2.msra.mxu0 %v1971
    %v1973 = vand.u32 %v1593, 4294901760
    %v1974 = vsub.f32 %v1593, %v1973
    %v1975 = vand.u32 %v1974, 4294901760
    %v1976 = vsub.f32 %v1974, %v1975
    %v1977 = vand.u32 %v1976, 4294901760
    %1978 = vmatprep.subr.mxu0 %v1977
    %v1979 = vand.u32 %v1592, 4294901760
    %v1980 = vsub.f32 %v1592, %v1979
    %v1981 = vand.u32 %v1980, 4294901760
    %v1982 = vsub.f32 %v1980, %v1981
    %v1983 = vand.u32 %v1982, 4294901760
    %1984 = vmatpush2.msra.mxu0 %v1983
    %v1985 = vand.u32 %v1591, 4294901760
    %v1986 = vsub.f32 %v1591, %v1985
    %v1987 = vand.u32 %v1986, 4294901760
    %v1988 = vsub.f32 %v1986, %v1987
    %v1989 = vand.u32 %v1988, 4294901760
    %1990 = vmatprep.subr.mxu0 %v1989
    %v1991 = vand.u32 %v1590, 4294901760
    %v1992 = vsub.f32 %v1590, %v1991
    %v1993 = vand.u32 %v1992, 4294901760
    %v1994 = vsub.f32 %v1992, %v1993
    %v1995 = vand.u32 %v1994, 4294901760
    %1996 = vmatpush2.msra.mxu0 %v1995
    %v1997 = vand.u32 %v1589, 4294901760
    %v1998 = vsub.f32 %v1589, %v1997
    %v1999 = vand.u32 %v1998, 4294901760
    %v2000 = vsub.f32 %v1998, %v1999
    %v2001 = vand.u32 %v2000, 4294901760
    %2002 = vmatprep.subr.mxu0 %v2001
    %v2003 = vand.u32 %v1588, 4294901760
    %v2004 = vsub.f32 %v1588, %v2003
    %v2005 = vand.u32 %v2004, 4294901760
    %v2006 = vsub.f32 %v2004, %v2005
    %v2007 = vand.u32 %v2006, 4294901760
    %2008 = vmatpush2.msra.mxu0 %v2007
    %v2009 = vand.u32 %v1587, 4294901760
    %v2010 = vsub.f32 %v1587, %v2009
    %v2011 = vand.u32 %v2010, 4294901760
    %v2012 = vsub.f32 %v2010, %v2011
    %v2013 = vand.u32 %v2012, 4294901760
    %2014 = vmatprep.subr.mxu0 %v2013
    %v2015 = vand.u32 %v1586, 4294901760
    %v2016 = vsub.f32 %v1586, %v2015
    %v2017 = vand.u32 %v2016, 4294901760
    %v2018 = vsub.f32 %v2016, %v2017
    %v2019 = vand.u32 %v2018, 4294901760
    %2020 = vmatpush2.msra.mxu0 %v2019
    %v2021 = vand.u32 %v1585, 4294901760
    %v2022 = vsub.f32 %v1585, %v2021
    %v2023 = vand.u32 %v2022, 4294901760
    %v2024 = vsub.f32 %v2022, %v2023
    %v2025 = vand.u32 %v2024, 4294901760
    %2026 = vmatprep.subr.mxu0 %v2025
    %v2027 = vand.u32 %v1584, 4294901760
    %v2028 = vsub.f32 %v1584, %v2027
    %v2029 = vand.u32 %v2028, 4294901760
    %v2030 = vsub.f32 %v2028, %v2029
    %v2031 = vand.u32 %v2030, 4294901760
    %2032 = vmatpush2.msra.mxu0 %v2031
    %v2033 = vand.u32 %v1583, 4294901760
    %v2034 = vsub.f32 %v1583, %v2033
    %v2035 = vand.u32 %v2034, 4294901760
    %v2036 = vsub.f32 %v2034, %v2035
    %v2037 = vand.u32 %v2036, 4294901760
    %2038 = vmatprep.subr.mxu0 %v2037
    %v2039 = vand.u32 %v1582, 4294901760
    %v2040 = vsub.f32 %v1582, %v2039
    %v2041 = vand.u32 %v2040, 4294901760
    %v2042 = vsub.f32 %v2040, %v2041
    %v2043 = vand.u32 %v2042, 4294901760
    %2044 = vmatpush2.msra.mxu0 %v2043
    %v2045 = vand.u32 %v1581, 4294901760
    %v2046 = vsub.f32 %v1581, %v2045
    %v2047 = vand.u32 %v2046, 4294901760
    %v2048 = vsub.f32 %v2046, %v2047
    %v2049 = vand.u32 %v2048, 4294901760
    %2050 = vmatprep.subr.mxu0 %v2049
    %v2051 = vand.u32 %v1580, 4294901760
    %v2052 = vsub.f32 %v1580, %v2051
    %v2053 = vand.u32 %v2052, 4294901760
    %v2054 = vsub.f32 %v2052, %v2053
    %v2055 = vand.u32 %v2054, 4294901760
    %2056 = vmatpush2.msra.mxu0 %v2055
    %v2057 = vand.u32 %v1579, 4294901760
    %v2058 = vsub.f32 %v1579, %v2057
    %v2059 = vand.u32 %v2058, 4294901760
    %v2060 = vsub.f32 %v2058, %v2059
    %v2061 = vand.u32 %v2060, 4294901760
    %2062 = vmatprep.subr.mxu0 %v2061
    %v2063 = vand.u32 %v1578, 4294901760
    %v2064 = vsub.f32 %v1578, %v2063
    %v2065 = vand.u32 %v2064, 4294901760
    %v2066 = vsub.f32 %v2064, %v2065
    %v2067 = vand.u32 %v2066, 4294901760
    %2068 = vmatpush2.msra.mxu0 %v2067
    %v2069 = vand.u32 %v1577, 4294901760
    %v2070 = vsub.f32 %v1577, %v2069
    %v2071 = vand.u32 %v2070, 4294901760
    %v2072 = vsub.f32 %v2070, %v2071
    %v2073 = vand.u32 %v2072, 4294901760
    %2074 = vmatprep.subr.mxu0 %v2073
    %v2075 = vand.u32 %v1576, 4294901760
    %v2076 = vsub.f32 %v1576, %v2075
    %v2077 = vand.u32 %v2076, 4294901760
    %v2078 = vsub.f32 %v2076, %v2077
    %v2079 = vand.u32 %v2078, 4294901760
    %2080 = vmatpush2.msra.mxu0 %v2079
    %v2081 = vand.u32 %v1575, 4294901760
    %v2082 = vsub.f32 %v1575, %v2081
    %v2083 = vand.u32 %v2082, 4294901760
    %v2084 = vsub.f32 %v2082, %v2083
    %v2085 = vand.u32 %v2084, 4294901760
    %2086 = vmatprep.subr.mxu0 %v2085
    %v2087 = vand.u32 %v1574, 4294901760
    %v2088 = vsub.f32 %v1574, %v2087
    %v2089 = vand.u32 %v2088, 4294901760
    %v2090 = vsub.f32 %v2088, %v2089
    %v2091 = vand.u32 %v2090, 4294901760
    %2092 = vmatpush2.msra.mxu0 %v2091
    %v2093 = vand.u32 %v1573, 4294901760
    %v2094 = vsub.f32 %v1573, %v2093
    %v2095 = vand.u32 %v2094, 4294901760
    %v2096 = vsub.f32 %v2094, %v2095
    %v2097 = vand.u32 %v2096, 4294901760
    %2098 = vmatprep.subr.mxu0 %v2097
    %v2099 = vand.u32 %v1572, 4294901760
    %v2100 = vsub.f32 %v1572, %v2099
    %v2101 = vand.u32 %v2100, 4294901760
    %v2102 = vsub.f32 %v2100, %v2101
    %v2103 = vand.u32 %v2102, 4294901760
    %2104 = vmatpush2.msra.mxu0 %v2103
    %v2105 = vand.u32 %v1571, 4294901760
    %v2106 = vsub.f32 %v1571, %v2105
    %v2107 = vand.u32 %v2106, 4294901760
    %v2108 = vsub.f32 %v2106, %v2107
    %v2109 = vand.u32 %v2108, 4294901760
    %2110 = vmatprep.subr.mxu0 %v2109
    %v2111 = vand.u32 %v1570, 4294901760
    %v2112 = vsub.f32 %v1570, %v2111
    %v2113 = vand.u32 %v2112, 4294901760
    %v2114 = vsub.f32 %v2112, %v2113
    %v2115 = vand.u32 %v2114, 4294901760
    %2116 = vmatpush2.msra.mxu0 %v2115
    %v2117 = vand.u32 %v1569, 4294901760
    %v2118 = vsub.f32 %v1569, %v2117
    %v2119 = vand.u32 %v2118, 4294901760
    %v2120 = vsub.f32 %v2118, %v2119
    %v2121 = vand.u32 %v2120, 4294901760
    %2122 = vmatprep.subr.mxu0 %v2121
    %v2123 = vand.u32 %v1568, 4294901760
    %v2124 = vsub.f32 %v1568, %v2123
    %v2125 = vand.u32 %v2124, 4294901760
    %v2126 = vsub.f32 %v2124, %v2125
    %v2127 = vand.u32 %v2126, 4294901760
    %2128 = vmatpush2.msra.mxu0 %v2127
    %v2129 = vand.u32 %v1533, 4294901760
    %2130 = vmatprep.mubr.f32.mxu0 %v2129
    %v2131 = vand.u32 %v1532, 4294901760
    %2132 = vmatmul.mubr.f32.gmra.mxu0 %v2131
    %v2133 = vpop.f32.mrf.mxu0
    %v2134 = vadd.f32 %v1741, %v2133
    %v2135 = vpop.f32.mrf.mxu0
    %v2136 = vadd.f32 %v1743, %v2135
    %2137 = vdwg.mxu0
    %v2138 = vand.u32 %v1567, 4294901760
    %v2139 = vsub.f32 %v1567, %v2138
    %2140 = vmatprep.subr.mxu0 %v2139
    %v2141 = vand.u32 %v1566, 4294901760
    %v2142 = vsub.f32 %v1566, %v2141
    %2143 = vmatpush1.msra.mxu0 %v2142
    %v2144 = vand.u32 %v1565, 4294901760
    %v2145 = vsub.f32 %v1565, %v2144
    %2146 = vmatprep.subr.mxu0 %v2145
    %v2147 = vand.u32 %v1564, 4294901760
    %v2148 = vsub.f32 %v1564, %v2147
    %2149 = vmatpush1.msra.mxu0 %v2148
    %v2150 = vand.u32 %v1563, 4294901760
    %v2151 = vsub.f32 %v1563, %v2150
    %2152 = vmatprep.subr.mxu0 %v2151
    %v2153 = vand.u32 %v1562, 4294901760
    %v2154 = vsub.f32 %v1562, %v2153
    %2155 = vmatpush1.msra.mxu0 %v2154
    %v2156 = vand.u32 %v1561, 4294901760
    %v2157 = vsub.f32 %v1561, %v2156
    %2158 = vmatprep.subr.mxu0 %v2157
    %v2159 = vand.u32 %v1560, 4294901760
    %v2160 = vsub.f32 %v1560, %v2159
    %2161 = vmatpush1.msra.mxu0 %v2160
    %v2162 = vand.u32 %v1559, 4294901760
    %v2163 = vsub.f32 %v1559, %v2162
    %2164 = vmatprep.subr.mxu0 %v2163
    %v2165 = vand.u32 %v1558, 4294901760
    %v2166 = vsub.f32 %v1558, %v2165
    %2167 = vmatpush1.msra.mxu0 %v2166
    %v2168 = vand.u32 %v1557, 4294901760
    %v2169 = vsub.f32 %v1557, %v2168
    %2170 = vmatprep.subr.mxu0 %v2169
    %v2171 = vand.u32 %v1556, 4294901760
    %v2172 = vsub.f32 %v1556, %v2171
    %2173 = vmatpush1.msra.mxu0 %v2172
    %v2174 = vand.u32 %v1555, 4294901760
    %v2175 = vsub.f32 %v1555, %v2174
    %2176 = vmatprep.subr.mxu0 %v2175
    %v2177 = vand.u32 %v1554, 4294901760
    %v2178 = vsub.f32 %v1554, %v2177
    %2179 = vmatpush1.msra.mxu0 %v2178
    %v2180 = vand.u32 %v1553, 4294901760
    %v2181 = vsub.f32 %v1553, %v2180
    %2182 = vmatprep.subr.mxu0 %v2181
    %v2183 = vand.u32 %v1552, 4294901760
    %v2184 = vsub.f32 %v1552, %v2183
    %2185 = vmatpush1.msra.mxu0 %v2184
    %v2186 = vand.u32 %v1551, 4294901760
    %v2187 = vsub.f32 %v1551, %v2186
    %2188 = vmatprep.subr.mxu0 %v2187
    %v2189 = vand.u32 %v1550, 4294901760
    %v2190 = vsub.f32 %v1550, %v2189
    %2191 = vmatpush1.msra.mxu0 %v2190
    %v2192 = vand.u32 %v1549, 4294901760
    %v2193 = vsub.f32 %v1549, %v2192
    %2194 = vmatprep.subr.mxu0 %v2193
    %v2195 = vand.u32 %v1548, 4294901760
    %v2196 = vsub.f32 %v1548, %v2195
    %2197 = vmatpush1.msra.mxu0 %v2196
    %v2198 = vand.u32 %v1547, 4294901760
    %v2199 = vsub.f32 %v1547, %v2198
    %2200 = vmatprep.subr.mxu0 %v2199
    %v2201 = vand.u32 %v1546, 4294901760
    %v2202 = vsub.f32 %v1546, %v2201
    %2203 = vmatpush1.msra.mxu0 %v2202
    %v2204 = vand.u32 %v1545, 4294901760
    %v2205 = vsub.f32 %v1545, %v2204
    %2206 = vmatprep.subr.mxu0 %v2205
    %v2207 = vand.u32 %v1544, 4294901760
    %v2208 = vsub.f32 %v1544, %v2207
    %2209 = vmatpush1.msra.mxu0 %v2208
    %v2210 = vand.u32 %v1543, 4294901760
    %v2211 = vsub.f32 %v1543, %v2210
    %2212 = vmatprep.subr.mxu0 %v2211
    %v2213 = vand.u32 %v1542, 4294901760
    %v2214 = vsub.f32 %v1542, %v2213
    %2215 = vmatpush1.msra.mxu0 %v2214
    %v2216 = vand.u32 %v1541, 4294901760
    %v2217 = vsub.f32 %v1541, %v2216
    %2218 = vmatprep.subr.mxu0 %v2217
    %v2219 = vand.u32 %v1540, 4294901760
    %v2220 = vsub.f32 %v1540, %v2219
    %2221 = vmatpush1.msra.mxu0 %v2220
    %v2222 = vand.u32 %v1539, 4294901760
    %v2223 = vsub.f32 %v1539, %v2222
    %2224 = vmatprep.subr.mxu0 %v2223
    %v2225 = vand.u32 %v1538, 4294901760
    %v2226 = vsub.f32 %v1538, %v2225
    %2227 = vmatpush1.msra.mxu0 %v2226
    %v2228 = vand.u32 %v1537, 4294901760
    %v2229 = vsub.f32 %v1537, %v2228
    %2230 = vmatprep.subr.mxu0 %v2229
    %v2231 = vand.u32 %v1536, 4294901760
    %v2232 = vsub.f32 %v1536, %v2231
    %2233 = vmatpush1.msra.mxu0 %v2232
    %v2234 = vand.u32 %v1599, 4294901760
    %v2235 = vsub.f32 %v1599, %v2234
    %2236 = vmatprep.subr.mxu0 %v2235
    %v2237 = vand.u32 %v1598, 4294901760
    %v2238 = vsub.f32 %v1598, %v2237
    %2239 = vmatpush2.msra.mxu0 %v2238
    %v2240 = vand.u32 %v1597, 4294901760
    %v2241 = vsub.f32 %v1597, %v2240
    %2242 = vmatprep.subr.mxu0 %v2241
    %v2243 = vand.u32 %v1596, 4294901760
    %v2244 = vsub.f32 %v1596, %v2243
    %2245 = vmatpush2.msra.mxu0 %v2244
    %v2246 = vand.u32 %v1595, 4294901760
    %v2247 = vsub.f32 %v1595, %v2246
    %2248 = vmatprep.subr.mxu0 %v2247
    %v2249 = vand.u32 %v1594, 4294901760
    %v2250 = vsub.f32 %v1594, %v2249
    %2251 = vmatpush2.msra.mxu0 %v2250
    %v2252 = vand.u32 %v1593, 4294901760
    %v2253 = vsub.f32 %v1593, %v2252
    %2254 = vmatprep.subr.mxu0 %v2253
    %v2255 = vand.u32 %v1592, 4294901760
    %v2256 = vsub.f32 %v1592, %v2255
    %2257 = vmatpush2.msra.mxu0 %v2256
    %v2258 = vand.u32 %v1591, 4294901760
    %v2259 = vsub.f32 %v1591, %v2258
    %2260 = vmatprep.subr.mxu0 %v2259
    %v2261 = vand.u32 %v1590, 4294901760
    %v2262 = vsub.f32 %v1590, %v2261
    %2263 = vmatpush2.msra.mxu0 %v2262
    %v2264 = vand.u32 %v1589, 4294901760
    %v2265 = vsub.f32 %v1589, %v2264
    %2266 = vmatprep.subr.mxu0 %v2265
    %v2267 = vand.u32 %v1588, 4294901760
    %v2268 = vsub.f32 %v1588, %v2267
    %2269 = vmatpush2.msra.mxu0 %v2268
    %v2270 = vand.u32 %v1587, 4294901760
    %v2271 = vsub.f32 %v1587, %v2270
    %2272 = vmatprep.subr.mxu0 %v2271
    %v2273 = vand.u32 %v1586, 4294901760
    %v2274 = vsub.f32 %v1586, %v2273
    %2275 = vmatpush2.msra.mxu0 %v2274
    %v2276 = vand.u32 %v1585, 4294901760
    %v2277 = vsub.f32 %v1585, %v2276
    %2278 = vmatprep.subr.mxu0 %v2277
    %v2279 = vand.u32 %v1584, 4294901760
    %v2280 = vsub.f32 %v1584, %v2279
    %2281 = vmatpush2.msra.mxu0 %v2280
    %v2282 = vand.u32 %v1583, 4294901760
    %v2283 = vsub.f32 %v1583, %v2282
    %2284 = vmatprep.subr.mxu0 %v2283
    %v2285 = vand.u32 %v1582, 4294901760
    %v2286 = vsub.f32 %v1582, %v2285
    %2287 = vmatpush2.msra.mxu0 %v2286
    %v2288 = vand.u32 %v1581, 4294901760
    %v2289 = vsub.f32 %v1581, %v2288
    %2290 = vmatprep.subr.mxu0 %v2289
    %v2291 = vand.u32 %v1580, 4294901760
    %v2292 = vsub.f32 %v1580, %v2291
    %2293 = vmatpush2.msra.mxu0 %v2292
    %v2294 = vand.u32 %v1579, 4294901760
    %v2295 = vsub.f32 %v1579, %v2294
    %2296 = vmatprep.subr.mxu0 %v2295
    %v2297 = vand.u32 %v1578, 4294901760
    %v2298 = vsub.f32 %v1578, %v2297
    %2299 = vmatpush2.msra.mxu0 %v2298
    %v2300 = vand.u32 %v1577, 4294901760
    %v2301 = vsub.f32 %v1577, %v2300
    %2302 = vmatprep.subr.mxu0 %v2301
    %v2303 = vand.u32 %v1576, 4294901760
    %v2304 = vsub.f32 %v1576, %v2303
    %2305 = vmatpush2.msra.mxu0 %v2304
    %v2306 = vand.u32 %v1575, 4294901760
    %v2307 = vsub.f32 %v1575, %v2306
    %2308 = vmatprep.subr.mxu0 %v2307
    %v2309 = vand.u32 %v1574, 4294901760
    %v2310 = vsub.f32 %v1574, %v2309
    %2311 = vmatpush2.msra.mxu0 %v2310
    %v2312 = vand.u32 %v1573, 4294901760
    %v2313 = vsub.f32 %v1573, %v2312
    %2314 = vmatprep.subr.mxu0 %v2313
    %v2315 = vand.u32 %v1572, 4294901760
    %v2316 = vsub.f32 %v1572, %v2315
    %2317 = vmatpush2.msra.mxu0 %v2316
    %v2318 = vand.u32 %v1571, 4294901760
    %v2319 = vsub.f32 %v1571, %v2318
    %2320 = vmatprep.subr.mxu0 %v2319
    %v2321 = vand.u32 %v1570, 4294901760
    %v2322 = vsub.f32 %v1570, %v2321
    %2323 = vmatpush2.msra.mxu0 %v2322
    %v2324 = vand.u32 %v1569, 4294901760
    %v2325 = vsub.f32 %v1569, %v2324
    %2326 = vmatprep.subr.mxu0 %v2325
    %v2327 = vand.u32 %v1568, 4294901760
    %v2328 = vsub.f32 %v1568, %v2327
    %2329 = vmatpush2.msra.mxu0 %v2328
    %v2330 = vand.u32 %v1533, 4294901760
    %v2331 = vsub.f32 %v1533, %v2330
    %2332 = vmatprep.mubr.f32.mxu0 %v2331
    %v2333 = vand.u32 %v1532, 4294901760
    %v2334 = vsub.f32 %v1532, %v2333
    %2335 = vmatmul.mubr.f32.gmra.mxu0 %v2334
    %v2336 = vpop.f32.mrf.mxu0
    %v2337 = vadd.f32 %v2134, %v2336
    %v2338 = vpop.f32.mrf.mxu0
    %v2339 = vadd.f32 %v2136, %v2338
    %2340 = vdwg.mxu0
    %v2341 = vand.u32 %v1567, 4294901760
    %2342 = vmatprep.subr.mxu0 %v2341
    %v2343 = vand.u32 %v1566, 4294901760
    %2344 = vmatpush1.msra.mxu0 %v2343
    %v2345 = vand.u32 %v1565, 4294901760
    %2346 = vmatprep.subr.mxu0 %v2345
    %v2347 = vand.u32 %v1564, 4294901760
    %2348 = vmatpush1.msra.mxu0 %v2347
    %v2349 = vand.u32 %v1563, 4294901760
    %2350 = vmatprep.subr.mxu0 %v2349
    %v2351 = vand.u32 %v1562, 4294901760
    %2352 = vmatpush1.msra.mxu0 %v2351
    %v2353 = vand.u32 %v1561, 4294901760
    %2354 = vmatprep.subr.mxu0 %v2353
    %v2355 = vand.u32 %v1560, 4294901760
    %2356 = vmatpush1.msra.mxu0 %v2355
    %v2357 = vand.u32 %v1559, 4294901760
    %2358 = vmatprep.subr.mxu0 %v2357
    %v2359 = vand.u32 %v1558, 4294901760
    %2360 = vmatpush1.msra.mxu0 %v2359
    %v2361 = vand.u32 %v1557, 4294901760
    %2362 = vmatprep.subr.mxu0 %v2361
    %v2363 = vand.u32 %v1556, 4294901760
    %2364 = vmatpush1.msra.mxu0 %v2363
    %v2365 = vand.u32 %v1555, 4294901760
    %2366 = vmatprep.subr.mxu0 %v2365
    %v2367 = vand.u32 %v1554, 4294901760
    %2368 = vmatpush1.msra.mxu0 %v2367
    %v2369 = vand.u32 %v1553, 4294901760
    %2370 = vmatprep.subr.mxu0 %v2369
    %v2371 = vand.u32 %v1552, 4294901760
    %2372 = vmatpush1.msra.mxu0 %v2371
    %v2373 = vand.u32 %v1551, 4294901760
    %2374 = vmatprep.subr.mxu0 %v2373
    %v2375 = vand.u32 %v1550, 4294901760
    %2376 = vmatpush1.msra.mxu0 %v2375
    %v2377 = vand.u32 %v1549, 4294901760
    %2378 = vmatprep.subr.mxu0 %v2377
    %v2379 = vand.u32 %v1548, 4294901760
    %2380 = vmatpush1.msra.mxu0 %v2379
    %v2381 = vand.u32 %v1547, 4294901760
    %2382 = vmatprep.subr.mxu0 %v2381
    %v2383 = vand.u32 %v1546, 4294901760
    %2384 = vmatpush1.msra.mxu0 %v2383
    %v2385 = vand.u32 %v1545, 4294901760
    %2386 = vmatprep.subr.mxu0 %v2385
    %v2387 = vand.u32 %v1544, 4294901760
    %2388 = vmatpush1.msra.mxu0 %v2387
    %v2389 = vand.u32 %v1543, 4294901760
    %2390 = vmatprep.subr.mxu0 %v2389
    %v2391 = vand.u32 %v1542, 4294901760
    %2392 = vmatpush1.msra.mxu0 %v2391
    %v2393 = vand.u32 %v1541, 4294901760
    %2394 = vmatprep.subr.mxu0 %v2393
    %v2395 = vand.u32 %v1540, 4294901760
    %2396 = vmatpush1.msra.mxu0 %v2395
    %v2397 = vand.u32 %v1539, 4294901760
    %2398 = vmatprep.subr.mxu0 %v2397
    %v2399 = vand.u32 %v1538, 4294901760
    %2400 = vmatpush1.msra.mxu0 %v2399
    %v2401 = vand.u32 %v1537, 4294901760
    %2402 = vmatprep.subr.mxu0 %v2401
    %v2403 = vand.u32 %v1536, 4294901760
    %2404 = vmatpush1.msra.mxu0 %v2403
    %v2405 = vand.u32 %v1599, 4294901760
    %2406 = vmatprep.subr.mxu0 %v2405
    %v2407 = vand.u32 %v1598, 4294901760
    %2408 = vmatpush2.msra.mxu0 %v2407
    %v2409 = vand.u32 %v1597, 4294901760
    %2410 = vmatprep.subr.mxu0 %v2409
    %v2411 = vand.u32 %v1596, 4294901760
    %2412 = vmatpush2.msra.mxu0 %v2411
    %v2413 = vand.u32 %v1595, 4294901760
    %2414 = vmatprep.subr.mxu0 %v2413
    %v2415 = vand.u32 %v1594, 4294901760
    %2416 = vmatpush2.msra.mxu0 %v2415
    %v2417 = vand.u32 %v1593, 4294901760
    %2418 = vmatprep.subr.mxu0 %v2417
    %v2419 = vand.u32 %v1592, 4294901760
    %2420 = vmatpush2.msra.mxu0 %v2419
    %v2421 = vand.u32 %v1591, 4294901760
    %2422 = vmatprep.subr.mxu0 %v2421
    %v2423 = vand.u32 %v1590, 4294901760
    %2424 = vmatpush2.msra.mxu0 %v2423
    %v2425 = vand.u32 %v1589, 4294901760
    %2426 = vmatprep.subr.mxu0 %v2425
    %v2427 = vand.u32 %v1588, 4294901760
    %2428 = vmatpush2.msra.mxu0 %v2427
    %v2429 = vand.u32 %v1587, 4294901760
    %2430 = vmatprep.subr.mxu0 %v2429
    %v2431 = vand.u32 %v1586, 4294901760
    %2432 = vmatpush2.msra.mxu0 %v2431
    %v2433 = vand.u32 %v1585, 4294901760
    %2434 = vmatprep.subr.mxu0 %v2433
    %v2435 = vand.u32 %v1584, 4294901760
    %2436 = vmatpush2.msra.mxu0 %v2435
    %v2437 = vand.u32 %v1583, 4294901760
    %2438 = vmatprep.subr.mxu0 %v2437
    %v2439 = vand.u32 %v1582, 4294901760
    %2440 = vmatpush2.msra.mxu0 %v2439
    %v2441 = vand.u32 %v1581, 4294901760
    %2442 = vmatprep.subr.mxu0 %v2441
    %v2443 = vand.u32 %v1580, 4294901760
    %2444 = vmatpush2.msra.mxu0 %v2443
    %v2445 = vand.u32 %v1579, 4294901760
    %2446 = vmatprep.subr.mxu0 %v2445
    %v2447 = vand.u32 %v1578, 4294901760
    %2448 = vmatpush2.msra.mxu0 %v2447
    %v2449 = vand.u32 %v1577, 4294901760
    %2450 = vmatprep.subr.mxu0 %v2449
    %v2451 = vand.u32 %v1576, 4294901760
    %2452 = vmatpush2.msra.mxu0 %v2451
    %v2453 = vand.u32 %v1575, 4294901760
    %2454 = vmatprep.subr.mxu0 %v2453
    %v2455 = vand.u32 %v1574, 4294901760
    %2456 = vmatpush2.msra.mxu0 %v2455
    %v2457 = vand.u32 %v1573, 4294901760
    %2458 = vmatprep.subr.mxu0 %v2457
    %v2459 = vand.u32 %v1572, 4294901760
    %2460 = vmatpush2.msra.mxu0 %v2459
    %v2461 = vand.u32 %v1571, 4294901760
    %2462 = vmatprep.subr.mxu0 %v2461
    %v2463 = vand.u32 %v1570, 4294901760
    %2464 = vmatpush2.msra.mxu0 %v2463
    %v2465 = vand.u32 %v1569, 4294901760
    %2466 = vmatprep.subr.mxu0 %v2465
    %v2467 = vand.u32 %v1568, 4294901760
    %2468 = vmatpush2.msra.mxu0 %v2467
    %v2469 = vand.u32 %v1533, 4294901760
    %v2470 = vsub.f32 %v1533, %v2469
    %v2471 = vand.u32 %v2470, 4294901760
    %2472 = vmatprep.mubr.f32.mxu0 %v2471
    %v2473 = vand.u32 %v1532, 4294901760
    %v2474 = vsub.f32 %v1532, %v2473
    %v2475 = vand.u32 %v2474, 4294901760
    %2476 = vmatmul.mubr.f32.gmra.mxu0 %v2475
    %v2477 = vpop.f32.mrf.mxu0
    %v2478 = vadd.f32 %v2337, %v2477
    %v2479 = vpop.f32.mrf.mxu0
    %v2480 = vadd.f32 %v2339, %v2479
    %2481 = vdwg.mxu0
    %v2482 = vand.u32 %v1567, 4294901760
    %v2483 = vsub.f32 %v1567, %v2482
    %v2484 = vand.u32 %v2483, 4294901760
    %2485 = vmatprep.subr.mxu0 %v2484
    %v2486 = vand.u32 %v1566, 4294901760
    %v2487 = vsub.f32 %v1566, %v2486
    %v2488 = vand.u32 %v2487, 4294901760
    %2489 = vmatpush1.msra.mxu0 %v2488
    %v2490 = vand.u32 %v1565, 4294901760
    %v2491 = vsub.f32 %v1565, %v2490
    %v2492 = vand.u32 %v2491, 4294901760
    %2493 = vmatprep.subr.mxu0 %v2492
    %v2494 = vand.u32 %v1564, 4294901760
    %v2495 = vsub.f32 %v1564, %v2494
    %v2496 = vand.u32 %v2495, 4294901760
    %2497 = vmatpush1.msra.mxu0 %v2496
    %v2498 = vand.u32 %v1563, 4294901760
    %v2499 = vsub.f32 %v1563, %v2498
    %v2500 = vand.u32 %v2499, 4294901760
    %2501 = vmatprep.subr.mxu0 %v2500
    %v2502 = vand.u32 %v1562, 4294901760
    %v2503 = vsub.f32 %v1562, %v2502
    %v2504 = vand.u32 %v2503, 4294901760
    %2505 = vmatpush1.msra.mxu0 %v2504
    %v2506 = vand.u32 %v1561, 4294901760
    %v2507 = vsub.f32 %v1561, %v2506
    %v2508 = vand.u32 %v2507, 4294901760
    %2509 = vmatprep.subr.mxu0 %v2508
    %v2510 = vand.u32 %v1560, 4294901760
    %v2511 = vsub.f32 %v1560, %v2510
    %v2512 = vand.u32 %v2511, 4294901760
    %2513 = vmatpush1.msra.mxu0 %v2512
    %v2514 = vand.u32 %v1559, 4294901760
    %v2515 = vsub.f32 %v1559, %v2514
    %v2516 = vand.u32 %v2515, 4294901760
    %2517 = vmatprep.subr.mxu0 %v2516
    %v2518 = vand.u32 %v1558, 4294901760
    %v2519 = vsub.f32 %v1558, %v2518
    %v2520 = vand.u32 %v2519, 4294901760
    %2521 = vmatpush1.msra.mxu0 %v2520
    %v2522 = vand.u32 %v1557, 4294901760
    %v2523 = vsub.f32 %v1557, %v2522
    %v2524 = vand.u32 %v2523, 4294901760
    %2525 = vmatprep.subr.mxu0 %v2524
    %v2526 = vand.u32 %v1556, 4294901760
    %v2527 = vsub.f32 %v1556, %v2526
    %v2528 = vand.u32 %v2527, 4294901760
    %2529 = vmatpush1.msra.mxu0 %v2528
    %v2530 = vand.u32 %v1555, 4294901760
    %v2531 = vsub.f32 %v1555, %v2530
    %v2532 = vand.u32 %v2531, 4294901760
    %2533 = vmatprep.subr.mxu0 %v2532
    %v2534 = vand.u32 %v1554, 4294901760
    %v2535 = vsub.f32 %v1554, %v2534
    %v2536 = vand.u32 %v2535, 4294901760
    %2537 = vmatpush1.msra.mxu0 %v2536
    %v2538 = vand.u32 %v1553, 4294901760
    %v2539 = vsub.f32 %v1553, %v2538
    %v2540 = vand.u32 %v2539, 4294901760
    %2541 = vmatprep.subr.mxu0 %v2540
    %v2542 = vand.u32 %v1552, 4294901760
    %v2543 = vsub.f32 %v1552, %v2542
    %v2544 = vand.u32 %v2543, 4294901760
    %2545 = vmatpush1.msra.mxu0 %v2544
    %v2546 = vand.u32 %v1551, 4294901760
    %v2547 = vsub.f32 %v1551, %v2546
    %v2548 = vand.u32 %v2547, 4294901760
    %2549 = vmatprep.subr.mxu0 %v2548
    %v2550 = vand.u32 %v1550, 4294901760
    %v2551 = vsub.f32 %v1550, %v2550
    %v2552 = vand.u32 %v2551, 4294901760
    %2553 = vmatpush1.msra.mxu0 %v2552
    %v2554 = vand.u32 %v1549, 4294901760
    %v2555 = vsub.f32 %v1549, %v2554
    %v2556 = vand.u32 %v2555, 4294901760
    %2557 = vmatprep.subr.mxu0 %v2556
    %v2558 = vand.u32 %v1548, 4294901760
    %v2559 = vsub.f32 %v1548, %v2558
    %v2560 = vand.u32 %v2559, 4294901760
    %2561 = vmatpush1.msra.mxu0 %v2560
    %v2562 = vand.u32 %v1547, 4294901760
    %v2563 = vsub.f32 %v1547, %v2562
    %v2564 = vand.u32 %v2563, 4294901760
    %2565 = vmatprep.subr.mxu0 %v2564
    %v2566 = vand.u32 %v1546, 4294901760
    %v2567 = vsub.f32 %v1546, %v2566
    %v2568 = vand.u32 %v2567, 4294901760
    %2569 = vmatpush1.msra.mxu0 %v2568
    %v2570 = vand.u32 %v1545, 4294901760
    %v2571 = vsub.f32 %v1545, %v2570
    %v2572 = vand.u32 %v2571, 4294901760
    %2573 = vmatprep.subr.mxu0 %v2572
    %v2574 = vand.u32 %v1544, 4294901760
    %v2575 = vsub.f32 %v1544, %v2574
    %v2576 = vand.u32 %v2575, 4294901760
    %2577 = vmatpush1.msra.mxu0 %v2576
    %v2578 = vand.u32 %v1543, 4294901760
    %v2579 = vsub.f32 %v1543, %v2578
    %v2580 = vand.u32 %v2579, 4294901760
    %2581 = vmatprep.subr.mxu0 %v2580
    %v2582 = vand.u32 %v1542, 4294901760
    %v2583 = vsub.f32 %v1542, %v2582
    %v2584 = vand.u32 %v2583, 4294901760
    %2585 = vmatpush1.msra.mxu0 %v2584
    %v2586 = vand.u32 %v1541, 4294901760
    %v2587 = vsub.f32 %v1541, %v2586
    %v2588 = vand.u32 %v2587, 4294901760
    %2589 = vmatprep.subr.mxu0 %v2588
    %v2590 = vand.u32 %v1540, 4294901760
    %v2591 = vsub.f32 %v1540, %v2590
    %v2592 = vand.u32 %v2591, 4294901760
    %2593 = vmatpush1.msra.mxu0 %v2592
    %v2594 = vand.u32 %v1539, 4294901760
    %v2595 = vsub.f32 %v1539, %v2594
    %v2596 = vand.u32 %v2595, 4294901760
    %2597 = vmatprep.subr.mxu0 %v2596
    %v2598 = vand.u32 %v1538, 4294901760
    %v2599 = vsub.f32 %v1538, %v2598
    %v2600 = vand.u32 %v2599, 4294901760
    %2601 = vmatpush1.msra.mxu0 %v2600
    %v2602 = vand.u32 %v1537, 4294901760
    %v2603 = vsub.f32 %v1537, %v2602
    %v2604 = vand.u32 %v2603, 4294901760
    %2605 = vmatprep.subr.mxu0 %v2604
    %v2606 = vand.u32 %v1536, 4294901760
    %v2607 = vsub.f32 %v1536, %v2606
    %v2608 = vand.u32 %v2607, 4294901760
    %2609 = vmatpush1.msra.mxu0 %v2608
    %v2610 = vand.u32 %v1599, 4294901760
    %v2611 = vsub.f32 %v1599, %v2610
    %v2612 = vand.u32 %v2611, 4294901760
    %2613 = vmatprep.subr.mxu0 %v2612
    %v2614 = vand.u32 %v1598, 4294901760
    %v2615 = vsub.f32 %v1598, %v2614
    %v2616 = vand.u32 %v2615, 4294901760
    %2617 = vmatpush2.msra.mxu0 %v2616
    %v2618 = vand.u32 %v1597, 4294901760
    %v2619 = vsub.f32 %v1597, %v2618
    %v2620 = vand.u32 %v2619, 4294901760
    %2621 = vmatprep.subr.mxu0 %v2620
    %v2622 = vand.u32 %v1596, 4294901760
    %v2623 = vsub.f32 %v1596, %v2622
    %v2624 = vand.u32 %v2623, 4294901760
    %2625 = vmatpush2.msra.mxu0 %v2624
    %v2626 = vand.u32 %v1595, 4294901760
    %v2627 = vsub.f32 %v1595, %v2626
    %v2628 = vand.u32 %v2627, 4294901760
    %2629 = vmatprep.subr.mxu0 %v2628
    %v2630 = vand.u32 %v1594, 4294901760
    %v2631 = vsub.f32 %v1594, %v2630
    %v2632 = vand.u32 %v2631, 4294901760
    %2633 = vmatpush2.msra.mxu0 %v2632
    %v2634 = vand.u32 %v1593, 4294901760
    %v2635 = vsub.f32 %v1593, %v2634
    %v2636 = vand.u32 %v2635, 4294901760
    %2637 = vmatprep.subr.mxu0 %v2636
    %v2638 = vand.u32 %v1592, 4294901760
    %v2639 = vsub.f32 %v1592, %v2638
    %v2640 = vand.u32 %v2639, 4294901760
    %2641 = vmatpush2.msra.mxu0 %v2640
    %v2642 = vand.u32 %v1591, 4294901760
    %v2643 = vsub.f32 %v1591, %v2642
    %v2644 = vand.u32 %v2643, 4294901760
    %2645 = vmatprep.subr.mxu0 %v2644
    %v2646 = vand.u32 %v1590, 4294901760
    %v2647 = vsub.f32 %v1590, %v2646
    %v2648 = vand.u32 %v2647, 4294901760
    %2649 = vmatpush2.msra.mxu0 %v2648
    %v2650 = vand.u32 %v1589, 4294901760
    %v2651 = vsub.f32 %v1589, %v2650
    %v2652 = vand.u32 %v2651, 4294901760
    %2653 = vmatprep.subr.mxu0 %v2652
    %v2654 = vand.u32 %v1588, 4294901760
    %v2655 = vsub.f32 %v1588, %v2654
    %v2656 = vand.u32 %v2655, 4294901760
    %2657 = vmatpush2.msra.mxu0 %v2656
    %v2658 = vand.u32 %v1587, 4294901760
    %v2659 = vsub.f32 %v1587, %v2658
    %v2660 = vand.u32 %v2659, 4294901760
    %2661 = vmatprep.subr.mxu0 %v2660
    %v2662 = vand.u32 %v1586, 4294901760
    %v2663 = vsub.f32 %v1586, %v2662
    %v2664 = vand.u32 %v2663, 4294901760
    %2665 = vmatpush2.msra.mxu0 %v2664
    %v2666 = vand.u32 %v1585, 4294901760
    %v2667 = vsub.f32 %v1585, %v2666
    %v2668 = vand.u32 %v2667, 4294901760
    %2669 = vmatprep.subr.mxu0 %v2668
    %v2670 = vand.u32 %v1584, 4294901760
    %v2671 = vsub.f32 %v1584, %v2670
    %v2672 = vand.u32 %v2671, 4294901760
    %2673 = vmatpush2.msra.mxu0 %v2672
    %v2674 = vand.u32 %v1583, 4294901760
    %v2675 = vsub.f32 %v1583, %v2674
    %v2676 = vand.u32 %v2675, 4294901760
    %2677 = vmatprep.subr.mxu0 %v2676
    %v2678 = vand.u32 %v1582, 4294901760
    %v2679 = vsub.f32 %v1582, %v2678
    %v2680 = vand.u32 %v2679, 4294901760
    %2681 = vmatpush2.msra.mxu0 %v2680
    %v2682 = vand.u32 %v1581, 4294901760
    %v2683 = vsub.f32 %v1581, %v2682
    %v2684 = vand.u32 %v2683, 4294901760
    %2685 = vmatprep.subr.mxu0 %v2684
    %v2686 = vand.u32 %v1580, 4294901760
    %v2687 = vsub.f32 %v1580, %v2686
    %v2688 = vand.u32 %v2687, 4294901760
    %2689 = vmatpush2.msra.mxu0 %v2688
    %v2690 = vand.u32 %v1579, 4294901760
    %v2691 = vsub.f32 %v1579, %v2690
    %v2692 = vand.u32 %v2691, 4294901760
    %2693 = vmatprep.subr.mxu0 %v2692
    %v2694 = vand.u32 %v1578, 4294901760
    %v2695 = vsub.f32 %v1578, %v2694
    %v2696 = vand.u32 %v2695, 4294901760
    %2697 = vmatpush2.msra.mxu0 %v2696
    %v2698 = vand.u32 %v1577, 4294901760
    %v2699 = vsub.f32 %v1577, %v2698
    %v2700 = vand.u32 %v2699, 4294901760
    %2701 = vmatprep.subr.mxu0 %v2700
    %v2702 = vand.u32 %v1576, 4294901760
    %v2703 = vsub.f32 %v1576, %v2702
    %v2704 = vand.u32 %v2703, 4294901760
    %2705 = vmatpush2.msra.mxu0 %v2704
    %v2706 = vand.u32 %v1575, 4294901760
    %v2707 = vsub.f32 %v1575, %v2706
    %v2708 = vand.u32 %v2707, 4294901760
    %2709 = vmatprep.subr.mxu0 %v2708
    %v2710 = vand.u32 %v1574, 4294901760
    %v2711 = vsub.f32 %v1574, %v2710
    %v2712 = vand.u32 %v2711, 4294901760
    %2713 = vmatpush2.msra.mxu0 %v2712
    %v2714 = vand.u32 %v1573, 4294901760
    %v2715 = vsub.f32 %v1573, %v2714
    %v2716 = vand.u32 %v2715, 4294901760
    %2717 = vmatprep.subr.mxu0 %v2716
    %v2718 = vand.u32 %v1572, 4294901760
    %v2719 = vsub.f32 %v1572, %v2718
    %v2720 = vand.u32 %v2719, 4294901760
    %2721 = vmatpush2.msra.mxu0 %v2720
    %v2722 = vand.u32 %v1571, 4294901760
    %v2723 = vsub.f32 %v1571, %v2722
    %v2724 = vand.u32 %v2723, 4294901760
    %2725 = vmatprep.subr.mxu0 %v2724
    %v2726 = vand.u32 %v1570, 4294901760
    %v2727 = vsub.f32 %v1570, %v2726
    %v2728 = vand.u32 %v2727, 4294901760
    %2729 = vmatpush2.msra.mxu0 %v2728
    %v2730 = vand.u32 %v1569, 4294901760
    %v2731 = vsub.f32 %v1569, %v2730
    %v2732 = vand.u32 %v2731, 4294901760
    %2733 = vmatprep.subr.mxu0 %v2732
    %v2734 = vand.u32 %v1568, 4294901760
    %v2735 = vsub.f32 %v1568, %v2734
    %v2736 = vand.u32 %v2735, 4294901760
    %2737 = vmatpush2.msra.mxu0 %v2736
    %v2738 = vand.u32 %v1533, 4294901760
    %2739 = vmatprep.mubr.f32.mxu0 %v2738
    %v2740 = vand.u32 %v1532, 4294901760
    %2741 = vmatmul.mubr.f32.gmra.mxu0 %v2740
    %v2742 = vpop.f32.mrf.mxu0
    %v2743 = vadd.f32 %v2478, %v2742
    %v2744 = vpop.f32.mrf.mxu0
    %v2745 = vadd.f32 %v2480, %v2744
    %2746 = vdwg.mxu0
    %v2747 = vand.u32 %v1567, 4294901760
    %2748 = vmatprep.subr.mxu0 %v2747
    %v2749 = vand.u32 %v1566, 4294901760
    %2750 = vmatpush1.msra.mxu0 %v2749
    %v2751 = vand.u32 %v1565, 4294901760
    %2752 = vmatprep.subr.mxu0 %v2751
    %v2753 = vand.u32 %v1564, 4294901760
    %2754 = vmatpush1.msra.mxu0 %v2753
    %v2755 = vand.u32 %v1563, 4294901760
    %2756 = vmatprep.subr.mxu0 %v2755
    %v2757 = vand.u32 %v1562, 4294901760
    %2758 = vmatpush1.msra.mxu0 %v2757
    %v2759 = vand.u32 %v1561, 4294901760
    %2760 = vmatprep.subr.mxu0 %v2759
    %v2761 = vand.u32 %v1560, 4294901760
    %2762 = vmatpush1.msra.mxu0 %v2761
    %v2763 = vand.u32 %v1559, 4294901760
    %2764 = vmatprep.subr.mxu0 %v2763
    %v2765 = vand.u32 %v1558, 4294901760
    %2766 = vmatpush1.msra.mxu0 %v2765
    %v2767 = vand.u32 %v1557, 4294901760
    %2768 = vmatprep.subr.mxu0 %v2767
    %v2769 = vand.u32 %v1556, 4294901760
    %2770 = vmatpush1.msra.mxu0 %v2769
    %v2771 = vand.u32 %v1555, 4294901760
    %2772 = vmatprep.subr.mxu0 %v2771
    %v2773 = vand.u32 %v1554, 4294901760
    %2774 = vmatpush1.msra.mxu0 %v2773
    %v2775 = vand.u32 %v1553, 4294901760
    %2776 = vmatprep.subr.mxu0 %v2775
    %v2777 = vand.u32 %v1552, 4294901760
    %2778 = vmatpush1.msra.mxu0 %v2777
    %v2779 = vand.u32 %v1551, 4294901760
    %2780 = vmatprep.subr.mxu0 %v2779
    %v2781 = vand.u32 %v1550, 4294901760
    %2782 = vmatpush1.msra.mxu0 %v2781
    %v2783 = vand.u32 %v1549, 4294901760
    %2784 = vmatprep.subr.mxu0 %v2783
    %v2785 = vand.u32 %v1548, 4294901760
    %2786 = vmatpush1.msra.mxu0 %v2785
    %v2787 = vand.u32 %v1547, 4294901760
    %2788 = vmatprep.subr.mxu0 %v2787
    %v2789 = vand.u32 %v1546, 4294901760
    %2790 = vmatpush1.msra.mxu0 %v2789
    %v2791 = vand.u32 %v1545, 4294901760
    %2792 = vmatprep.subr.mxu0 %v2791
    %v2793 = vand.u32 %v1544, 4294901760
    %2794 = vmatpush1.msra.mxu0 %v2793
    %v2795 = vand.u32 %v1543, 4294901760
    %2796 = vmatprep.subr.mxu0 %v2795
    %v2797 = vand.u32 %v1542, 4294901760
    %2798 = vmatpush1.msra.mxu0 %v2797
    %v2799 = vand.u32 %v1541, 4294901760
    %2800 = vmatprep.subr.mxu0 %v2799
    %v2801 = vand.u32 %v1540, 4294901760
    %2802 = vmatpush1.msra.mxu0 %v2801
    %v2803 = vand.u32 %v1539, 4294901760
    %2804 = vmatprep.subr.mxu0 %v2803
    %v2805 = vand.u32 %v1538, 4294901760
    %2806 = vmatpush1.msra.mxu0 %v2805
    %v2807 = vand.u32 %v1537, 4294901760
    %2808 = vmatprep.subr.mxu0 %v2807
    %v2809 = vand.u32 %v1536, 4294901760
    %2810 = vmatpush1.msra.mxu0 %v2809
    %v2811 = vand.u32 %v1599, 4294901760
    %2812 = vmatprep.subr.mxu0 %v2811
    %v2813 = vand.u32 %v1598, 4294901760
    %2814 = vmatpush2.msra.mxu0 %v2813
    %v2815 = vand.u32 %v1597, 4294901760
    %2816 = vmatprep.subr.mxu0 %v2815
    %v2817 = vand.u32 %v1596, 4294901760
    %2818 = vmatpush2.msra.mxu0 %v2817
    %v2819 = vand.u32 %v1595, 4294901760
    %2820 = vmatprep.subr.mxu0 %v2819
    %v2821 = vand.u32 %v1594, 4294901760
    %2822 = vmatpush2.msra.mxu0 %v2821
    %v2823 = vand.u32 %v1593, 4294901760
    %2824 = vmatprep.subr.mxu0 %v2823
    %v2825 = vand.u32 %v1592, 4294901760
    %2826 = vmatpush2.msra.mxu0 %v2825
    %v2827 = vand.u32 %v1591, 4294901760
    %2828 = vmatprep.subr.mxu0 %v2827
    %v2829 = vand.u32 %v1590, 4294901760
    %2830 = vmatpush2.msra.mxu0 %v2829
    %v2831 = vand.u32 %v1589, 4294901760
    %2832 = vmatprep.subr.mxu0 %v2831
    %v2833 = vand.u32 %v1588, 4294901760
    %2834 = vmatpush2.msra.mxu0 %v2833
    %v2835 = vand.u32 %v1587, 4294901760
    %2836 = vmatprep.subr.mxu0 %v2835
    %v2837 = vand.u32 %v1586, 4294901760
    %2838 = vmatpush2.msra.mxu0 %v2837
    %v2839 = vand.u32 %v1585, 4294901760
    %2840 = vmatprep.subr.mxu0 %v2839
    %v2841 = vand.u32 %v1584, 4294901760
    %2842 = vmatpush2.msra.mxu0 %v2841
    %v2843 = vand.u32 %v1583, 4294901760
    %2844 = vmatprep.subr.mxu0 %v2843
    %v2845 = vand.u32 %v1582, 4294901760
    %2846 = vmatpush2.msra.mxu0 %v2845
    %v2847 = vand.u32 %v1581, 4294901760
    %2848 = vmatprep.subr.mxu0 %v2847
    %v2849 = vand.u32 %v1580, 4294901760
    %2850 = vmatpush2.msra.mxu0 %v2849
    %v2851 = vand.u32 %v1579, 4294901760
    %2852 = vmatprep.subr.mxu0 %v2851
    %v2853 = vand.u32 %v1578, 4294901760
    %2854 = vmatpush2.msra.mxu0 %v2853
    %v2855 = vand.u32 %v1577, 4294901760
    %2856 = vmatprep.subr.mxu0 %v2855
    %v2857 = vand.u32 %v1576, 4294901760
    %2858 = vmatpush2.msra.mxu0 %v2857
    %v2859 = vand.u32 %v1575, 4294901760
    %2860 = vmatprep.subr.mxu0 %v2859
    %v2861 = vand.u32 %v1574, 4294901760
    %2862 = vmatpush2.msra.mxu0 %v2861
    %v2863 = vand.u32 %v1573, 4294901760
    %2864 = vmatprep.subr.mxu0 %v2863
    %v2865 = vand.u32 %v1572, 4294901760
    %2866 = vmatpush2.msra.mxu0 %v2865
    %v2867 = vand.u32 %v1571, 4294901760
    %2868 = vmatprep.subr.mxu0 %v2867
    %v2869 = vand.u32 %v1570, 4294901760
    %2870 = vmatpush2.msra.mxu0 %v2869
    %v2871 = vand.u32 %v1569, 4294901760
    %2872 = vmatprep.subr.mxu0 %v2871
    %v2873 = vand.u32 %v1568, 4294901760
    %2874 = vmatpush2.msra.mxu0 %v2873
    %v2875 = vand.u32 %v1533, 4294901760
    %2876 = vmatprep.mubr.f32.mxu0 %v2875
    %v2877 = vand.u32 %v1532, 4294901760
    %2878 = vmatmul.mubr.f32.gmra.mxu0 %v2877
    %v2879 = vpop.f32.mrf.mxu0
    %v2880 = vadd.f32 %v2743, %v2879
    %v2881 = vpop.f32.mrf.mxu0
    %v2882 = vadd.f32 %v2745, %v2881
    %2883 = vdwg.mxu0
    %v2884 = vmax.f32 %v2880, 0.0
    %v2885 = vmax.f32 %v2882, 0.0
    %s2886 = sld [smem:[#allocation3 + $0xa]]
    %s2887 = sld [smem:[#allocation3]]
    %v2888 = vstv %s2887
    %v2889 = vmul.f32 %v2888, %v2884
    %v2890 = vmul.f32 %v2888, %v2885
    %v2891 = vmax.f32 %v2889, 0.0
    %v2892 = vmax.f32 %v2890, 0.0
    %v2893 = vstv %s2886
    %v2894 = vmul.f32 %v2893, %v2891
    %v2895 = vmul.f32 %v2893, %v2892
    %s2896 = sld [smem:[#allocation3 + $0xb]]
    %s2897 = sld [smem:[#allocation3 + $0x1]]
    %v2898 = vstv %s2897
    %v2899 = vmul.f32 %v2898, %v2884
    %v2900 = vmul.f32 %v2898, %v2885
    %v2901 = vmax.f32 %v2899, 0.0
    %v2902 = vmax.f32 %v2900, 0.0
    %v2903 = vstv %s2896
    %v2904 = vmul.f32 %v2903, %v2901
    %v2905 = vmul.f32 %v2903, %v2902
    %s2906 = sld [smem:[#allocation3 + $0xc]]
    %s2907 = sld [smem:[#allocation3 + $0x2]]
    %v2908 = vstv %s2907
    %v2909 = vmul.f32 %v2908, %v2884
    %v2910 = vmul.f32 %v2908, %v2885
    %v2911 = vmax.f32 %v2909, 0.0
    %v2912 = vmax.f32 %v2910, 0.0
    %v2913 = vstv %s2906
    %v2914 = vmul.f32 %v2913, %v2911
    %v2915 = vmul.f32 %v2913, %v2912
    %v2916 = vadd.f32 %v2894, %v2914
    %v2917 = vadd.f32 %v2895, %v2915
    %s2918 = sld [smem:[#allocation3 + $0xd]]
    %s2919 = sld [smem:[#allocation3 + $0x3]]
    %v2920 = vstv %s2919
    %v2921 = vmul.f32 %v2920, %v2884
    %v2922 = vmul.f32 %v2920, %v2885
    %v2923 = vmax.f32 %v2921, 0.0
    %v2924 = vmax.f32 %v2922, 0.0
    %v2925 = vstv %s2918
    %v2926 = vmul.f32 %v2925, %v2923
    %v2927 = vmul.f32 %v2925, %v2924
    %v2928 = vadd.f32 %v2904, %v2926
    %v2929 = vadd.f32 %v2905, %v2927
    %s2930 = sld [smem:[#allocation3 + $0xe]]
    %s2931 = sld [smem:[#allocation3 + $0x4]]
    %v2932 = vstv %s2931
    %v2933 = vmul.f32 %v2932, %v2884
    %v2934 = vmul.f32 %v2932, %v2885
    %v2935 = vmax.f32 %v2933, 0.0
    %v2936 = vmax.f32 %v2934, 0.0
    %v2937 = vstv %s2930
    %v2938 = vmul.f32 %v2937, %v2935
    %v2939 = vmul.f32 %v2937, %v2936
    %v2940 = vadd.f32 %v2916, %v2938
    %v2941 = vadd.f32 %v2917, %v2939
    %s2942 = sld [smem:[#allocation3 + $0xf]]
    %s2943 = sld [smem:[#allocation3 + $0x5]]
    %v2944 = vstv %s2943
    %v2945 = vmul.f32 %v2944, %v2884
    %v2946 = vmul.f32 %v2944, %v2885
    %v2947 = vmax.f32 %v2945, 0.0
    %v2948 = vmax.f32 %v2946, 0.0
    %v2949 = vstv %s2942
    %v2950 = vmul.f32 %v2949, %v2947
    %v2951 = vmul.f32 %v2949, %v2948
    %v2952 = vadd.f32 %v2928, %v2950
    %v2953 = vadd.f32 %v2929, %v2951
    %s2954 = sld [smem:[#allocation3 + $0x10]]
    %s2955 = sld [smem:[#allocation3 + $0x6]]
    %v2956 = vstv %s2955
    %v2957 = vmul.f32 %v2956, %v2884
    %v2958 = vmul.f32 %v2956, %v2885
    %v2959 = vmax.f32 %v2957, 0.0
    %v2960 = vmax.f32 %v2958, 0.0
    %v2961 = vstv %s2954
    %v2962 = vmul.f32 %v2961, %v2959
    %v2963 = vmul.f32 %v2961, %v2960
    %v2964 = vadd.f32 %v2940, %v2962
    %v2965 = vadd.f32 %v2941, %v2963
    %s2966 = sld [smem:[#allocation3 + $0x11]]
    %s2967 = sld [smem:[#allocation3 + $0x7]]
    %v2968 = vstv %s2967
    %v2969 = vmul.f32 %v2968, %v2884
    %v2970 = vmul.f32 %v2968, %v2885
    %v2971 = vmax.f32 %v2969, 0.0
    %v2972 = vmax.f32 %v2970, 0.0
    %v2973 = vstv %s2966
    %v2974 = vmul.f32 %v2973, %v2971
    %v2975 = vmul.f32 %v2973, %v2972
    %v2976 = vadd.f32 %v2952, %v2974
    %v2977 = vadd.f32 %v2953, %v2975
    %s2978 = sld [smem:[#allocation3 + $0x12]]
    %s2979 = sld [smem:[#allocation3 + $0x8]]
    %v2980 = vstv %s2979
    %v2981 = vmul.f32 %v2980, %v2884
    %v2982 = vmul.f32 %v2980, %v2885
    %v2983 = vmax.f32 %v2981, 0.0
    %v2984 = vmax.f32 %v2982, 0.0
    %v2985 = vstv %s2978
    %v2986 = vmul.f32 %v2985, %v2983
    %v2987 = vmul.f32 %v2985, %v2984
    %v2988 = vadd.f32 %v2964, %v2986
    %v2989 = vadd.f32 %v2965, %v2987
    %s2990 = sld [smem:[#allocation3 + $0x13]]
    %s2991 = sld [smem:[#allocation3 + $0x9]]
    %v2992 = vstv %s2991
    %v2993 = vmul.f32 %v2992, %v2884
    %v2994 = vmul.f32 %v2992, %v2885
    %v2995 = vmax.f32 %v2993, 0.0
    %v2996 = vmax.f32 %v2994, 0.0
    %v2997 = vstv %s2990
    %v2998 = vmul.f32 %v2997, %v2995
    %v2999 = vmul.f32 %v2997, %v2996
    %v3000 = vadd.f32 %v2976, %v2998
    %v3001 = vadd.f32 %v2977, %v2999
    %v3002 = vadd.f32 %v2988, %v3000
    %v3003 = vadd.f32 %v2989, %v3001
    %v3004 = vadd.f32 %v1532, %v3002
    %v3005 = vadd.f32 %v1533, %v3003
    %v3006 = vtanh.pop %v3004
    %v3007 = vtanh.pop %v3005
    %s3008 = scalar_lea.vmem [#allocation10], 16
    %3009 = vst [vmem:[%s3008] sm:$0xff] %v3006
    %3010 = vst [vmem:[%s3008 + $0x8] sm:$0xff] %v3007
    %v3011 = vld [vmem:[#allocation8] sm:$0xff]
    %v3012 = vld [vmem:[#allocation8 + $0x8] sm:$0xff]
    %v3013 = vld [vmem:[#allocation8 + $0x10] sm:$0xff]
    %v3014 = vld [vmem:[#allocation8 + $0x18] sm:$0xff]
    %v3015 = vld [vmem:[#allocation8 + $0x20] sm:$0xff]
    %v3016 = vld [vmem:[#allocation8 + $0x28] sm:$0xff]
    %v3017 = vld [vmem:[#allocation8 + $0x30] sm:$0xff]
    %v3018 = vld [vmem:[#allocation8 + $0x38] sm:$0xff]
    %v3019 = vld [vmem:[#allocation8 + $0x40] sm:$0xff]
    %v3020 = vld [vmem:[#allocation8 + $0x48] sm:$0xff]
    %v3021 = vld [vmem:[#allocation8 + $0x50] sm:$0xff]
    %v3022 = vld [vmem:[#allocation8 + $0x58] sm:$0xff]
    %v3023 = vld [vmem:[#allocation8 + $0x60] sm:$0xff]
    %v3024 = vld [vmem:[#allocation8 + $0x68] sm:$0xff]
    %v3025 = vld [vmem:[#allocation8 + $0x70] sm:$0xff]
    %v3026 = vld [vmem:[#allocation8 + $0x78] sm:$0xff]
    %v3027 = vld [vmem:[#allocation8 + $0x80] sm:$0xff]
    %v3028 = vld [vmem:[#allocation8 + $0x88] sm:$0xff]
    %v3029 = vld [vmem:[#allocation8 + $0x90] sm:$0xff]
    %v3030 = vld [vmem:[#allocation8 + $0x98] sm:$0xff]
    %v3031 = vld [vmem:[#allocation8 + $0xa0] sm:$0xff]
    %v3032 = vld [vmem:[#allocation8 + $0xa8] sm:$0xff]
    %v3033 = vld [vmem:[#allocation8 + $0xb0] sm:$0xff]
    %v3034 = vld [vmem:[#allocation8 + $0xb8] sm:$0xff]
    %v3035 = vld [vmem:[#allocation8 + $0xc0] sm:$0xff]
    %v3036 = vld [vmem:[#allocation8 + $0xc8] sm:$0xff]
    %v3037 = vld [vmem:[#allocation8 + $0xd0] sm:$0xff]
    %v3038 = vld [vmem:[#allocation8 + $0xd8] sm:$0xff]
    %v3039 = vld [vmem:[#allocation8 + $0xe0] sm:$0xff]
    %v3040 = vld [vmem:[#allocation8 + $0xe8] sm:$0xff]
    %v3041 = vld [vmem:[#allocation8 + $0xf0] sm:$0xff]
    %v3042 = vld [vmem:[#allocation8 + $0xf8] sm:$0xff]
    %v3043 = vld [vmem:[#allocation8 + $0x100] sm:$0xff]
    %v3044 = vld [vmem:[#allocation8 + $0x108] sm:$0xff]
    %v3045 = vld [vmem:[#allocation8 + $0x110] sm:$0xff]
    %v3046 = vld [vmem:[#allocation8 + $0x118] sm:$0xff]
    %v3047 = vld [vmem:[#allocation8 + $0x120] sm:$0xff]
    %v3048 = vld [vmem:[#allocation8 + $0x128] sm:$0xff]
    %v3049 = vld [vmem:[#allocation8 + $0x130] sm:$0xff]
    %v3050 = vld [vmem:[#allocation8 + $0x138] sm:$0xff]
    %v3051 = vld [vmem:[#allocation8 + $0x140] sm:$0xff]
    %v3052 = vld [vmem:[#allocation8 + $0x148] sm:$0xff]
    %v3053 = vld [vmem:[#allocation8 + $0x150] sm:$0xff]
    %v3054 = vld [vmem:[#allocation8 + $0x158] sm:$0xff]
    %v3055 = vld [vmem:[#allocation8 + $0x160] sm:$0xff]
    %v3056 = vld [vmem:[#allocation8 + $0x168] sm:$0xff]
    %v3057 = vld [vmem:[#allocation8 + $0x170] sm:$0xff]
    %v3058 = vld [vmem:[#allocation8 + $0x178] sm:$0xff]
    %v3059 = vld [vmem:[#allocation8 + $0x180] sm:$0xff]
    %v3060 = vld [vmem:[#allocation8 + $0x188] sm:$0xff]
    %v3061 = vld [vmem:[#allocation8 + $0x190] sm:$0xff]
    %v3062 = vld [vmem:[#allocation8 + $0x198] sm:$0xff]
    %v3063 = vld [vmem:[#allocation8 + $0x1a0] sm:$0xff]
    %v3064 = vld [vmem:[#allocation8 + $0x1a8] sm:$0xff]
    %v3065 = vld [vmem:[#allocation8 + $0x1b0] sm:$0xff]
    %v3066 = vld [vmem:[#allocation8 + $0x1b8] sm:$0xff]
    %v3067 = vld [vmem:[#allocation8 + $0x1c0] sm:$0xff]
    %v3068 = vld [vmem:[#allocation8 + $0x1c8] sm:$0xff]
    %v3069 = vld [vmem:[#allocation8 + $0x1d0] sm:$0xff]
    %v3070 = vld [vmem:[#allocation8 + $0x1d8] sm:$0xff]
    %v3071 = vld [vmem:[#allocation8 + $0x1e0] sm:$0xff]
    %v3072 = vld [vmem:[#allocation8 + $0x1e8] sm:$0xff]
    %v3073 = vld [vmem:[#allocation8 + $0x1f0] sm:$0xff]
    %v3074 = vld [vmem:[#allocation8 + $0x1f8] sm:$0xff]
    %v3075 = vand.u32 %v3042, 4294901760
    %3076 = vmatprep.subr.mxu0 %v3075
    %v3077 = vand.u32 %v3041, 4294901760
    %3078 = vmatpush1.msra.mxu0 %v3077
    %v3079 = vand.u32 %v3040, 4294901760
    %3080 = vmatprep.subr.mxu0 %v3079
    %v3081 = vand.u32 %v3039, 4294901760
    %3082 = vmatpush1.msra.mxu0 %v3081
    %v3083 = vand.u32 %v3038, 4294901760
    %3084 = vmatprep.subr.mxu0 %v3083
    %v3085 = vand.u32 %v3037, 4294901760
    %3086 = vmatpush1.msra.mxu0 %v3085
    %v3087 = vand.u32 %v3036, 4294901760
    %3088 = vmatprep.subr.mxu0 %v3087
    %v3089 = vand.u32 %v3035, 4294901760
    %3090 = vmatpush1.msra.mxu0 %v3089
    %v3091 = vand.u32 %v3034, 4294901760
    %3092 = vmatprep.subr.mxu0 %v3091
    %v3093 = vand.u32 %v3033, 4294901760
    %3094 = vmatpush1.msra.mxu0 %v3093
    %v3095 = vand.u32 %v3032, 4294901760
    %3096 = vmatprep.subr.mxu0 %v3095
    %v3097 = vand.u32 %v3031, 4294901760
    %3098 = vmatpush1.msra.mxu0 %v3097
    %v3099 = vand.u32 %v3030, 4294901760
    %3100 = vmatprep.subr.mxu0 %v3099
    %v3101 = vand.u32 %v3029, 4294901760
    %3102 = vmatpush1.msra.mxu0 %v3101
    %v3103 = vand.u32 %v3028, 4294901760
    %3104 = vmatprep.subr.mxu0 %v3103
    %v3105 = vand.u32 %v3027, 4294901760
    %3106 = vmatpush1.msra.mxu0 %v3105
    %v3107 = vand.u32 %v3026, 4294901760
    %3108 = vmatprep.subr.mxu0 %v3107
    %v3109 = vand.u32 %v3025, 4294901760
    %3110 = vmatpush1.msra.mxu0 %v3109
    %v3111 = vand.u32 %v3024, 4294901760
    %3112 = vmatprep.subr.mxu0 %v3111
    %v3113 = vand.u32 %v3023, 4294901760
    %3114 = vmatpush1.msra.mxu0 %v3113
    %v3115 = vand.u32 %v3022, 4294901760
    %3116 = vmatprep.subr.mxu0 %v3115
    %v3117 = vand.u32 %v3021, 4294901760
    %3118 = vmatpush1.msra.mxu0 %v3117
    %v3119 = vand.u32 %v3020, 4294901760
    %3120 = vmatprep.subr.mxu0 %v3119
    %v3121 = vand.u32 %v3019, 4294901760
    %3122 = vmatpush1.msra.mxu0 %v3121
    %v3123 = vand.u32 %v3018, 4294901760
    %3124 = vmatprep.subr.mxu0 %v3123
    %v3125 = vand.u32 %v3017, 4294901760
    %3126 = vmatpush1.msra.mxu0 %v3125
    %v3127 = vand.u32 %v3016, 4294901760
    %3128 = vmatprep.subr.mxu0 %v3127
    %v3129 = vand.u32 %v3015, 4294901760
    %3130 = vmatpush1.msra.mxu0 %v3129
    %v3131 = vand.u32 %v3014, 4294901760
    %3132 = vmatprep.subr.mxu0 %v3131
    %v3133 = vand.u32 %v3013, 4294901760
    %3134 = vmatpush1.msra.mxu0 %v3133
    %v3135 = vand.u32 %v3012, 4294901760
    %3136 = vmatprep.subr.mxu0 %v3135
    %v3137 = vand.u32 %v3011, 4294901760
    %3138 = vmatpush1.msra.mxu0 %v3137
    %v3139 = vand.u32 %v3074, 4294901760
    %3140 = vmatprep.subr.mxu0 %v3139
    %v3141 = vand.u32 %v3073, 4294901760
    %3142 = vmatpush2.msra.mxu0 %v3141
    %v3143 = vand.u32 %v3072, 4294901760
    %3144 = vmatprep.subr.mxu0 %v3143
    %v3145 = vand.u32 %v3071, 4294901760
    %3146 = vmatpush2.msra.mxu0 %v3145
    %v3147 = vand.u32 %v3070, 4294901760
    %3148 = vmatprep.subr.mxu0 %v3147
    %v3149 = vand.u32 %v3069, 4294901760
    %3150 = vmatpush2.msra.mxu0 %v3149
    %v3151 = vand.u32 %v3068, 4294901760
    %3152 = vmatprep.subr.mxu0 %v3151
    %v3153 = vand.u32 %v3067, 4294901760
    %3154 = vmatpush2.msra.mxu0 %v3153
    %v3155 = vand.u32 %v3066, 4294901760
    %3156 = vmatprep.subr.mxu0 %v3155
    %v3157 = vand.u32 %v3065, 4294901760
    %3158 = vmatpush2.msra.mxu0 %v3157
    %v3159 = vand.u32 %v3064, 4294901760
    %3160 = vmatprep.subr.mxu0 %v3159
    %v3161 = vand.u32 %v3063, 4294901760
    %3162 = vmatpush2.msra.mxu0 %v3161
    %v3163 = vand.u32 %v3062, 4294901760
    %3164 = vmatprep.subr.mxu0 %v3163
    %v3165 = vand.u32 %v3061, 4294901760
    %3166 = vmatpush2.msra.mxu0 %v3165
    %v3167 = vand.u32 %v3060, 4294901760
    %3168 = vmatprep.subr.mxu0 %v3167
    %v3169 = vand.u32 %v3059, 4294901760
    %3170 = vmatpush2.msra.mxu0 %v3169
    %v3171 = vand.u32 %v3058, 4294901760
    %3172 = vmatprep.subr.mxu0 %v3171
    %v3173 = vand.u32 %v3057, 4294901760
    %3174 = vmatpush2.msra.mxu0 %v3173
    %v3175 = vand.u32 %v3056, 4294901760
    %3176 = vmatprep.subr.mxu0 %v3175
    %v3177 = vand.u32 %v3055, 4294901760
    %3178 = vmatpush2.msra.mxu0 %v3177
    %v3179 = vand.u32 %v3054, 4294901760
    %3180 = vmatprep.subr.mxu0 %v3179
    %v3181 = vand.u32 %v3053, 4294901760
    %3182 = vmatpush2.msra.mxu0 %v3181
    %v3183 = vand.u32 %v3052, 4294901760
    %3184 = vmatprep.subr.mxu0 %v3183
    %v3185 = vand.u32 %v3051, 4294901760
    %3186 = vmatpush2.msra.mxu0 %v3185
    %v3187 = vand.u32 %v3050, 4294901760
    %3188 = vmatprep.subr.mxu0 %v3187
    %v3189 = vand.u32 %v3049, 4294901760
    %3190 = vmatpush2.msra.mxu0 %v3189
    %v3191 = vand.u32 %v3048, 4294901760
    %3192 = vmatprep.subr.mxu0 %v3191
    %v3193 = vand.u32 %v3047, 4294901760
    %3194 = vmatpush2.msra.mxu0 %v3193
    %v3195 = vand.u32 %v3046, 4294901760
    %3196 = vmatprep.subr.mxu0 %v3195
    %v3197 = vand.u32 %v3045, 4294901760
    %3198 = vmatpush2.msra.mxu0 %v3197
    %v3199 = vand.u32 %v3044, 4294901760
    %3200 = vmatprep.subr.mxu0 %v3199
    %v3201 = vand.u32 %v3043, 4294901760
    %3202 = vmatpush2.msra.mxu0 %v3201
    %v3203 = vand.u32 %v3007, 4294901760
    %v3204 = vsub.f32 %v3007, %v3203
    %v3205 = vand.u32 %v3204, 4294901760
    %v3206 = vsub.f32 %v3204, %v3205
    %v3207 = vand.u32 %v3206, 4294901760
    %3208 = vmatprep.mubr.f32.mxu0 %v3207
    %v3209 = vand.u32 %v3006, 4294901760
    %v3210 = vsub.f32 %v3006, %v3209
    %v3211 = vand.u32 %v3210, 4294901760
    %v3212 = vsub.f32 %v3210, %v3211
    %v3213 = vand.u32 %v3212, 4294901760
    %3214 = vmatmul.mubr.f32.gmra.mxu0 %v3213
    %v3215 = vpop.f32.mrf.mxu0
    %v3216 = vadd.f32 0.0, %v3215
    %v3217 = vpop.f32.mrf.mxu0
    %v3218 = vadd.f32 0.0, %v3217
    %3219 = vdwg.mxu0
    %v3220 = vand.u32 %v3042, 4294901760
    %v3221 = vsub.f32 %v3042, %v3220
    %v3222 = vand.u32 %v3221, 4294901760
    %v3223 = vsub.f32 %v3221, %v3222
    %v3224 = vand.u32 %v3223, 4294901760
    %3225 = vmatprep.subr.mxu0 %v3224
    %v3226 = vand.u32 %v3041, 4294901760
    %v3227 = vsub.f32 %v3041, %v3226
    %v3228 = vand.u32 %v3227, 4294901760
    %v3229 = vsub.f32 %v3227, %v3228
    %v3230 = vand.u32 %v3229, 4294901760
    %3231 = vmatpush1.msra.mxu0 %v3230
    %v3232 = vand.u32 %v3040, 4294901760
    %v3233 = vsub.f32 %v3040, %v3232
    %v3234 = vand.u32 %v3233, 4294901760
    %v3235 = vsub.f32 %v3233, %v3234
    %v3236 = vand.u32 %v3235, 4294901760
    %3237 = vmatprep.subr.mxu0 %v3236
    %v3238 = vand.u32 %v3039, 4294901760
    %v3239 = vsub.f32 %v3039, %v3238
    %v3240 = vand.u32 %v3239, 4294901760
    %v3241 = vsub.f32 %v3239, %v3240
    %v3242 = vand.u32 %v3241, 4294901760
    %3243 = vmatpush1.msra.mxu0 %v3242
    %v3244 = vand.u32 %v3038, 4294901760
    %v3245 = vsub.f32 %v3038, %v3244
    %v3246 = vand.u32 %v3245, 4294901760
    %v3247 = vsub.f32 %v3245, %v3246
    %v3248 = vand.u32 %v3247, 4294901760
    %3249 = vmatprep.subr.mxu0 %v3248
    %v3250 = vand.u32 %v3037, 4294901760
    %v3251 = vsub.f32 %v3037, %v3250
    %v3252 = vand.u32 %v3251, 4294901760
    %v3253 = vsub.f32 %v3251, %v3252
    %v3254 = vand.u32 %v3253, 4294901760
    %3255 = vmatpush1.msra.mxu0 %v3254
    %v3256 = vand.u32 %v3036, 4294901760
    %v3257 = vsub.f32 %v3036, %v3256
    %v3258 = vand.u32 %v3257, 4294901760
    %v3259 = vsub.f32 %v3257, %v3258
    %v3260 = vand.u32 %v3259, 4294901760
    %3261 = vmatprep.subr.mxu0 %v3260
    %v3262 = vand.u32 %v3035, 4294901760
    %v3263 = vsub.f32 %v3035, %v3262
    %v3264 = vand.u32 %v3263, 4294901760
    %v3265 = vsub.f32 %v3263, %v3264
    %v3266 = vand.u32 %v3265, 4294901760
    %3267 = vmatpush1.msra.mxu0 %v3266
    %v3268 = vand.u32 %v3034, 4294901760
    %v3269 = vsub.f32 %v3034, %v3268
    %v3270 = vand.u32 %v3269, 4294901760
    %v3271 = vsub.f32 %v3269, %v3270
    %v3272 = vand.u32 %v3271, 4294901760
    %3273 = vmatprep.subr.mxu0 %v3272
    %v3274 = vand.u32 %v3033, 4294901760
    %v3275 = vsub.f32 %v3033, %v3274
    %v3276 = vand.u32 %v3275, 4294901760
    %v3277 = vsub.f32 %v3275, %v3276
    %v3278 = vand.u32 %v3277, 4294901760
    %3279 = vmatpush1.msra.mxu0 %v3278
    %v3280 = vand.u32 %v3032, 4294901760
    %v3281 = vsub.f32 %v3032, %v3280
    %v3282 = vand.u32 %v3281, 4294901760
    %v3283 = vsub.f32 %v3281, %v3282
    %v3284 = vand.u32 %v3283, 4294901760
    %3285 = vmatprep.subr.mxu0 %v3284
    %v3286 = vand.u32 %v3031, 4294901760
    %v3287 = vsub.f32 %v3031, %v3286
    %v3288 = vand.u32 %v3287, 4294901760
    %v3289 = vsub.f32 %v3287, %v3288
    %v3290 = vand.u32 %v3289, 4294901760
    %3291 = vmatpush1.msra.mxu0 %v3290
    %v3292 = vand.u32 %v3030, 4294901760
    %v3293 = vsub.f32 %v3030, %v3292
    %v3294 = vand.u32 %v3293, 4294901760
    %v3295 = vsub.f32 %v3293, %v3294
    %v3296 = vand.u32 %v3295, 4294901760
    %3297 = vmatprep.subr.mxu0 %v3296
    %v3298 = vand.u32 %v3029, 4294901760
    %v3299 = vsub.f32 %v3029, %v3298
    %v3300 = vand.u32 %v3299, 4294901760
    %v3301 = vsub.f32 %v3299, %v3300
    %v3302 = vand.u32 %v3301, 4294901760
    %3303 = vmatpush1.msra.mxu0 %v3302
    %v3304 = vand.u32 %v3028, 4294901760
    %v3305 = vsub.f32 %v3028, %v3304
    %v3306 = vand.u32 %v3305, 4294901760
    %v3307 = vsub.f32 %v3305, %v3306
    %v3308 = vand.u32 %v3307, 4294901760
    %3309 = vmatprep.subr.mxu0 %v3308
    %v3310 = vand.u32 %v3027, 4294901760
    %v3311 = vsub.f32 %v3027, %v3310
    %v3312 = vand.u32 %v3311, 4294901760
    %v3313 = vsub.f32 %v3311, %v3312
    %v3314 = vand.u32 %v3313, 4294901760
    %3315 = vmatpush1.msra.mxu0 %v3314
    %v3316 = vand.u32 %v3026, 4294901760
    %v3317 = vsub.f32 %v3026, %v3316
    %v3318 = vand.u32 %v3317, 4294901760
    %v3319 = vsub.f32 %v3317, %v3318
    %v3320 = vand.u32 %v3319, 4294901760
    %3321 = vmatprep.subr.mxu0 %v3320
    %v3322 = vand.u32 %v3025, 4294901760
    %v3323 = vsub.f32 %v3025, %v3322
    %v3324 = vand.u32 %v3323, 4294901760
    %v3325 = vsub.f32 %v3323, %v3324
    %v3326 = vand.u32 %v3325, 4294901760
    %3327 = vmatpush1.msra.mxu0 %v3326
    %v3328 = vand.u32 %v3024, 4294901760
    %v3329 = vsub.f32 %v3024, %v3328
    %v3330 = vand.u32 %v3329, 4294901760
    %v3331 = vsub.f32 %v3329, %v3330
    %v3332 = vand.u32 %v3331, 4294901760
    %3333 = vmatprep.subr.mxu0 %v3332
    %v3334 = vand.u32 %v3023, 4294901760
    %v3335 = vsub.f32 %v3023, %v3334
    %v3336 = vand.u32 %v3335, 4294901760
    %v3337 = vsub.f32 %v3335, %v3336
    %v3338 = vand.u32 %v3337, 4294901760
    %3339 = vmatpush1.msra.mxu0 %v3338
    %v3340 = vand.u32 %v3022, 4294901760
    %v3341 = vsub.f32 %v3022, %v3340
    %v3342 = vand.u32 %v3341, 4294901760
    %v3343 = vsub.f32 %v3341, %v3342
    %v3344 = vand.u32 %v3343, 4294901760
    %3345 = vmatprep.subr.mxu0 %v3344
    %v3346 = vand.u32 %v3021, 4294901760
    %v3347 = vsub.f32 %v3021, %v3346
    %v3348 = vand.u32 %v3347, 4294901760
    %v3349 = vsub.f32 %v3347, %v3348
    %v3350 = vand.u32 %v3349, 4294901760
    %3351 = vmatpush1.msra.mxu0 %v3350
    %v3352 = vand.u32 %v3020, 4294901760
    %v3353 = vsub.f32 %v3020, %v3352
    %v3354 = vand.u32 %v3353, 4294901760
    %v3355 = vsub.f32 %v3353, %v3354
    %v3356 = vand.u32 %v3355, 4294901760
    %3357 = vmatprep.subr.mxu0 %v3356
    %v3358 = vand.u32 %v3019, 4294901760
    %v3359 = vsub.f32 %v3019, %v3358
    %v3360 = vand.u32 %v3359, 4294901760
    %v3361 = vsub.f32 %v3359, %v3360
    %v3362 = vand.u32 %v3361, 4294901760
    %3363 = vmatpush1.msra.mxu0 %v3362
    %v3364 = vand.u32 %v3018, 4294901760
    %v3365 = vsub.f32 %v3018, %v3364
    %v3366 = vand.u32 %v3365, 4294901760
    %v3367 = vsub.f32 %v3365, %v3366
    %v3368 = vand.u32 %v3367, 4294901760
    %3369 = vmatprep.subr.mxu0 %v3368
    %v3370 = vand.u32 %v3017, 4294901760
    %v3371 = vsub.f32 %v3017, %v3370
    %v3372 = vand.u32 %v3371, 4294901760
    %v3373 = vsub.f32 %v3371, %v3372
    %v3374 = vand.u32 %v3373, 4294901760
    %3375 = vmatpush1.msra.mxu0 %v3374
    %v3376 = vand.u32 %v3016, 4294901760
    %v3377 = vsub.f32 %v3016, %v3376
    %v3378 = vand.u32 %v3377, 4294901760
    %v3379 = vsub.f32 %v3377, %v3378
    %v3380 = vand.u32 %v3379, 4294901760
    %3381 = vmatprep.subr.mxu0 %v3380
    %v3382 = vand.u32 %v3015, 4294901760
    %v3383 = vsub.f32 %v3015, %v3382
    %v3384 = vand.u32 %v3383, 4294901760
    %v3385 = vsub.f32 %v3383, %v3384
    %v3386 = vand.u32 %v3385, 4294901760
    %3387 = vmatpush1.msra.mxu0 %v3386
    %v3388 = vand.u32 %v3014, 4294901760
    %v3389 = vsub.f32 %v3014, %v3388
    %v3390 = vand.u32 %v3389, 4294901760
    %v3391 = vsub.f32 %v3389, %v3390
    %v3392 = vand.u32 %v3391, 4294901760
    %3393 = vmatprep.subr.mxu0 %v3392
    %v3394 = vand.u32 %v3013, 4294901760
    %v3395 = vsub.f32 %v3013, %v3394
    %v3396 = vand.u32 %v3395, 4294901760
    %v3397 = vsub.f32 %v3395, %v3396
    %v3398 = vand.u32 %v3397, 4294901760
    %3399 = vmatpush1.msra.mxu0 %v3398
    %v3400 = vand.u32 %v3012, 4294901760
    %v3401 = vsub.f32 %v3012, %v3400
    %v3402 = vand.u32 %v3401, 4294901760
    %v3403 = vsub.f32 %v3401, %v3402
    %v3404 = vand.u32 %v3403, 4294901760
    %3405 = vmatprep.subr.mxu0 %v3404
    %v3406 = vand.u32 %v3011, 4294901760
    %v3407 = vsub.f32 %v3011, %v3406
    %v3408 = vand.u32 %v3407, 4294901760
    %v3409 = vsub.f32 %v3407, %v3408
    %v3410 = vand.u32 %v3409, 4294901760
    %3411 = vmatpush1.msra.mxu0 %v3410
    %v3412 = vand.u32 %v3074, 4294901760
    %v3413 = vsub.f32 %v3074, %v3412
    %v3414 = vand.u32 %v3413, 4294901760
    %v3415 = vsub.f32 %v3413, %v3414
    %v3416 = vand.u32 %v3415, 4294901760
    %3417 = vmatprep.subr.mxu0 %v3416
    %v3418 = vand.u32 %v3073, 4294901760
    %v3419 = vsub.f32 %v3073, %v3418
    %v3420 = vand.u32 %v3419, 4294901760
    %v3421 = vsub.f32 %v3419, %v3420
    %v3422 = vand.u32 %v3421, 4294901760
    %3423 = vmatpush2.msra.mxu0 %v3422
    %v3424 = vand.u32 %v3072, 4294901760
    %v3425 = vsub.f32 %v3072, %v3424
    %v3426 = vand.u32 %v3425, 4294901760
    %v3427 = vsub.f32 %v3425, %v3426
    %v3428 = vand.u32 %v3427, 4294901760
    %3429 = vmatprep.subr.mxu0 %v3428
    %v3430 = vand.u32 %v3071, 4294901760
    %v3431 = vsub.f32 %v3071, %v3430
    %v3432 = vand.u32 %v3431, 4294901760
    %v3433 = vsub.f32 %v3431, %v3432
    %v3434 = vand.u32 %v3433, 4294901760
    %3435 = vmatpush2.msra.mxu0 %v3434
    %v3436 = vand.u32 %v3070, 4294901760
    %v3437 = vsub.f32 %v3070, %v3436
    %v3438 = vand.u32 %v3437, 4294901760
    %v3439 = vsub.f32 %v3437, %v3438
    %v3440 = vand.u32 %v3439, 4294901760
    %3441 = vmatprep.subr.mxu0 %v3440
    %v3442 = vand.u32 %v3069, 4294901760
    %v3443 = vsub.f32 %v3069, %v3442
    %v3444 = vand.u32 %v3443, 4294901760
    %v3445 = vsub.f32 %v3443, %v3444
    %v3446 = vand.u32 %v3445, 4294901760
    %3447 = vmatpush2.msra.mxu0 %v3446
    %v3448 = vand.u32 %v3068, 4294901760
    %v3449 = vsub.f32 %v3068, %v3448
    %v3450 = vand.u32 %v3449, 4294901760
    %v3451 = vsub.f32 %v3449, %v3450
    %v3452 = vand.u32 %v3451, 4294901760
    %3453 = vmatprep.subr.mxu0 %v3452
    %v3454 = vand.u32 %v3067, 4294901760
    %v3455 = vsub.f32 %v3067, %v3454
    %v3456 = vand.u32 %v3455, 4294901760
    %v3457 = vsub.f32 %v3455, %v3456
    %v3458 = vand.u32 %v3457, 4294901760
    %3459 = vmatpush2.msra.mxu0 %v3458
    %v3460 = vand.u32 %v3066, 4294901760
    %v3461 = vsub.f32 %v3066, %v3460
    %v3462 = vand.u32 %v3461, 4294901760
    %v3463 = vsub.f32 %v3461, %v3462
    %v3464 = vand.u32 %v3463, 4294901760
    %3465 = vmatprep.subr.mxu0 %v3464
    %v3466 = vand.u32 %v3065, 4294901760
    %v3467 = vsub.f32 %v3065, %v3466
    %v3468 = vand.u32 %v3467, 4294901760
    %v3469 = vsub.f32 %v3467, %v3468
    %v3470 = vand.u32 %v3469, 4294901760
    %3471 = vmatpush2.msra.mxu0 %v3470
    %v3472 = vand.u32 %v3064, 4294901760
    %v3473 = vsub.f32 %v3064, %v3472
    %v3474 = vand.u32 %v3473, 4294901760
    %v3475 = vsub.f32 %v3473, %v3474
    %v3476 = vand.u32 %v3475, 4294901760
    %3477 = vmatprep.subr.mxu0 %v3476
    %v3478 = vand.u32 %v3063, 4294901760
    %v3479 = vsub.f32 %v3063, %v3478
    %v3480 = vand.u32 %v3479, 4294901760
    %v3481 = vsub.f32 %v3479, %v3480
    %v3482 = vand.u32 %v3481, 4294901760
    %3483 = vmatpush2.msra.mxu0 %v3482
    %v3484 = vand.u32 %v3062, 4294901760
    %v3485 = vsub.f32 %v3062, %v3484
    %v3486 = vand.u32 %v3485, 4294901760
    %v3487 = vsub.f32 %v3485, %v3486
    %v3488 = vand.u32 %v3487, 4294901760
    %3489 = vmatprep.subr.mxu0 %v3488
    %v3490 = vand.u32 %v3061, 4294901760
    %v3491 = vsub.f32 %v3061, %v3490
    %v3492 = vand.u32 %v3491, 4294901760
    %v3493 = vsub.f32 %v3491, %v3492
    %v3494 = vand.u32 %v3493, 4294901760
    %3495 = vmatpush2.msra.mxu0 %v3494
    %v3496 = vand.u32 %v3060, 4294901760
    %v3497 = vsub.f32 %v3060, %v3496
    %v3498 = vand.u32 %v3497, 4294901760
    %v3499 = vsub.f32 %v3497, %v3498
    %v3500 = vand.u32 %v3499, 4294901760
    %3501 = vmatprep.subr.mxu0 %v3500
    %v3502 = vand.u32 %v3059, 4294901760
    %v3503 = vsub.f32 %v3059, %v3502
    %v3504 = vand.u32 %v3503, 4294901760
    %v3505 = vsub.f32 %v3503, %v3504
    %v3506 = vand.u32 %v3505, 4294901760
    %3507 = vmatpush2.msra.mxu0 %v3506
    %v3508 = vand.u32 %v3058, 4294901760
    %v3509 = vsub.f32 %v3058, %v3508
    %v3510 = vand.u32 %v3509, 4294901760
    %v3511 = vsub.f32 %v3509, %v3510
    %v3512 = vand.u32 %v3511, 4294901760
    %3513 = vmatprep.subr.mxu0 %v3512
    %v3514 = vand.u32 %v3057, 4294901760
    %v3515 = vsub.f32 %v3057, %v3514
    %v3516 = vand.u32 %v3515, 4294901760
    %v3517 = vsub.f32 %v3515, %v3516
    %v3518 = vand.u32 %v3517, 4294901760
    %3519 = vmatpush2.msra.mxu0 %v3518
    %v3520 = vand.u32 %v3056, 4294901760
    %v3521 = vsub.f32 %v3056, %v3520
    %v3522 = vand.u32 %v3521, 4294901760
    %v3523 = vsub.f32 %v3521, %v3522
    %v3524 = vand.u32 %v3523, 4294901760
    %3525 = vmatprep.subr.mxu0 %v3524
    %v3526 = vand.u32 %v3055, 4294901760
    %v3527 = vsub.f32 %v3055, %v3526
    %v3528 = vand.u32 %v3527, 4294901760
    %v3529 = vsub.f32 %v3527, %v3528
    %v3530 = vand.u32 %v3529, 4294901760
    %3531 = vmatpush2.msra.mxu0 %v3530
    %v3532 = vand.u32 %v3054, 4294901760
    %v3533 = vsub.f32 %v3054, %v3532
    %v3534 = vand.u32 %v3533, 4294901760
    %v3535 = vsub.f32 %v3533, %v3534
    %v3536 = vand.u32 %v3535, 4294901760
    %3537 = vmatprep.subr.mxu0 %v3536
    %v3538 = vand.u32 %v3053, 4294901760
    %v3539 = vsub.f32 %v3053, %v3538
    %v3540 = vand.u32 %v3539, 4294901760
    %v3541 = vsub.f32 %v3539, %v3540
    %v3542 = vand.u32 %v3541, 4294901760
    %3543 = vmatpush2.msra.mxu0 %v3542
    %v3544 = vand.u32 %v3052, 4294901760
    %v3545 = vsub.f32 %v3052, %v3544
    %v3546 = vand.u32 %v3545, 4294901760
    %v3547 = vsub.f32 %v3545, %v3546
    %v3548 = vand.u32 %v3547, 4294901760
    %3549 = vmatprep.subr.mxu0 %v3548
    %v3550 = vand.u32 %v3051, 4294901760
    %v3551 = vsub.f32 %v3051, %v3550
    %v3552 = vand.u32 %v3551, 4294901760
    %v3553 = vsub.f32 %v3551, %v3552
    %v3554 = vand.u32 %v3553, 4294901760
    %3555 = vmatpush2.msra.mxu0 %v3554
    %v3556 = vand.u32 %v3050, 4294901760
    %v3557 = vsub.f32 %v3050, %v3556
    %v3558 = vand.u32 %v3557, 4294901760
    %v3559 = vsub.f32 %v3557, %v3558
    %v3560 = vand.u32 %v3559, 4294901760
    %3561 = vmatprep.subr.mxu0 %v3560
    %v3562 = vand.u32 %v3049, 4294901760
    %v3563 = vsub.f32 %v3049, %v3562
    %v3564 = vand.u32 %v3563, 4294901760
    %v3565 = vsub.f32 %v3563, %v3564
    %v3566 = vand.u32 %v3565, 4294901760
    %3567 = vmatpush2.msra.mxu0 %v3566
    %v3568 = vand.u32 %v3048, 4294901760
    %v3569 = vsub.f32 %v3048, %v3568
    %v3570 = vand.u32 %v3569, 4294901760
    %v3571 = vsub.f32 %v3569, %v3570
    %v3572 = vand.u32 %v3571, 4294901760
    %3573 = vmatprep.subr.mxu0 %v3572
    %v3574 = vand.u32 %v3047, 4294901760
    %v3575 = vsub.f32 %v3047, %v3574
    %v3576 = vand.u32 %v3575, 4294901760
    %v3577 = vsub.f32 %v3575, %v3576
    %v3578 = vand.u32 %v3577, 4294901760
    %3579 = vmatpush2.msra.mxu0 %v3578
    %v3580 = vand.u32 %v3046, 4294901760
    %v3581 = vsub.f32 %v3046, %v3580
    %v3582 = vand.u32 %v3581, 4294901760
    %v3583 = vsub.f32 %v3581, %v3582
    %v3584 = vand.u32 %v3583, 4294901760
    %3585 = vmatprep.subr.mxu0 %v3584
    %v3586 = vand.u32 %v3045, 4294901760
    %v3587 = vsub.f32 %v3045, %v3586
    %v3588 = vand.u32 %v3587, 4294901760
    %v3589 = vsub.f32 %v3587, %v3588
    %v3590 = vand.u32 %v3589, 4294901760
    %3591 = vmatpush2.msra.mxu0 %v3590
    %v3592 = vand.u32 %v3044, 4294901760
    %v3593 = vsub.f32 %v3044, %v3592
    %v3594 = vand.u32 %v3593, 4294901760
    %v3595 = vsub.f32 %v3593, %v3594
    %v3596 = vand.u32 %v3595, 4294901760
    %3597 = vmatprep.subr.mxu0 %v3596
    %v3598 = vand.u32 %v3043, 4294901760
    %v3599 = vsub.f32 %v3043, %v3598
    %v3600 = vand.u32 %v3599, 4294901760
    %v3601 = vsub.f32 %v3599, %v3600
    %v3602 = vand.u32 %v3601, 4294901760
    %3603 = vmatpush2.msra.mxu0 %v3602
    %v3604 = vand.u32 %v3007, 4294901760
    %3605 = vmatprep.mubr.f32.mxu0 %v3604
    %v3606 = vand.u32 %v3006, 4294901760
    %3607 = vmatmul.mubr.f32.gmra.mxu0 %v3606
    %v3608 = vpop.f32.mrf.mxu0
    %v3609 = vadd.f32 %v3216, %v3608
    %v3610 = vpop.f32.mrf.mxu0
    %v3611 = vadd.f32 %v3218, %v3610
    %3612 = vdwg.mxu0
    %v3613 = vand.u32 %v3042, 4294901760
    %v3614 = vsub.f32 %v3042, %v3613
    %3615 = vmatprep.subr.mxu0 %v3614
    %v3616 = vand.u32 %v3041, 4294901760
    %v3617 = vsub.f32 %v3041, %v3616
    %3618 = vmatpush1.msra.mxu0 %v3617
    %v3619 = vand.u32 %v3040, 4294901760
    %v3620 = vsub.f32 %v3040, %v3619
    %3621 = vmatprep.subr.mxu0 %v3620
    %v3622 = vand.u32 %v3039, 4294901760
    %v3623 = vsub.f32 %v3039, %v3622
    %3624 = vmatpush1.msra.mxu0 %v3623
    %v3625 = vand.u32 %v3038, 4294901760
    %v3626 = vsub.f32 %v3038, %v3625
    %3627 = vmatprep.subr.mxu0 %v3626
    %v3628 = vand.u32 %v3037, 4294901760
    %v3629 = vsub.f32 %v3037, %v3628
    %3630 = vmatpush1.msra.mxu0 %v3629
    %v3631 = vand.u32 %v3036, 4294901760
    %v3632 = vsub.f32 %v3036, %v3631
    %3633 = vmatprep.subr.mxu0 %v3632
    %v3634 = vand.u32 %v3035, 4294901760
    %v3635 = vsub.f32 %v3035, %v3634
    %3636 = vmatpush1.msra.mxu0 %v3635
    %v3637 = vand.u32 %v3034, 4294901760
    %v3638 = vsub.f32 %v3034, %v3637
    %3639 = vmatprep.subr.mxu0 %v3638
    %v3640 = vand.u32 %v3033, 4294901760
    %v3641 = vsub.f32 %v3033, %v3640
    %3642 = vmatpush1.msra.mxu0 %v3641
    %v3643 = vand.u32 %v3032, 4294901760
    %v3644 = vsub.f32 %v3032, %v3643
    %3645 = vmatprep.subr.mxu0 %v3644
    %v3646 = vand.u32 %v3031, 4294901760
    %v3647 = vsub.f32 %v3031, %v3646
    %3648 = vmatpush1.msra.mxu0 %v3647
    %v3649 = vand.u32 %v3030, 4294901760
    %v3650 = vsub.f32 %v3030, %v3649
    %3651 = vmatprep.subr.mxu0 %v3650
    %v3652 = vand.u32 %v3029, 4294901760
    %v3653 = vsub.f32 %v3029, %v3652
    %3654 = vmatpush1.msra.mxu0 %v3653
    %v3655 = vand.u32 %v3028, 4294901760
    %v3656 = vsub.f32 %v3028, %v3655
    %3657 = vmatprep.subr.mxu0 %v3656
    %v3658 = vand.u32 %v3027, 4294901760
    %v3659 = vsub.f32 %v3027, %v3658
    %3660 = vmatpush1.msra.mxu0 %v3659
    %v3661 = vand.u32 %v3026, 4294901760
    %v3662 = vsub.f32 %v3026, %v3661
    %3663 = vmatprep.subr.mxu0 %v3662
    %v3664 = vand.u32 %v3025, 4294901760
    %v3665 = vsub.f32 %v3025, %v3664
    %3666 = vmatpush1.msra.mxu0 %v3665
    %v3667 = vand.u32 %v3024, 4294901760
    %v3668 = vsub.f32 %v3024, %v3667
    %3669 = vmatprep.subr.mxu0 %v3668
    %v3670 = vand.u32 %v3023, 4294901760
    %v3671 = vsub.f32 %v3023, %v3670
    %3672 = vmatpush1.msra.mxu0 %v3671
    %v3673 = vand.u32 %v3022, 4294901760
    %v3674 = vsub.f32 %v3022, %v3673
    %3675 = vmatprep.subr.mxu0 %v3674
    %v3676 = vand.u32 %v3021, 4294901760
    %v3677 = vsub.f32 %v3021, %v3676
    %3678 = vmatpush1.msra.mxu0 %v3677
    %v3679 = vand.u32 %v3020, 4294901760
    %v3680 = vsub.f32 %v3020, %v3679
    %3681 = vmatprep.subr.mxu0 %v3680
    %v3682 = vand.u32 %v3019, 4294901760
    %v3683 = vsub.f32 %v3019, %v3682
    %3684 = vmatpush1.msra.mxu0 %v3683
    %v3685 = vand.u32 %v3018, 4294901760
    %v3686 = vsub.f32 %v3018, %v3685
    %3687 = vmatprep.subr.mxu0 %v3686
    %v3688 = vand.u32 %v3017, 4294901760
    %v3689 = vsub.f32 %v3017, %v3688
    %3690 = vmatpush1.msra.mxu0 %v3689
    %v3691 = vand.u32 %v3016, 4294901760
    %v3692 = vsub.f32 %v3016, %v3691
    %3693 = vmatprep.subr.mxu0 %v3692
    %v3694 = vand.u32 %v3015, 4294901760
    %v3695 = vsub.f32 %v3015, %v3694
    %3696 = vmatpush1.msra.mxu0 %v3695
    %v3697 = vand.u32 %v3014, 4294901760
    %v3698 = vsub.f32 %v3014, %v3697
    %3699 = vmatprep.subr.mxu0 %v3698
    %v3700 = vand.u32 %v3013, 4294901760
    %v3701 = vsub.f32 %v3013, %v3700
    %3702 = vmatpush1.msra.mxu0 %v3701
    %v3703 = vand.u32 %v3012, 4294901760
    %v3704 = vsub.f32 %v3012, %v3703
    %3705 = vmatprep.subr.mxu0 %v3704
    %v3706 = vand.u32 %v3011, 4294901760
    %v3707 = vsub.f32 %v3011, %v3706
    %3708 = vmatpush1.msra.mxu0 %v3707
    %v3709 = vand.u32 %v3074, 4294901760
    %v3710 = vsub.f32 %v3074, %v3709
    %3711 = vmatprep.subr.mxu0 %v3710
    %v3712 = vand.u32 %v3073, 4294901760
    %v3713 = vsub.f32 %v3073, %v3712
    %3714 = vmatpush2.msra.mxu0 %v3713
    %v3715 = vand.u32 %v3072, 4294901760
    %v3716 = vsub.f32 %v3072, %v3715
    %3717 = vmatprep.subr.mxu0 %v3716
    %v3718 = vand.u32 %v3071, 4294901760
    %v3719 = vsub.f32 %v3071, %v3718
    %3720 = vmatpush2.msra.mxu0 %v3719
    %v3721 = vand.u32 %v3070, 4294901760
    %v3722 = vsub.f32 %v3070, %v3721
    %3723 = vmatprep.subr.mxu0 %v3722
    %v3724 = vand.u32 %v3069, 4294901760
    %v3725 = vsub.f32 %v3069, %v3724
    %3726 = vmatpush2.msra.mxu0 %v3725
    %v3727 = vand.u32 %v3068, 4294901760
    %v3728 = vsub.f32 %v3068, %v3727
    %3729 = vmatprep.subr.mxu0 %v3728
    %v3730 = vand.u32 %v3067, 4294901760
    %v3731 = vsub.f32 %v3067, %v3730
    %3732 = vmatpush2.msra.mxu0 %v3731
    %v3733 = vand.u32 %v3066, 4294901760
    %v3734 = vsub.f32 %v3066, %v3733
    %3735 = vmatprep.subr.mxu0 %v3734
    %v3736 = vand.u32 %v3065, 4294901760
    %v3737 = vsub.f32 %v3065, %v3736
    %3738 = vmatpush2.msra.mxu0 %v3737
    %v3739 = vand.u32 %v3064, 4294901760
    %v3740 = vsub.f32 %v3064, %v3739
    %3741 = vmatprep.subr.mxu0 %v3740
    %v3742 = vand.u32 %v3063, 4294901760
    %v3743 = vsub.f32 %v3063, %v3742
    %3744 = vmatpush2.msra.mxu0 %v3743
    %v3745 = vand.u32 %v3062, 4294901760
    %v3746 = vsub.f32 %v3062, %v3745
    %3747 = vmatprep.subr.mxu0 %v3746
    %v3748 = vand.u32 %v3061, 4294901760
    %v3749 = vsub.f32 %v3061, %v3748
    %3750 = vmatpush2.msra.mxu0 %v3749
    %v3751 = vand.u32 %v3060, 4294901760
    %v3752 = vsub.f32 %v3060, %v3751
    %3753 = vmatprep.subr.mxu0 %v3752
    %v3754 = vand.u32 %v3059, 4294901760
    %v3755 = vsub.f32 %v3059, %v3754
    %3756 = vmatpush2.msra.mxu0 %v3755
    %v3757 = vand.u32 %v3058, 4294901760
    %v3758 = vsub.f32 %v3058, %v3757
    %3759 = vmatprep.subr.mxu0 %v3758
    %v3760 = vand.u32 %v3057, 4294901760
    %v3761 = vsub.f32 %v3057, %v3760
    %3762 = vmatpush2.msra.mxu0 %v3761
    %v3763 = vand.u32 %v3056, 4294901760
    %v3764 = vsub.f32 %v3056, %v3763
    %3765 = vmatprep.subr.mxu0 %v3764
    %v3766 = vand.u32 %v3055, 4294901760
    %v3767 = vsub.f32 %v3055, %v3766
    %3768 = vmatpush2.msra.mxu0 %v3767
    %v3769 = vand.u32 %v3054, 4294901760
    %v3770 = vsub.f32 %v3054, %v3769
    %3771 = vmatprep.subr.mxu0 %v3770
    %v3772 = vand.u32 %v3053, 4294901760
    %v3773 = vsub.f32 %v3053, %v3772
    %3774 = vmatpush2.msra.mxu0 %v3773
    %v3775 = vand.u32 %v3052, 4294901760
    %v3776 = vsub.f32 %v3052, %v3775
    %3777 = vmatprep.subr.mxu0 %v3776
    %v3778 = vand.u32 %v3051, 4294901760
    %v3779 = vsub.f32 %v3051, %v3778
    %3780 = vmatpush2.msra.mxu0 %v3779
    %v3781 = vand.u32 %v3050, 4294901760
    %v3782 = vsub.f32 %v3050, %v3781
    %3783 = vmatprep.subr.mxu0 %v3782
    %v3784 = vand.u32 %v3049, 4294901760
    %v3785 = vsub.f32 %v3049, %v3784
    %3786 = vmatpush2.msra.mxu0 %v3785
    %v3787 = vand.u32 %v3048, 4294901760
    %v3788 = vsub.f32 %v3048, %v3787
    %3789 = vmatprep.subr.mxu0 %v3788
    %v3790 = vand.u32 %v3047, 4294901760
    %v3791 = vsub.f32 %v3047, %v3790
    %3792 = vmatpush2.msra.mxu0 %v3791
    %v3793 = vand.u32 %v3046, 4294901760
    %v3794 = vsub.f32 %v3046, %v3793
    %3795 = vmatprep.subr.mxu0 %v3794
    %v3796 = vand.u32 %v3045, 4294901760
    %v3797 = vsub.f32 %v3045, %v3796
    %3798 = vmatpush2.msra.mxu0 %v3797
    %v3799 = vand.u32 %v3044, 4294901760
    %v3800 = vsub.f32 %v3044, %v3799
    %3801 = vmatprep.subr.mxu0 %v3800
    %v3802 = vand.u32 %v3043, 4294901760
    %v3803 = vsub.f32 %v3043, %v3802
    %3804 = vmatpush2.msra.mxu0 %v3803
    %v3805 = vand.u32 %v3007, 4294901760
    %v3806 = vsub.f32 %v3007, %v3805
    %3807 = vmatprep.mubr.f32.mxu0 %v3806
    %v3808 = vand.u32 %v3006, 4294901760
    %v3809 = vsub.f32 %v3006, %v3808
    %3810 = vmatmul.mubr.f32.gmra.mxu0 %v3809
    %v3811 = vpop.f32.mrf.mxu0
    %v3812 = vadd.f32 %v3609, %v3811
    %v3813 = vpop.f32.mrf.mxu0
    %v3814 = vadd.f32 %v3611, %v3813
    %3815 = vdwg.mxu0
    %v3816 = vand.u32 %v3042, 4294901760
    %3817 = vmatprep.subr.mxu0 %v3816
    %v3818 = vand.u32 %v3041, 4294901760
    %3819 = vmatpush1.msra.mxu0 %v3818
    %v3820 = vand.u32 %v3040, 4294901760
    %3821 = vmatprep.subr.mxu0 %v3820
    %v3822 = vand.u32 %v3039, 4294901760
    %3823 = vmatpush1.msra.mxu0 %v3822
    %v3824 = vand.u32 %v3038, 4294901760
    %3825 = vmatprep.subr.mxu0 %v3824
    %v3826 = vand.u32 %v3037, 4294901760
    %3827 = vmatpush1.msra.mxu0 %v3826
    %v3828 = vand.u32 %v3036, 4294901760
    %3829 = vmatprep.subr.mxu0 %v3828
    %v3830 = vand.u32 %v3035, 4294901760
    %3831 = vmatpush1.msra.mxu0 %v3830
    %v3832 = vand.u32 %v3034, 4294901760
    %3833 = vmatprep.subr.mxu0 %v3832
    %v3834 = vand.u32 %v3033, 4294901760
    %3835 = vmatpush1.msra.mxu0 %v3834
    %v3836 = vand.u32 %v3032, 4294901760
    %3837 = vmatprep.subr.mxu0 %v3836
    %v3838 = vand.u32 %v3031, 4294901760
    %3839 = vmatpush1.msra.mxu0 %v3838
    %v3840 = vand.u32 %v3030, 4294901760
    %3841 = vmatprep.subr.mxu0 %v3840
    %v3842 = vand.u32 %v3029, 4294901760
    %3843 = vmatpush1.msra.mxu0 %v3842
    %v3844 = vand.u32 %v3028, 4294901760
    %3845 = vmatprep.subr.mxu0 %v3844
    %v3846 = vand.u32 %v3027, 4294901760
    %3847 = vmatpush1.msra.mxu0 %v3846
    %v3848 = vand.u32 %v3026, 4294901760
    %3849 = vmatprep.subr.mxu0 %v3848
    %v3850 = vand.u32 %v3025, 4294901760
    %3851 = vmatpush1.msra.mxu0 %v3850
    %v3852 = vand.u32 %v3024, 4294901760
    %3853 = vmatprep.subr.mxu0 %v3852
    %v3854 = vand.u32 %v3023, 4294901760
    %3855 = vmatpush1.msra.mxu0 %v3854
    %v3856 = vand.u32 %v3022, 4294901760
    %3857 = vmatprep.subr.mxu0 %v3856
    %v3858 = vand.u32 %v3021, 4294901760
    %3859 = vmatpush1.msra.mxu0 %v3858
    %v3860 = vand.u32 %v3020, 4294901760
    %3861 = vmatprep.subr.mxu0 %v3860
    %v3862 = vand.u32 %v3019, 4294901760
    %3863 = vmatpush1.msra.mxu0 %v3862
    %v3864 = vand.u32 %v3018, 4294901760
    %3865 = vmatprep.subr.mxu0 %v3864
    %v3866 = vand.u32 %v3017, 4294901760
    %3867 = vmatpush1.msra.mxu0 %v3866
    %v3868 = vand.u32 %v3016, 4294901760
    %3869 = vmatprep.subr.mxu0 %v3868
    %v3870 = vand.u32 %v3015, 4294901760
    %3871 = vmatpush1.msra.mxu0 %v3870
    %v3872 = vand.u32 %v3014, 4294901760
    %3873 = vmatprep.subr.mxu0 %v3872
    %v3874 = vand.u32 %v3013, 4294901760
    %3875 = vmatpush1.msra.mxu0 %v3874
    %v3876 = vand.u32 %v3012, 4294901760
    %3877 = vmatprep.subr.mxu0 %v3876
    %v3878 = vand.u32 %v3011, 4294901760
    %3879 = vmatpush1.msra.mxu0 %v3878
    %v3880 = vand.u32 %v3074, 4294901760
    %3881 = vmatprep.subr.mxu0 %v3880
    %v3882 = vand.u32 %v3073, 4294901760
    %3883 = vmatpush2.msra.mxu0 %v3882
    %v3884 = vand.u32 %v3072, 4294901760
    %3885 = vmatprep.subr.mxu0 %v3884
    %v3886 = vand.u32 %v3071, 4294901760
    %3887 = vmatpush2.msra.mxu0 %v3886
    %v3888 = vand.u32 %v3070, 4294901760
    %3889 = vmatprep.subr.mxu0 %v3888
    %v3890 = vand.u32 %v3069, 4294901760
    %3891 = vmatpush2.msra.mxu0 %v3890
    %v3892 = vand.u32 %v3068, 4294901760
    %3893 = vmatprep.subr.mxu0 %v3892
    %v3894 = vand.u32 %v3067, 4294901760
    %3895 = vmatpush2.msra.mxu0 %v3894
    %v3896 = vand.u32 %v3066, 4294901760
    %3897 = vmatprep.subr.mxu0 %v3896
    %v3898 = vand.u32 %v3065, 4294901760
    %3899 = vmatpush2.msra.mxu0 %v3898
    %v3900 = vand.u32 %v3064, 4294901760
    %3901 = vmatprep.subr.mxu0 %v3900
    %v3902 = vand.u32 %v3063, 4294901760
    %3903 = vmatpush2.msra.mxu0 %v3902
    %v3904 = vand.u32 %v3062, 4294901760
    %3905 = vmatprep.subr.mxu0 %v3904
    %v3906 = vand.u32 %v3061, 4294901760
    %3907 = vmatpush2.msra.mxu0 %v3906
    %v3908 = vand.u32 %v3060, 4294901760
    %3909 = vmatprep.subr.mxu0 %v3908
    %v3910 = vand.u32 %v3059, 4294901760
    %3911 = vmatpush2.msra.mxu0 %v3910
    %v3912 = vand.u32 %v3058, 4294901760
    %3913 = vmatprep.subr.mxu0 %v3912
    %v3914 = vand.u32 %v3057, 4294901760
    %3915 = vmatpush2.msra.mxu0 %v3914
    %v3916 = vand.u32 %v3056, 4294901760
    %3917 = vmatprep.subr.mxu0 %v3916
    %v3918 = vand.u32 %v3055, 4294901760
    %3919 = vmatpush2.msra.mxu0 %v3918
    %v3920 = vand.u32 %v3054, 4294901760
    %3921 = vmatprep.subr.mxu0 %v3920
    %v3922 = vand.u32 %v3053, 4294901760
    %3923 = vmatpush2.msra.mxu0 %v3922
    %v3924 = vand.u32 %v3052, 4294901760
    %3925 = vmatprep.subr.mxu0 %v3924
    %v3926 = vand.u32 %v3051, 4294901760
    %3927 = vmatpush2.msra.mxu0 %v3926
    %v3928 = vand.u32 %v3050, 4294901760
    %3929 = vmatprep.subr.mxu0 %v3928
    %v3930 = vand.u32 %v3049, 4294901760
    %3931 = vmatpush2.msra.mxu0 %v3930
    %v3932 = vand.u32 %v3048, 4294901760
    %3933 = vmatprep.subr.mxu0 %v3932
    %v3934 = vand.u32 %v3047, 4294901760
    %3935 = vmatpush2.msra.mxu0 %v3934
    %v3936 = vand.u32 %v3046, 4294901760
    %3937 = vmatprep.subr.mxu0 %v3936
    %v3938 = vand.u32 %v3045, 4294901760
    %3939 = vmatpush2.msra.mxu0 %v3938
    %v3940 = vand.u32 %v3044, 4294901760
    %3941 = vmatprep.subr.mxu0 %v3940
    %v3942 = vand.u32 %v3043, 4294901760
    %3943 = vmatpush2.msra.mxu0 %v3942
    %v3944 = vand.u32 %v3007, 4294901760
    %v3945 = vsub.f32 %v3007, %v3944
    %v3946 = vand.u32 %v3945, 4294901760
    %3947 = vmatprep.mubr.f32.mxu0 %v3946
    %v3948 = vand.u32 %v3006, 4294901760
    %v3949 = vsub.f32 %v3006, %v3948
    %v3950 = vand.u32 %v3949, 4294901760
    %3951 = vmatmul.mubr.f32.gmra.mxu0 %v3950
    %v3952 = vpop.f32.mrf.mxu0
    %v3953 = vadd.f32 %v3812, %v3952
    %v3954 = vpop.f32.mrf.mxu0
    %v3955 = vadd.f32 %v3814, %v3954
    %3956 = vdwg.mxu0
    %v3957 = vand.u32 %v3042, 4294901760
    %v3958 = vsub.f32 %v3042, %v3957
    %v3959 = vand.u32 %v3958, 4294901760
    %3960 = vmatprep.subr.mxu0 %v3959
    %v3961 = vand.u32 %v3041, 4294901760
    %v3962 = vsub.f32 %v3041, %v3961
    %v3963 = vand.u32 %v3962, 4294901760
    %3964 = vmatpush1.msra.mxu0 %v3963
    %v3965 = vand.u32 %v3040, 4294901760
    %v3966 = vsub.f32 %v3040, %v3965
    %v3967 = vand.u32 %v3966, 4294901760
    %3968 = vmatprep.subr.mxu0 %v3967
    %v3969 = vand.u32 %v3039, 4294901760
    %v3970 = vsub.f32 %v3039, %v3969
    %v3971 = vand.u32 %v3970, 4294901760
    %3972 = vmatpush1.msra.mxu0 %v3971
    %v3973 = vand.u32 %v3038, 4294901760
    %v3974 = vsub.f32 %v3038, %v3973
    %v3975 = vand.u32 %v3974, 4294901760
    %3976 = vmatprep.subr.mxu0 %v3975
    %v3977 = vand.u32 %v3037, 4294901760
    %v3978 = vsub.f32 %v3037, %v3977
    %v3979 = vand.u32 %v3978, 4294901760
    %3980 = vmatpush1.msra.mxu0 %v3979
    %v3981 = vand.u32 %v3036, 4294901760
    %v3982 = vsub.f32 %v3036, %v3981
    %v3983 = vand.u32 %v3982, 4294901760
    %3984 = vmatprep.subr.mxu0 %v3983
    %v3985 = vand.u32 %v3035, 4294901760
    %v3986 = vsub.f32 %v3035, %v3985
    %v3987 = vand.u32 %v3986, 4294901760
    %3988 = vmatpush1.msra.mxu0 %v3987
    %v3989 = vand.u32 %v3034, 4294901760
    %v3990 = vsub.f32 %v3034, %v3989
    %v3991 = vand.u32 %v3990, 4294901760
    %3992 = vmatprep.subr.mxu0 %v3991
    %v3993 = vand.u32 %v3033, 4294901760
    %v3994 = vsub.f32 %v3033, %v3993
    %v3995 = vand.u32 %v3994, 4294901760
    %3996 = vmatpush1.msra.mxu0 %v3995
    %v3997 = vand.u32 %v3032, 4294901760
    %v3998 = vsub.f32 %v3032, %v3997
    %v3999 = vand.u32 %v3998, 4294901760
    %4000 = vmatprep.subr.mxu0 %v3999
    %v4001 = vand.u32 %v3031, 4294901760
    %v4002 = vsub.f32 %v3031, %v4001
    %v4003 = vand.u32 %v4002, 4294901760
    %4004 = vmatpush1.msra.mxu0 %v4003
    %v4005 = vand.u32 %v3030, 4294901760
    %v4006 = vsub.f32 %v3030, %v4005
    %v4007 = vand.u32 %v4006, 4294901760
    %4008 = vmatprep.subr.mxu0 %v4007
    %v4009 = vand.u32 %v3029, 4294901760
    %v4010 = vsub.f32 %v3029, %v4009
    %v4011 = vand.u32 %v4010, 4294901760
    %4012 = vmatpush1.msra.mxu0 %v4011
    %v4013 = vand.u32 %v3028, 4294901760
    %v4014 = vsub.f32 %v3028, %v4013
    %v4015 = vand.u32 %v4014, 4294901760
    %4016 = vmatprep.subr.mxu0 %v4015
    %v4017 = vand.u32 %v3027, 4294901760
    %v4018 = vsub.f32 %v3027, %v4017
    %v4019 = vand.u32 %v4018, 4294901760
    %4020 = vmatpush1.msra.mxu0 %v4019
    %v4021 = vand.u32 %v3026, 4294901760
    %v4022 = vsub.f32 %v3026, %v4021
    %v4023 = vand.u32 %v4022, 4294901760
    %4024 = vmatprep.subr.mxu0 %v4023
    %v4025 = vand.u32 %v3025, 4294901760
    %v4026 = vsub.f32 %v3025, %v4025
    %v4027 = vand.u32 %v4026, 4294901760
    %4028 = vmatpush1.msra.mxu0 %v4027
    %v4029 = vand.u32 %v3024, 4294901760
    %v4030 = vsub.f32 %v3024, %v4029
    %v4031 = vand.u32 %v4030, 4294901760
    %4032 = vmatprep.subr.mxu0 %v4031
    %v4033 = vand.u32 %v3023, 4294901760
    %v4034 = vsub.f32 %v3023, %v4033
    %v4035 = vand.u32 %v4034, 4294901760
    %4036 = vmatpush1.msra.mxu0 %v4035
    %v4037 = vand.u32 %v3022, 4294901760
    %v4038 = vsub.f32 %v3022, %v4037
    %v4039 = vand.u32 %v4038, 4294901760
    %4040 = vmatprep.subr.mxu0 %v4039
    %v4041 = vand.u32 %v3021, 4294901760
    %v4042 = vsub.f32 %v3021, %v4041
    %v4043 = vand.u32 %v4042, 4294901760
    %4044 = vmatpush1.msra.mxu0 %v4043
    %v4045 = vand.u32 %v3020, 4294901760
    %v4046 = vsub.f32 %v3020, %v4045
    %v4047 = vand.u32 %v4046, 4294901760
    %4048 = vmatprep.subr.mxu0 %v4047
    %v4049 = vand.u32 %v3019, 4294901760
    %v4050 = vsub.f32 %v3019, %v4049
    %v4051 = vand.u32 %v4050, 4294901760
    %4052 = vmatpush1.msra.mxu0 %v4051
    %v4053 = vand.u32 %v3018, 4294901760
    %v4054 = vsub.f32 %v3018, %v4053
    %v4055 = vand.u32 %v4054, 4294901760
    %4056 = vmatprep.subr.mxu0 %v4055
    %v4057 = vand.u32 %v3017, 4294901760
    %v4058 = vsub.f32 %v3017, %v4057
    %v4059 = vand.u32 %v4058, 4294901760
    %4060 = vmatpush1.msra.mxu0 %v4059
    %v4061 = vand.u32 %v3016, 4294901760
    %v4062 = vsub.f32 %v3016, %v4061
    %v4063 = vand.u32 %v4062, 4294901760
    %4064 = vmatprep.subr.mxu0 %v4063
    %v4065 = vand.u32 %v3015, 4294901760
    %v4066 = vsub.f32 %v3015, %v4065
    %v4067 = vand.u32 %v4066, 4294901760
    %4068 = vmatpush1.msra.mxu0 %v4067
    %v4069 = vand.u32 %v3014, 4294901760
    %v4070 = vsub.f32 %v3014, %v4069
    %v4071 = vand.u32 %v4070, 4294901760
    %4072 = vmatprep.subr.mxu0 %v4071
    %v4073 = vand.u32 %v3013, 4294901760
    %v4074 = vsub.f32 %v3013, %v4073
    %v4075 = vand.u32 %v4074, 4294901760
    %4076 = vmatpush1.msra.mxu0 %v4075
    %v4077 = vand.u32 %v3012, 4294901760
    %v4078 = vsub.f32 %v3012, %v4077
    %v4079 = vand.u32 %v4078, 4294901760
    %4080 = vmatprep.subr.mxu0 %v4079
    %v4081 = vand.u32 %v3011, 4294901760
    %v4082 = vsub.f32 %v3011, %v4081
    %v4083 = vand.u32 %v4082, 4294901760
    %4084 = vmatpush1.msra.mxu0 %v4083
    %v4085 = vand.u32 %v3074, 4294901760
    %v4086 = vsub.f32 %v3074, %v4085
    %v4087 = vand.u32 %v4086, 4294901760
    %4088 = vmatprep.subr.mxu0 %v4087
    %v4089 = vand.u32 %v3073, 4294901760
    %v4090 = vsub.f32 %v3073, %v4089
    %v4091 = vand.u32 %v4090, 4294901760
    %4092 = vmatpush2.msra.mxu0 %v4091
    %v4093 = vand.u32 %v3072, 4294901760
    %v4094 = vsub.f32 %v3072, %v4093
    %v4095 = vand.u32 %v4094, 4294901760
    %4096 = vmatprep.subr.mxu0 %v4095
    %v4097 = vand.u32 %v3071, 4294901760
    %v4098 = vsub.f32 %v3071, %v4097
    %v4099 = vand.u32 %v4098, 4294901760
    %4100 = vmatpush2.msra.mxu0 %v4099
    %v4101 = vand.u32 %v3070, 4294901760
    %v4102 = vsub.f32 %v3070, %v4101
    %v4103 = vand.u32 %v4102, 4294901760
    %4104 = vmatprep.subr.mxu0 %v4103
    %v4105 = vand.u32 %v3069, 4294901760
    %v4106 = vsub.f32 %v3069, %v4105
    %v4107 = vand.u32 %v4106, 4294901760
    %4108 = vmatpush2.msra.mxu0 %v4107
    %v4109 = vand.u32 %v3068, 4294901760
    %v4110 = vsub.f32 %v3068, %v4109
    %v4111 = vand.u32 %v4110, 4294901760
    %4112 = vmatprep.subr.mxu0 %v4111
    %v4113 = vand.u32 %v3067, 4294901760
    %v4114 = vsub.f32 %v3067, %v4113
    %v4115 = vand.u32 %v4114, 4294901760
    %4116 = vmatpush2.msra.mxu0 %v4115
    %v4117 = vand.u32 %v3066, 4294901760
    %v4118 = vsub.f32 %v3066, %v4117
    %v4119 = vand.u32 %v4118, 4294901760
    %4120 = vmatprep.subr.mxu0 %v4119
    %v4121 = vand.u32 %v3065, 4294901760
    %v4122 = vsub.f32 %v3065, %v4121
    %v4123 = vand.u32 %v4122, 4294901760
    %4124 = vmatpush2.msra.mxu0 %v4123
    %v4125 = vand.u32 %v3064, 4294901760
    %v4126 = vsub.f32 %v3064, %v4125
    %v4127 = vand.u32 %v4126, 4294901760
    %4128 = vmatprep.subr.mxu0 %v4127
    %v4129 = vand.u32 %v3063, 4294901760
    %v4130 = vsub.f32 %v3063, %v4129
    %v4131 = vand.u32 %v4130, 4294901760
    %4132 = vmatpush2.msra.mxu0 %v4131
    %v4133 = vand.u32 %v3062, 4294901760
    %v4134 = vsub.f32 %v3062, %v4133
    %v4135 = vand.u32 %v4134, 4294901760
    %4136 = vmatprep.subr.mxu0 %v4135
    %v4137 = vand.u32 %v3061, 4294901760
    %v4138 = vsub.f32 %v3061, %v4137
    %v4139 = vand.u32 %v4138, 4294901760
    %4140 = vmatpush2.msra.mxu0 %v4139
    %v4141 = vand.u32 %v3060, 4294901760
    %v4142 = vsub.f32 %v3060, %v4141
    %v4143 = vand.u32 %v4142, 4294901760
    %4144 = vmatprep.subr.mxu0 %v4143
    %v4145 = vand.u32 %v3059, 4294901760
    %v4146 = vsub.f32 %v3059, %v4145
    %v4147 = vand.u32 %v4146, 4294901760
    %4148 = vmatpush2.msra.mxu0 %v4147
    %v4149 = vand.u32 %v3058, 4294901760
    %v4150 = vsub.f32 %v3058, %v4149
    %v4151 = vand.u32 %v4150, 4294901760
    %4152 = vmatprep.subr.mxu0 %v4151
    %v4153 = vand.u32 %v3057, 4294901760
    %v4154 = vsub.f32 %v3057, %v4153
    %v4155 = vand.u32 %v4154, 4294901760
    %4156 = vmatpush2.msra.mxu0 %v4155
    %v4157 = vand.u32 %v3056, 4294901760
    %v4158 = vsub.f32 %v3056, %v4157
    %v4159 = vand.u32 %v4158, 4294901760
    %4160 = vmatprep.subr.mxu0 %v4159
    %v4161 = vand.u32 %v3055, 4294901760
    %v4162 = vsub.f32 %v3055, %v4161
    %v4163 = vand.u32 %v4162, 4294901760
    %4164 = vmatpush2.msra.mxu0 %v4163
    %v4165 = vand.u32 %v3054, 4294901760
    %v4166 = vsub.f32 %v3054, %v4165
    %v4167 = vand.u32 %v4166, 4294901760
    %4168 = vmatprep.subr.mxu0 %v4167
    %v4169 = vand.u32 %v3053, 4294901760
    %v4170 = vsub.f32 %v3053, %v4169
    %v4171 = vand.u32 %v4170, 4294901760
    %4172 = vmatpush2.msra.mxu0 %v4171
    %v4173 = vand.u32 %v3052, 4294901760
    %v4174 = vsub.f32 %v3052, %v4173
    %v4175 = vand.u32 %v4174, 4294901760
    %4176 = vmatprep.subr.mxu0 %v4175
    %v4177 = vand.u32 %v3051, 4294901760
    %v4178 = vsub.f32 %v3051, %v4177
    %v4179 = vand.u32 %v4178, 4294901760
    %4180 = vmatpush2.msra.mxu0 %v4179
    %v4181 = vand.u32 %v3050, 4294901760
    %v4182 = vsub.f32 %v3050, %v4181
    %v4183 = vand.u32 %v4182, 4294901760
    %4184 = vmatprep.subr.mxu0 %v4183
    %v4185 = vand.u32 %v3049, 4294901760
    %v4186 = vsub.f32 %v3049, %v4185
    %v4187 = vand.u32 %v4186, 4294901760
    %4188 = vmatpush2.msra.mxu0 %v4187
    %v4189 = vand.u32 %v3048, 4294901760
    %v4190 = vsub.f32 %v3048, %v4189
    %v4191 = vand.u32 %v4190, 4294901760
    %4192 = vmatprep.subr.mxu0 %v4191
    %v4193 = vand.u32 %v3047, 4294901760
    %v4194 = vsub.f32 %v3047, %v4193
    %v4195 = vand.u32 %v4194, 4294901760
    %4196 = vmatpush2.msra.mxu0 %v4195
    %v4197 = vand.u32 %v3046, 4294901760
    %v4198 = vsub.f32 %v3046, %v4197
    %v4199 = vand.u32 %v4198, 4294901760
    %4200 = vmatprep.subr.mxu0 %v4199
    %v4201 = vand.u32 %v3045, 4294901760
    %v4202 = vsub.f32 %v3045, %v4201
    %v4203 = vand.u32 %v4202, 4294901760
    %4204 = vmatpush2.msra.mxu0 %v4203
    %v4205 = vand.u32 %v3044, 4294901760
    %v4206 = vsub.f32 %v3044, %v4205
    %v4207 = vand.u32 %v4206, 4294901760
    %4208 = vmatprep.subr.mxu0 %v4207
    %v4209 = vand.u32 %v3043, 4294901760
    %v4210 = vsub.f32 %v3043, %v4209
    %v4211 = vand.u32 %v4210, 4294901760
    %4212 = vmatpush2.msra.mxu0 %v4211
    %v4213 = vand.u32 %v3007, 4294901760
    %4214 = vmatprep.mubr.f32.mxu0 %v4213
    %v4215 = vand.u32 %v3006, 4294901760
    %4216 = vmatmul.mubr.f32.gmra.mxu0 %v4215
    %v4217 = vpop.f32.mrf.mxu0
    %v4218 = vadd.f32 %v3953, %v4217
    %v4219 = vpop.f32.mrf.mxu0
    %v4220 = vadd.f32 %v3955, %v4219
    %4221 = vdwg.mxu0
    %v4222 = vand.u32 %v3042, 4294901760
    %4223 = vmatprep.subr.mxu0 %v4222
    %v4224 = vand.u32 %v3041, 4294901760
    %4225 = vmatpush1.msra.mxu0 %v4224
    %v4226 = vand.u32 %v3040, 4294901760
    %4227 = vmatprep.subr.mxu0 %v4226
    %v4228 = vand.u32 %v3039, 4294901760
    %4229 = vmatpush1.msra.mxu0 %v4228
    %v4230 = vand.u32 %v3038, 4294901760
    %4231 = vmatprep.subr.mxu0 %v4230
    %v4232 = vand.u32 %v3037, 4294901760
    %4233 = vmatpush1.msra.mxu0 %v4232
    %v4234 = vand.u32 %v3036, 4294901760
    %4235 = vmatprep.subr.mxu0 %v4234
    %v4236 = vand.u32 %v3035, 4294901760
    %4237 = vmatpush1.msra.mxu0 %v4236
    %v4238 = vand.u32 %v3034, 4294901760
    %4239 = vmatprep.subr.mxu0 %v4238
    %v4240 = vand.u32 %v3033, 4294901760
    %4241 = vmatpush1.msra.mxu0 %v4240
    %v4242 = vand.u32 %v3032, 4294901760
    %4243 = vmatprep.subr.mxu0 %v4242
    %v4244 = vand.u32 %v3031, 4294901760
    %4245 = vmatpush1.msra.mxu0 %v4244
    %v4246 = vand.u32 %v3030, 4294901760
    %4247 = vmatprep.subr.mxu0 %v4246
    %v4248 = vand.u32 %v3029, 4294901760
    %4249 = vmatpush1.msra.mxu0 %v4248
    %v4250 = vand.u32 %v3028, 4294901760
    %4251 = vmatprep.subr.mxu0 %v4250
    %v4252 = vand.u32 %v3027, 4294901760
    %4253 = vmatpush1.msra.mxu0 %v4252
    %v4254 = vand.u32 %v3026, 4294901760
    %4255 = vmatprep.subr.mxu0 %v4254
    %v4256 = vand.u32 %v3025, 4294901760
    %4257 = vmatpush1.msra.mxu0 %v4256
    %v4258 = vand.u32 %v3024, 4294901760
    %4259 = vmatprep.subr.mxu0 %v4258
    %v4260 = vand.u32 %v3023, 4294901760
    %4261 = vmatpush1.msra.mxu0 %v4260
    %v4262 = vand.u32 %v3022, 4294901760
    %4263 = vmatprep.subr.mxu0 %v4262
    %v4264 = vand.u32 %v3021, 4294901760
    %4265 = vmatpush1.msra.mxu0 %v4264
    %v4266 = vand.u32 %v3020, 4294901760
    %4267 = vmatprep.subr.mxu0 %v4266
    %v4268 = vand.u32 %v3019, 4294901760
    %4269 = vmatpush1.msra.mxu0 %v4268
    %v4270 = vand.u32 %v3018, 4294901760
    %4271 = vmatprep.subr.mxu0 %v4270
    %v4272 = vand.u32 %v3017, 4294901760
    %4273 = vmatpush1.msra.mxu0 %v4272
    %v4274 = vand.u32 %v3016, 4294901760
    %4275 = vmatprep.subr.mxu0 %v4274
    %v4276 = vand.u32 %v3015, 4294901760
    %4277 = vmatpush1.msra.mxu0 %v4276
    %v4278 = vand.u32 %v3014, 4294901760
    %4279 = vmatprep.subr.mxu0 %v4278
    %v4280 = vand.u32 %v3013, 4294901760
    %4281 = vmatpush1.msra.mxu0 %v4280
    %v4282 = vand.u32 %v3012, 4294901760
    %4283 = vmatprep.subr.mxu0 %v4282
    %v4284 = vand.u32 %v3011, 4294901760
    %4285 = vmatpush1.msra.mxu0 %v4284
    %v4286 = vand.u32 %v3074, 4294901760
    %4287 = vmatprep.subr.mxu0 %v4286
    %v4288 = vand.u32 %v3073, 4294901760
    %4289 = vmatpush2.msra.mxu0 %v4288
    %v4290 = vand.u32 %v3072, 4294901760
    %4291 = vmatprep.subr.mxu0 %v4290
    %v4292 = vand.u32 %v3071, 4294901760
    %4293 = vmatpush2.msra.mxu0 %v4292
    %v4294 = vand.u32 %v3070, 4294901760
    %4295 = vmatprep.subr.mxu0 %v4294
    %v4296 = vand.u32 %v3069, 4294901760
    %4297 = vmatpush2.msra.mxu0 %v4296
    %v4298 = vand.u32 %v3068, 4294901760
    %4299 = vmatprep.subr.mxu0 %v4298
    %v4300 = vand.u32 %v3067, 4294901760
    %4301 = vmatpush2.msra.mxu0 %v4300
    %v4302 = vand.u32 %v3066, 4294901760
    %4303 = vmatprep.subr.mxu0 %v4302
    %v4304 = vand.u32 %v3065, 4294901760
    %4305 = vmatpush2.msra.mxu0 %v4304
    %v4306 = vand.u32 %v3064, 4294901760
    %4307 = vmatprep.subr.mxu0 %v4306
    %v4308 = vand.u32 %v3063, 4294901760
    %4309 = vmatpush2.msra.mxu0 %v4308
    %v4310 = vand.u32 %v3062, 4294901760
    %4311 = vmatprep.subr.mxu0 %v4310
    %v4312 = vand.u32 %v3061, 4294901760
    %4313 = vmatpush2.msra.mxu0 %v4312
    %v4314 = vand.u32 %v3060, 4294901760
    %4315 = vmatprep.subr.mxu0 %v4314
    %v4316 = vand.u32 %v3059, 4294901760
    %4317 = vmatpush2.msra.mxu0 %v4316
    %v4318 = vand.u32 %v3058, 4294901760
    %4319 = vmatprep.subr.mxu0 %v4318
    %v4320 = vand.u32 %v3057, 4294901760
    %4321 = vmatpush2.msra.mxu0 %v4320
    %v4322 = vand.u32 %v3056, 4294901760
    %4323 = vmatprep.subr.mxu0 %v4322
    %v4324 = vand.u32 %v3055, 4294901760
    %4325 = vmatpush2.msra.mxu0 %v4324
    %v4326 = vand.u32 %v3054, 4294901760
    %4327 = vmatprep.subr.mxu0 %v4326
    %v4328 = vand.u32 %v3053, 4294901760
    %4329 = vmatpush2.msra.mxu0 %v4328
    %v4330 = vand.u32 %v3052, 4294901760
    %4331 = vmatprep.subr.mxu0 %v4330
    %v4332 = vand.u32 %v3051, 4294901760
    %4333 = vmatpush2.msra.mxu0 %v4332
    %v4334 = vand.u32 %v3050, 4294901760
    %4335 = vmatprep.subr.mxu0 %v4334
    %v4336 = vand.u32 %v3049, 4294901760
    %4337 = vmatpush2.msra.mxu0 %v4336
    %v4338 = vand.u32 %v3048, 4294901760
    %4339 = vmatprep.subr.mxu0 %v4338
    %v4340 = vand.u32 %v3047, 4294901760
    %4341 = vmatpush2.msra.mxu0 %v4340
    %v4342 = vand.u32 %v3046, 4294901760
    %4343 = vmatprep.subr.mxu0 %v4342
    %v4344 = vand.u32 %v3045, 4294901760
    %4345 = vmatpush2.msra.mxu0 %v4344
    %v4346 = vand.u32 %v3044, 4294901760
    %4347 = vmatprep.subr.mxu0 %v4346
    %v4348 = vand.u32 %v3043, 4294901760
    %4349 = vmatpush2.msra.mxu0 %v4348
    %v4350 = vand.u32 %v3007, 4294901760
    %4351 = vmatprep.mubr.f32.mxu0 %v4350
    %v4352 = vand.u32 %v3006, 4294901760
    %4353 = vmatmul.mubr.f32.gmra.mxu0 %v4352
    %v4354 = vpop.f32.mrf.mxu0
    %v4355 = vadd.f32 %v4218, %v4354
    %v4356 = vpop.f32.mrf.mxu0
    %v4357 = vadd.f32 %v4220, %v4356
    %4358 = vdwg.mxu0
    %v4359 = vmax.f32 %v4355, 0.0
    %v4360 = vmax.f32 %v4357, 0.0
    %s4361 = sld [smem:[#allocation3 + $0xa]]
    %s4362 = sld [smem:[#allocation3]]
    %v4363 = vstv %s4362
    %v4364 = vmul.f32 %v4363, %v4359
    %v4365 = vmul.f32 %v4363, %v4360
    %v4366 = vmax.f32 %v4364, 0.0
    %v4367 = vmax.f32 %v4365, 0.0
    %v4368 = vstv %s4361
    %v4369 = vmul.f32 %v4368, %v4366
    %v4370 = vmul.f32 %v4368, %v4367
    %s4371 = sld [smem:[#allocation3 + $0xb]]
    %s4372 = sld [smem:[#allocation3 + $0x1]]
    %v4373 = vstv %s4372
    %v4374 = vmul.f32 %v4373, %v4359
    %v4375 = vmul.f32 %v4373, %v4360
    %v4376 = vmax.f32 %v4374, 0.0
    %v4377 = vmax.f32 %v4375, 0.0
    %v4378 = vstv %s4371
    %v4379 = vmul.f32 %v4378, %v4376
    %v4380 = vmul.f32 %v4378, %v4377
    %s4381 = sld [smem:[#allocation3 + $0xc]]
    %s4382 = sld [smem:[#allocation3 + $0x2]]
    %v4383 = vstv %s4382
    %v4384 = vmul.f32 %v4383, %v4359
    %v4385 = vmul.f32 %v4383, %v4360
    %v4386 = vmax.f32 %v4384, 0.0
    %v4387 = vmax.f32 %v4385, 0.0
    %v4388 = vstv %s4381
    %v4389 = vmul.f32 %v4388, %v4386
    %v4390 = vmul.f32 %v4388, %v4387
    %v4391 = vadd.f32 %v4369, %v4389
    %v4392 = vadd.f32 %v4370, %v4390
    %s4393 = sld [smem:[#allocation3 + $0xd]]
    %s4394 = sld [smem:[#allocation3 + $0x3]]
    %v4395 = vstv %s4394
    %v4396 = vmul.f32 %v4395, %v4359
    %v4397 = vmul.f32 %v4395, %v4360
    %v4398 = vmax.f32 %v4396, 0.0
    %v4399 = vmax.f32 %v4397, 0.0
    %v4400 = vstv %s4393
    %v4401 = vmul.f32 %v4400, %v4398
    %v4402 = vmul.f32 %v4400, %v4399
    %v4403 = vadd.f32 %v4379, %v4401
    %v4404 = vadd.f32 %v4380, %v4402
    %s4405 = sld [smem:[#allocation3 + $0xe]]
    %s4406 = sld [smem:[#allocation3 + $0x4]]
    %v4407 = vstv %s4406
    %v4408 = vmul.f32 %v4407, %v4359
    %v4409 = vmul.f32 %v4407, %v4360
    %v4410 = vmax.f32 %v4408, 0.0
    %v4411 = vmax.f32 %v4409, 0.0
    %v4412 = vstv %s4405
    %v4413 = vmul.f32 %v4412, %v4410
    %v4414 = vmul.f32 %v4412, %v4411
    %v4415 = vadd.f32 %v4391, %v4413
    %v4416 = vadd.f32 %v4392, %v4414
    %s4417 = sld [smem:[#allocation3 + $0xf]]
    %s4418 = sld [smem:[#allocation3 + $0x5]]
    %v4419 = vstv %s4418
    %v4420 = vmul.f32 %v4419, %v4359
    %v4421 = vmul.f32 %v4419, %v4360
    %v4422 = vmax.f32 %v4420, 0.0
    %v4423 = vmax.f32 %v4421, 0.0
    %v4424 = vstv %s4417
    %v4425 = vmul.f32 %v4424, %v4422
    %v4426 = vmul.f32 %v4424, %v4423
    %v4427 = vadd.f32 %v4403, %v4425
    %v4428 = vadd.f32 %v4404, %v4426
    %s4429 = sld [smem:[#allocation3 + $0x10]]
    %s4430 = sld [smem:[#allocation3 + $0x6]]
    %v4431 = vstv %s4430
    %v4432 = vmul.f32 %v4431, %v4359
    %v4433 = vmul.f32 %v4431, %v4360
    %v4434 = vmax.f32 %v4432, 0.0
    %v4435 = vmax.f32 %v4433, 0.0
    %v4436 = vstv %s4429
    %v4437 = vmul.f32 %v4436, %v4434
    %v4438 = vmul.f32 %v4436, %v4435
    %v4439 = vadd.f32 %v4415, %v4437
    %v4440 = vadd.f32 %v4416, %v4438
    %s4441 = sld [smem:[#allocation3 + $0x11]]
    %s4442 = sld [smem:[#allocation3 + $0x7]]
    %v4443 = vstv %s4442
    %v4444 = vmul.f32 %v4443, %v4359
    %v4445 = vmul.f32 %v4443, %v4360
    %v4446 = vmax.f32 %v4444, 0.0
    %v4447 = vmax.f32 %v4445, 0.0
    %v4448 = vstv %s4441
    %v4449 = vmul.f32 %v4448, %v4446
    %v4450 = vmul.f32 %v4448, %v4447
    %v4451 = vadd.f32 %v4427, %v4449
    %v4452 = vadd.f32 %v4428, %v4450
    %s4453 = sld [smem:[#allocation3 + $0x12]]
    %s4454 = sld [smem:[#allocation3 + $0x8]]
    %v4455 = vstv %s4454
    %v4456 = vmul.f32 %v4455, %v4359
    %v4457 = vmul.f32 %v4455, %v4360
    %v4458 = vmax.f32 %v4456, 0.0
    %v4459 = vmax.f32 %v4457, 0.0
    %v4460 = vstv %s4453
    %v4461 = vmul.f32 %v4460, %v4458
    %v4462 = vmul.f32 %v4460, %v4459
    %v4463 = vadd.f32 %v4439, %v4461
    %v4464 = vadd.f32 %v4440, %v4462
    %s4465 = sld [smem:[#allocation3 + $0x13]]
    %s4466 = sld [smem:[#allocation3 + $0x9]]
    %v4467 = vstv %s4466
    %v4468 = vmul.f32 %v4467, %v4359
    %v4469 = vmul.f32 %v4467, %v4360
    %v4470 = vmax.f32 %v4468, 0.0
    %v4471 = vmax.f32 %v4469, 0.0
    %v4472 = vstv %s4465
    %v4473 = vmul.f32 %v4472, %v4470
    %v4474 = vmul.f32 %v4472, %v4471
    %v4475 = vadd.f32 %v4451, %v4473
    %v4476 = vadd.f32 %v4452, %v4474
    %v4477 = vadd.f32 %v4463, %v4475
    %v4478 = vadd.f32 %v4464, %v4476
    %v4479 = vadd.f32 %v3006, %v4477
    %v4480 = vadd.f32 %v3007, %v4478
    %v4481 = vtanh.pop %v4479
    %v4482 = vtanh.pop %v4480
    %s4483 = scalar_lea.vmem [#allocation10], 32
    %4484 = vst [vmem:[%s4483] sm:$0xff] %v4481
    %4485 = vst [vmem:[%s4483 + $0x8] sm:$0xff] %v4482
    %4486 = vst [vmem:[#allocation2] sm:$0xff] %v4481
    %4487 = vst [vmem:[#allocation2 + $0x8] sm:$0xff] %v4482
    // Predicated region
    $region30: #{tpu_custom_call.1} parent=1 // pred_check
      _
    $region31: #{tpu_custom_call.1} parent=1 // pred_check_branch
      %4489 = sbr.rel (0) target = $region33
    $region32: #{tpu_custom_call.1} parent=1 // pred_region
      %s4491 = ssub.s32 768, 768
      %4492 = vsyncadd [#allocation5], %s4491
      %s4493 = sshll.u32 [#allocation10], 4
      %s4494 = int_to_ptr.vmem [resolvable:$true] %s4493
      %4499 = dma.vmem_to_hbm [thread:$0]  %s4494, 768, %s3, [#allocation5], 256, 256, 16
    $region33: #{tpu_custom_call.1} parent=1 // pred_fallthru
      _
    // Predicated region
    $region34: #{tpu_custom_call.1} parent=1 // pred_check
      _
    $region35: #{tpu_custom_call.1} parent=1 // pred_check_branch
      %4501 = sbr.rel (0) target = $region37
    $region36: #{tpu_custom_call.1} parent=1 // pred_region
      %4502 = dma.done [#allocation5], 768
    $region37: #{tpu_custom_call.1} parent=1 // pred_fallthru
      _
    %4503 = vsyncpa [#allocation4], 1
    %4504 = vsyncpa [#allocation9], 1
    %4505 = vsyncpa [#allocation5], 1
    %4506 = vsyncpa [#allocation6], 1

</llo_original>
